<compile_context>
chip_gen: v5e
topology: v5e:2x2
jax: 0.10.0
libtpu: 0.0.40
codegen_flags: <defaults>
</compile_context>

<pallas_src>
import functools

import jax
import jax.numpy as jnp
from jax.experimental import pallas as pl
from jax.experimental.pallas import tpu as pltpu


def _round_up(x, m):
    return (x + m - 1) // m * m


def _bn_fold(bn):  # eval-mode BatchNorm -> per-channel scale/shift
    gamma, beta, mean, var, eps = bn
    scale = gamma / jnp.sqrt(var + eps)
    shift = beta - mean * scale
    return scale, shift


# ---------------------------------------------------------------------------
# Kernel 1: fused 3x3 conv ([g2l+l2l] -> out_xl, l2g) + SpectralTransform.conv1
# Input tile is the reflect-padded image, spatially flattened with row stride
# R (multiple of 128).  im2col-in-VMEM + one K=9*Cin bf16 matmul.
# ---------------------------------------------------------------------------
def _ffc_conv3x3_kernel(x_ref, wc_ref, w1_ref, sh1_ref,
                        oxl_ref, l2g_ref, x1_ref, col_ref,
                        *, R, s_out, cin, in_cg, out_cl):
    # x_ref  : (1, Cin, s_pad) bf16, channel order [x_g ; x_l]
    # wc_ref : (Cout3, 9*Cin)  bf16, im2col weights (column = t*Cin + c)
    # w1_ref : (half, in_cg)   bf16, conv1 weight with BN scale folded
    # sh1_ref: (half, 1)       f32 , conv1 BN shift
    # outputs: (1, out_cl, s_out) f32, (1, out_cg, s_out) bf16, (1, half, s_out) bf16
    # col_ref: (9*Cin, s_out) bf16 scratch
    L = s_out + 2 * R
    # kw in {1,2}: one lane-realignment pass each over the resident tile.
    shift1 = x_ref[0, :, 1:1 + L]
    shift2 = x_ref[0, :, 2:2 + L]
    shifted = (None, shift1, shift2)
    for t in range(9):
        kh, kw = divmod(t, 3)
        if kw == 0:
            win = x_ref[0, :, kh * R: kh * R + s_out]      # 128-aligned ref slice
        else:
            win = shifted[kw][:, kh * R: kh * R + s_out]   # aligned slice of copy
        col_ref[t * cin:(t + 1) * cin, :] = win
    # One big matmul for [ out_xl | l2g ] (K = 144 fills the MXU depth better).
    acc = jnp.dot(wc_ref[...], col_ref[...], preferred_element_type=jnp.float32)
    oxl_ref[0] = acc[:out_cl]
    l2g_ref[0] = acc[out_cl:].astype(jnp.bfloat16)
    # Fused SpectralTransform.conv1 (1x1 + folded BN + ReLU) on the resident
    # x_g channels: the centre tap of output o sits at flat offset o + R + 1.
    xg_c = shift1[:in_cg, R:R + s_out]                      # (in_cg, s_out) bf16
    y1 = jnp.dot(w1_ref[...], xg_c, preferred_element_type=jnp.float32)
    x1_ref[0] = jnp.maximum(y1 + sh1_ref[...], 0.0).astype(jnp.bfloat16)


def ffc_conv3x3_fused(x_cat, w_col, w1, sh1, *, out_cl, out_cg, half,
                      row_tile=None):
    # x_cat: (B, Cin, H, W) f32 with channel order [x_g ; x_l]
    B, Cin, H, W = x_cat.shape
    in_cg = w1.shape[1]
    R = _round_up(W + 2, 128)                 # lane-aligned padded row stride
    th = H if row_tile is None else row_tile  # output rows per grid step
    assert H % th == 0, "row_tile must divide H"
    n_h = H // th
    s_out = th * R
    s_pad = (th + 2) * R + 128                # +128: keeps kw-shifted slices in bounds
    cout3 = out_cl + out_cg

    xpad = jnp.pad(x_cat, ((0, 0), (0, 0), (1, 1), (1, 1)), mode="reflect")
    xpad = jnp.pad(xpad, ((0, 0), (0, 0), (0, 0), (0, R - (W + 2))))
    xflat = xpad.reshape(B, Cin, (H + 2) * R)
    xflat = jnp.pad(xflat, ((0, 0), (0, 0), (0, 128))).astype(jnp.bfloat16)
    if n_h == 1:
        x_tiled = xflat
    else:  # overlapping row tiles (2-row halo) laid out contiguously
        x_tiled = jnp.concatenate(
            [xflat[:, :, j * th * R: j * th * R + s_pad] for j in range(n_h)],
            axis=-1)

    kernel = functools.partial(_ffc_conv3x3_kernel, R=R, s_out=s_out, cin=Cin,
                               in_cg=in_cg, out_cl=out_cl)
    oxl, l2g, x1 = pl.pallas_call(
        kernel,
        out_shape=(
            jax.ShapeDtypeStruct((B, out_cl, H * R), jnp.float32),
            jax.ShapeDtypeStruct((B, out_cg, H * R), jnp.bfloat16),
            jax.ShapeDtypeStruct((B, half, H * R), jnp.bfloat16),
        ),
        grid=(B, n_h),
        in_specs=[
            pl.BlockSpec((1, Cin, s_pad), lambda b, j: (b, 0, j)),
            pl.BlockSpec((cout3, 9 * Cin), lambda b, j: (0, 0)),
            pl.BlockSpec((half, in_cg), lambda b, j: (0, 0)),
            pl.BlockSpec((half, 1), lambda b, j: (0, 0)),
        ],
        out_specs=(
            pl.BlockSpec((1, out_cl, s_out), lambda b, j: (b, 0, j)),
            pl.BlockSpec((1, out_cg, s_out), lambda b, j: (b, 0, j)),
            pl.BlockSpec((1, half, s_out), lambda b, j: (b, 0, j)),
        ),
        scratch_shapes=[pltpu.VMEM((9 * Cin, s_out), jnp.bfloat16)],
        compiler_params=pltpu.CompilerParams(
            dimension_semantics=("parallel", "parallel")),
    )(x_tiled, w_col, w1, sh1)
    return oxl, l2g, x1, R


# ---------------------------------------------------------------------------
# Kernel 2: spectral 1x1 conv (BN scale folded) + shift + ReLU, lane-dense.
# ---------------------------------------------------------------------------
def _pw_bn_relu_kernel(x_ref, w_ref, shift_ref, o_ref):
    y = jnp.dot(w_ref[...], x_ref[0], preferred_element_type=jnp.float32)
    o_ref[0] = jnp.maximum(y + shift_ref[...], 0.0)


def pw_conv_bn_relu(x_flat, w, scale, shift):
    # x_flat: (B, Cin, S) bf16 ; w: (Cout, Cin) f32 ; scale/shift: (Cout,) f32
    B, Cin, S = x_flat.shape
    Cout = w.shape[0]
    w_folded = (w * scale[:, None]).astype(jnp.bfloat16)
    shift2 = shift.reshape(Cout, 1).astype(jnp.float32)
    return pl.pallas_call(
        _pw_bn_relu_kernel,
        out_shape=jax.ShapeDtypeStruct((B, Cout, S), jnp.float32),
        grid=(B,),
        in_specs=[
            pl.BlockSpec((1, Cin, S), lambda b: (b, 0, 0)),
            pl.BlockSpec((Cout, Cin), lambda b: (0, 0)),
            pl.BlockSpec((Cout, 1), lambda b: (0, 0)),
        ],
        out_specs=pl.BlockSpec((1, Cout, S), lambda b: (b, 0, 0)),
        compiler_params=pltpu.CompilerParams(dimension_semantics=("parallel",)),
    )(x_flat, w_folded, shift2)


# ---------------------------------------------------------------------------
# Kernel 3: SpectralTransform.conv2 with fused residual (x1 + fu, added in f32)
# and the final out_xg = convl2g + conv2(...) epilogue add.
# ---------------------------------------------------------------------------
def _pw_conv2_kernel(x1_ref, fu_ref, l2g_ref, w_ref, o_ref):
    s = x1_ref[0].astype(jnp.float32) + fu_ref[0].astype(jnp.float32)
    y = jnp.dot(w_ref[...], s.astype(jnp.bfloat16),
                preferred_element_type=jnp.float32)
    o_ref[0] = y + l2g_ref[0].astype(jnp.float32)


def pw_conv2_residual(x1_flat, fu_flat, l2g_flat, w):
    # x1/fu: (B, half, S) bf16 ; l2g: (B, Cout, S) bf16 ; w: (Cout, half) f32
    B, Cin, S = x1_flat.shape
    Cout = w.shape[0]
    wb = w.astype(jnp.bfloat16)
    return pl.pallas_call(
        _pw_conv2_kernel,
        out_shape=jax.ShapeDtypeStruct((B, Cout, S), jnp.float32),
        grid=(B,),
        in_specs=[
            pl.BlockSpec((1, Cin, S), lambda b: (b, 0, 0)),
            pl.BlockSpec((1, Cin, S), lambda b: (b, 0, 0)),
            pl.BlockSpec((1, Cout, S), lambda b: (b, 0, 0)),
            pl.BlockSpec((Cout, Cin), lambda b: (0, 0)),
        ],
        out_specs=pl.BlockSpec((1, Cout, S), lambda b: (b, 0, 0)),
        compiler_params=pltpu.CompilerParams(dimension_semantics=("parallel",)),
    )(x1_flat, fu_flat, l2g_flat, wb)


# ---------------------------------------------------------------------------
# Glue (layout plumbing only; all matmul/BN/ReLU/add compute is in Pallas)
# ---------------------------------------------------------------------------
def fourier_unit(x_img, w_fu, bn_fu):
    # TODO(synk): rfft2/irfft2 have no Pallas primitive; FFTs run via jnp.fft —
    # the spectral 1x1 conv + BN + ReLU hot path stays in the Pallas kernel.
    B, C, H, W = x_img.shape
    ff = jnp.fft.rfft2(x_img.astype(jnp.float32), norm="ortho")  # (B,C,H,Wf) cplx
    Wf = ff.shape[-1]
    Sf = H * Wf
    Sf_pad = _round_up(Sf, 128)                                   # lane-dense
    stacked = jnp.stack((jnp.real(ff), jnp.imag(ff)), axis=2).reshape(B, 2 * C, Sf)
    stacked = jnp.pad(stacked, ((0, 0), (0, 0), (0, Sf_pad - Sf)))
    stacked = stacked.astype(jnp.bfloat16)
    scale, shift = _bn_fold(bn_fu)
    y = pw_conv_bn_relu(stacked, w_fu, scale, shift)              # (B,2C,Sf_pad) f32
    y = y[:, :, :Sf].reshape(B, C, 2, H, Wf)
    cplx = jax.lax.complex(y[:, :, 0], y[:, :, 1])
    return jnp.fft.irfft2(cplx, s=(H, W), norm="ortho")           # (B,C,H,W) f32


def ffc_forward(x_l, x_g, p, *, row_tile=None):
    # gated=False => g2l_gate = l2g_gate = 1 ; stride=1 ; enable_lfu=False
    B, in_cl, H, W = x_l.shape
    in_cg = x_g.shape[1]
    out_cl = p["w_l2l"].shape[0]
    out_cg = p["w_l2g"].shape[0]
    half = p["st_conv2_w"].shape[1]
    S = H * W

    # fused 3x3 weights, input-channel order [x_g ; x_l], im2col (Cout, 9*Cin)
    w_to_l = jnp.concatenate([p["w_g2l"], p["w_l2l"]], axis=1)
    w_to_g = jnp.concatenate(
        [jnp.zeros((out_cg, in_cg, 3, 3), jnp.float32), p["w_l2g"]], axis=1)
    w_all = jnp.concatenate([w_to_l, w_to_g], axis=0)             # (Cout3,Cin,3,3)
    w_col = jnp.transpose(w_all, (0, 2, 3, 1)).reshape(
        out_cl + out_cg, 9 * (in_cl + in_cg)).astype(jnp.bfloat16)

    # SpectralTransform.conv1 weight with BN scale folded (fused into kernel 1)
    scale1, shift1 = _bn_fold(p["st_bn1"])
    w1 = (p["st_conv1_w"].reshape(half, in_cg) * scale1[:, None]).astype(jnp.bfloat16)
    sh1 = shift1.reshape(half, 1).astype(jnp.float32)

    x_cat = jnp.concatenate([x_g, x_l], axis=1)                   # [x_g ; x_l]
    oxl_p, l2g_p, x1_p, R = ffc_conv3x3_fused(
        x_cat, w_col, w1, sh1,
        out_cl=out_cl, out_cg=out_cg, half=half, row_tile=row_tile)

    # strip the (R - W) garbage columns of the padded row stride (bf16 where hot)
    out_xl = oxl_p.reshape(B, out_cl, H, R)[..., :W]              # (B,out_cl,H,W) f32
    l2g = l2g_p.reshape(B, out_cg, H, R)[..., :W].reshape(B, out_cg, S)
    x1_img = x1_p.reshape(B, half, H, R)[..., :W]                 # (B,half,H,W) bf16

    fu = fourier_unit(x1_img, p["fu_conv_w"].reshape(2 * half, 2 * half),
                      p["fu_bn"])

    out_xg = pw_conv2_residual(
        x1_img.reshape(B, half, S),
        fu.reshape(B, half, S).astype(jnp.bfloat16),
        l2g,
        p["st_conv2_w"].reshape(out_cg, half),
    ).reshape(B, out_cg, H, W)

    return out_xl, out_xg


# ---------------------------------------------------------------------------
# Pure-JAX f32 reference (for a loose bf16 tolerance check) + init + demo
# ---------------------------------------------------------------------------
def _reference_ffc(x_l, x_g, p):
    hi = jax.lax.Precision.HIGHEST

    def conv3x3_reflect(x, w):
        xp = jnp.pad(x, ((0, 0), (0, 0), (1, 1), (1, 1)), mode="reflect")
        return jax.lax.conv_general_dilated(
            xp, w, window_strides=(1, 1), padding="VALID",
            dimension_numbers=("NCHW", "OIHW", "NCHW"), precision=hi)

    def conv1x1(x, w):
        return jnp.einsum("oc,bchw->bohw", w, x, precision=hi)

    def bn_eval(x, bn):
        g, b, m, v, eps = bn
        inv = g / jnp.sqrt(v + eps)
        return x * inv[None, :, None, None] + (b - m * inv)[None, :, None, None]

    half = p["st_conv2_w"].shape[1]
    out_xl = conv3x3_reflect(x_l, p["w_l2l"]) + conv3x3_reflect(x_g, p["w_g2l"])
    l2g = conv3x3_reflect(x_l, p["w_l2g"])
    x1 = jax.nn.relu(bn_eval(conv1x1(x_g, p["st_conv1_w"].reshape(half, -1)),
                             p["st_bn1"]))
    B, C, H, W = x1.shape
    ff = jnp.fft.rfft2(x1, norm="ortho")
    Wf = ff.shape[-1]
    st = jnp.stack((jnp.real(ff), jnp.imag(ff)), axis=2).reshape(B, 2 * C, H, Wf)
    y = jax.nn.relu(bn_eval(conv1x1(st, p["fu_conv_w"].reshape(2 * half, 2 * half)),
                            p["fu_bn"]))
    y = y.reshape(B, C, 2, H, Wf)
    fu = jnp.fft.irfft2(jax.lax.complex(y[:, :, 0], y[:, :, 1]), s=(H, W),
                        norm="ortho")
    out_xg = l2g + conv1x1(x1 + fu, p["st_conv2_w"].reshape(-1, half))
    return out_xl, out_xg


def init_params(key, in_channels=16, out_channels=16,
                ratio_gin=0.75, ratio_gout=0.75):
    in_cg = int(in_channels * ratio_gin)
    in_cl = in_channels - in_cg
    out_cg = int(out_channels * ratio_gout)
    out_cl = out_channels - out_cg
    half = out_cg // 2
    ks = jax.random.split(key, 8)

    def w(k, shape, s=0.1):
        return jax.random.normal(k, shape, jnp.float32) * s

    def bn(k, c):
        k1, k2, k3, k4 = jax.random.split(k, 4)
        gamma = 1.0 + 0.1 * jax.random.normal(k1, (c,), jnp.float32)
        beta = 0.1 * jax.random.normal(k2, (c,), jnp.float32)
        mean = 0.1 * jax.random.normal(k3, (c,), jnp.float32)
        var = 1.0 + 0.1 * jnp.abs(jax.random.normal(k4, (c,), jnp.float32))
        return (gamma, beta, mean, var, 1e-5)

    p = {
        "w_l2l": w(ks[0], (out_cl, in_cl, 3, 3)),
        "w_l2g": w(ks[1], (out_cg, in_cl, 3, 3)),
        "w_g2l": w(ks[2], (out_cl, in_cg, 3, 3)),
        "st_conv1_w": w(ks[3], (half, in_cg, 1, 1)),
        "st_bn1": bn(ks[4], half),
        "fu_conv_w": w(ks[5], (2 * half, 2 * half, 1, 1)),
        "fu_bn": bn(ks[6], 2 * half),
        "st_conv2_w": w(ks[7], (out_cg, half, 1, 1)),
    }
    return p, (in_cl, in_cg, out_cl, out_cg)


if __name__ == "__main__":
    key = jax.random.PRNGKey(0)
    kp, kl, kg = jax.random.split(key, 3)
    params, (in_cl, in_cg, out_cl, out_cg) = init_params(kp, 16, 16)

    B, H, W = 2, 16, 16
    x_l = jax.random.normal(kl, (B, in_cl, H, W), jnp.float32)   # local branch
    x_g = jax.random.normal(kg, (B, in_cg, H, W), jnp.float32)   # global branch

    # row_tile=8 exercises the halo'd row-tiling path (grid=(B, 2)).
    fwd = jax.jit(functools.partial(ffc_forward, row_tile=8))
    out_xl, out_xg = fwd(x_l, x_g, params)
    jax.block_until_ready((out_xl, out_xg))

    assert out_xl.shape == (B, out_cl, H, W) and out_xl.dtype == jnp.float32
    assert out_xg.shape == (B, out_cg, H, W) and out_xg.dtype == jnp.float32
    assert bool(jnp.all(jnp.isfinite(out_xl)))
    assert bool(jnp.all(jnp.isfinite(out_xg)))

    # loose tolerance check vs. a pure-JAX f32 reference (bf16 matmul path)
    ref_xl, ref_xg = _reference_ffc(x_l, x_g, params)
    err_l = float(jnp.max(jnp.abs(out_xl - ref_xl)))
    err_g = float(jnp.max(jnp.abs(out_xg - ref_xg)))
    assert err_l < 0.25 and err_g < 0.25, (err_l, err_g)

    print("KERNEL_OK")
</pallas_src>

<mosaic_0001>
module attributes {stable_mosaic.version = 11 : i64} {
  func.func @_ffc_conv3x3_kernel(%arg0: i32, %arg1: i32, %arg2: memref<1x16x1408xbf16, #tpu.memory_space<vmem>>, %arg3: memref<16x144xbf16, #tpu.memory_space<vmem>>, %arg4: memref<6x12xbf16, #tpu.memory_space<vmem>>, %arg5: memref<6x1xf32, #tpu.memory_space<vmem>>, %arg6: memref<1x4x1024xf32, #tpu.memory_space<vmem>>, %arg7: memref<1x12x1024xbf16, #tpu.memory_space<vmem>>, %arg8: memref<1x6x1024xbf16, #tpu.memory_space<vmem>>, %arg9: memref<144x1024xbf16, #tpu.memory_space<vmem>>) attributes {dimension_semantics = [#tpu.dimension_semantics<parallel>, #tpu.dimension_semantics<parallel>], iteration_bounds = array<i64: 2, 2>, scalar_prefetch = 0 : i64, scratch_operands = 1 : i64, tpu.core_type = #tpu.core_type<tc>, window_params = [{transform_indices = @transform_0, window_bounds = array<i64: 1, 16, 1408>}, {pipeline_mode = #tpu.pipeline_mode<synchronous>, transform_indices = @transform_1, window_bounds = array<i64: 16, 144>}, {pipeline_mode = #tpu.pipeline_mode<synchronous>, transform_indices = @transform_2, window_bounds = array<i64: 6, 12>}, {pipeline_mode = #tpu.pipeline_mode<synchronous>, transform_indices = @transform_3, window_bounds = array<i64: 6, 1>}, {transform_indices = @transform_4, window_bounds = array<i64: 1, 4, 1024>}, {transform_indices = @transform_5, window_bounds = array<i64: 1, 12, 1024>}, {transform_indices = @transform_6, window_bounds = array<i64: 1, 6, 1024>}]} {
    %c0 = arith.constant 0 : index
    %c0_0 = arith.constant 0 : index
    %c1 = arith.constant 1 : index
    %0 = vector.load %arg2[%c0, %c0_0, %c1] : memref<1x16x1408xbf16, #tpu.memory_space<vmem>>, vector<1x16x1280xbf16>
    %1 = vector.shape_cast %0 : vector<1x16x1280xbf16> to vector<16x1280xbf16>
    %c0_1 = arith.constant 0 : index
    %c0_2 = arith.constant 0 : index
    %c2 = arith.constant 2 : index
    %2 = vector.load %arg2[%c0_1, %c0_2, %c2] : memref<1x16x1408xbf16, #tpu.memory_space<vmem>>, vector<1x16x1280xbf16>
    %3 = vector.shape_cast %2 : vector<1x16x1280xbf16> to vector<16x1280xbf16>
    %c0_3 = arith.constant 0 : index
    %c0_4 = arith.constant 0 : index
    %c0_5 = arith.constant 0 : index
    %4 = vector.load %arg2[%c0_3, %c0_4, %c0_5] : memref<1x16x1408xbf16, #tpu.memory_space<vmem>>, vector<1x16x1024xbf16>
    %5 = vector.shape_cast %4 : vector<1x16x1024xbf16> to vector<16x1024xbf16>
    %c0_6 = arith.constant 0 : index
    %c0_7 = arith.constant 0 : index
    %6 = vector.load %arg9[%c0_6, %c0_7] : memref<144x1024xbf16, #tpu.memory_space<vmem>>, vector<16x1024xbf16>
    tpu.vector_store %arg9[%c0_6, %c0_7], %5 {strides = array<i32>} : memref<144x1024xbf16, #tpu.memory_space<vmem>>, vector<16x1024xbf16>,
    %7 = vector.extract_strided_slice %1 {offsets = [0, 0], sizes = [16, 1024], strides = [1, 1]} : vector<16x1280xbf16> to vector<16x1024xbf16>
    %c16 = arith.constant 16 : index
    %c0_8 = arith.constant 0 : index
    %8 = vector.load %arg9[%c16, %c0_8] : memref<144x1024xbf16, #tpu.memory_space<vmem>>, vector<16x1024xbf16>
    tpu.vector_store %arg9[%c16, %c0_8], %7 {strides = array<i32>} : memref<144x1024xbf16, #tpu.memory_space<vmem>>, vector<16x1024xbf16>,
    %9 = vector.extract_strided_slice %3 {offsets = [0, 0], sizes = [16, 1024], strides = [1, 1]} : vector<16x1280xbf16> to vector<16x1024xbf16>
    %c32 = arith.constant 32 : index
    %c0_9 = arith.constant 0 : index
    %10 = vector.load %arg9[%c32, %c0_9] : memref<144x1024xbf16, #tpu.memory_space<vmem>>, vector<16x1024xbf16>
    tpu.vector_store %arg9[%c32, %c0_9], %9 {strides = array<i32>} : memref<144x1024xbf16, #tpu.memory_space<vmem>>, vector<16x1024xbf16>,
    %c0_10 = arith.constant 0 : index
    %c0_11 = arith.constant 0 : index
    %c128 = arith.constant 128 : index
    %11 = vector.load %arg2[%c0_10, %c0_11, %c128] : memref<1x16x1408xbf16, #tpu.memory_space<vmem>>, vector<1x16x1024xbf16>
    %12 = vector.shape_cast %11 : vector<1x16x1024xbf16> to vector<16x1024xbf16>
    %c48 = arith.constant 48 : index
    %c0_12 = arith.constant 0 : index
    %13 = vector.load %arg9[%c48, %c0_12] : memref<144x1024xbf16, #tpu.memory_space<vmem>>, vector<16x1024xbf16>
    tpu.vector_store %arg9[%c48, %c0_12], %12 {strides = array<i32>} : memref<144x1024xbf16, #tpu.memory_space<vmem>>, vector<16x1024xbf16>,
    %14 = vector.extract_strided_slice %1 {offsets = [0, 128], sizes = [16, 1024], strides = [1, 1]} : vector<16x1280xbf16> to vector<16x1024xbf16>
    %c64 = arith.constant 64 : index
    %c0_13 = arith.constant 0 : index
    %15 = vector.load %arg9[%c64, %c0_13] : memref<144x1024xbf16, #tpu.memory_space<vmem>>, vector<16x1024xbf16>
    tpu.vector_store %arg9[%c64, %c0_13], %14 {strides = array<i32>} : memref<144x1024xbf16, #tpu.memory_space<vmem>>, vector<16x1024xbf16>,
    %16 = vector.extract_strided_slice %3 {offsets = [0, 128], sizes = [16, 1024], strides = [1, 1]} : vector<16x1280xbf16> to vector<16x1024xbf16>
    %c80 = arith.constant 80 : index
    %c0_14 = arith.constant 0 : index
    %17 = vector.load %arg9[%c80, %c0_14] : memref<144x1024xbf16, #tpu.memory_space<vmem>>, vector<16x1024xbf16>
    tpu.vector_store %arg9[%c80, %c0_14], %16 {strides = array<i32>} : memref<144x1024xbf16, #tpu.memory_space<vmem>>, vector<16x1024xbf16>,
    %c0_15 = arith.constant 0 : index
    %c0_16 = arith.constant 0 : index
    %c256 = arith.constant 256 : index
    %18 = vector.load %arg2[%c0_15, %c0_16, %c256] : memref<1x16x1408xbf16, #tpu.memory_space<vmem>>, vector<1x16x1024xbf16>
    %19 = vector.shape_cast %18 : vector<1x16x1024xbf16> to vector<16x1024xbf16>
    %c96 = arith.constant 96 : index
    %c0_17 = arith.constant 0 : index
    %20 = vector.load %arg9[%c96, %c0_17] : memref<144x1024xbf16, #tpu.memory_space<vmem>>, vector<16x1024xbf16>
    tpu.vector_store %arg9[%c96, %c0_17], %19 {strides = array<i32>} : memref<144x1024xbf16, #tpu.memory_space<vmem>>, vector<16x1024xbf16>,
    %21 = vector.extract_strided_slice %1 {offsets = [0, 256], sizes = [16, 1024], strides = [1, 1]} : vector<16x1280xbf16> to vector<16x1024xbf16>
    %c112 = arith.constant 112 : index
    %c0_18 = arith.constant 0 : index
    %22 = vector.load %arg9[%c112, %c0_18] : memref<144x1024xbf16, #tpu.memory_space<vmem>>, vector<16x1024xbf16>
    tpu.vector_store %arg9[%c112, %c0_18], %21 {strides = array<i32>} : memref<144x1024xbf16, #tpu.memory_space<vmem>>, vector<16x1024xbf16>,
    %23 = vector.extract_strided_slice %3 {offsets = [0, 256], sizes = [16, 1024], strides = [1, 1]} : vector<16x1280xbf16> to vector<16x1024xbf16>
    %c128_19 = arith.constant 128 : index
    %c0_20 = arith.constant 0 : index
    %24 = vector.load %arg9[%c128_19, %c0_20] : memref<144x1024xbf16, #tpu.memory_space<vmem>>, vector<16x1024xbf16>
    tpu.vector_store %arg9[%c128_19, %c0_20], %23 {strides = array<i32>} : memref<144x1024xbf16, #tpu.memory_space<vmem>>, vector<16x1024xbf16>,
    %c0_21 = arith.constant 0 : index
    %c0_22 = arith.constant 0 : index
    %25 = vector.load %arg3[%c0_21, %c0_22] : memref<16x144xbf16, #tpu.memory_space<vmem>>, vector<16x144xbf16>
    %c0_23 = arith.constant 0 : index
    %c0_24 = arith.constant 0 : index
    %26 = vector.load %arg9[%c0_23, %c0_24] : memref<144x1024xbf16, #tpu.memory_space<vmem>>, vector<144x1024xbf16>
    %cst = arith.constant dense<0.000000e+00> : vector<16x1024xf32>
    %27 = tpu.matmul %25, %26, %cst {dimension_numbers = #tpu.dot_dimension_numbers<[1], [0], [0], [1], [0, 0, 1, 1], [], []>} : vector<16x144xbf16>, vector<144x1024xbf16>, vector<16x1024xf32> -> vector<16x1024xf32>
    %28 = vector.extract_strided_slice %27 {offsets = [0, 0], sizes = [4, 1024], strides = [1, 1]} : vector<16x1024xf32> to vector<4x1024xf32>
    %c0_25 = arith.constant 0 : index
    %c0_26 = arith.constant 0 : index
    %c0_27 = arith.constant 0 : index
    %29 = vector.load %arg6[%c0_25, %c0_26, %c0_27] : memref<1x4x1024xf32, #tpu.memory_space<vmem>>, vector<1x4x1024xf32>
    %30 = vector.shape_cast %29 : vector<1x4x1024xf32> to vector<4x1024xf32>
    %31 = vector.shape_cast %28 : vector<4x1024xf32> to vector<1x4x1024xf32>
    tpu.vector_store %arg6[%c0_25, %c0_26, %c0_27], %31 {strides = array<i32>} : memref<1x4x1024xf32, #tpu.memory_space<vmem>>, vector<1x4x1024xf32>,
    %32 = vector.extract_strided_slice %27 {offsets = [4, 0], sizes = [12, 1024], strides = [1, 1]} : vector<16x1024xf32> to vector<12x1024xf32>
    %33 = arith.truncf %32 : vector<12x1024xf32> to vector<12x1024xbf16>
    %c0_28 = arith.constant 0 : index
    %c0_29 = arith.constant 0 : index
    %c0_30 = arith.constant 0 : index
    %34 = vector.load %arg7[%c0_28, %c0_29, %c0_30] : memref<1x12x1024xbf16, #tpu.memory_space<vmem>>, vector<1x12x1024xbf16>
    %35 = vector.shape_cast %34 : vector<1x12x1024xbf16> to vector<12x1024xbf16>
    %36 = vector.shape_cast %33 : vector<12x1024xbf16> to vector<1x12x1024xbf16>
    tpu.vector_store %arg7[%c0_28, %c0_29, %c0_30], %36 {strides = array<i32>} : memref<1x12x1024xbf16, #tpu.memory_space<vmem>>, vector<1x12x1024xbf16>,
    %37 = vector.extract_strided_slice %1 {offsets = [0, 128], sizes = [12, 1024], strides = [1, 1]} : vector<16x1280xbf16> to vector<12x1024xbf16>
    %c0_31 = arith.constant 0 : index
    %c0_32 = arith.constant 0 : index
    %38 = vector.load %arg4[%c0_31, %c0_32] : memref<6x12xbf16, #tpu.memory_space<vmem>>, vector<6x12xbf16>
    %cst_33 = arith.constant dense<0.000000e+00> : vector<6x1024xf32>
    %39 = tpu.matmul %38, %37, %cst_33 {dimension_numbers = #tpu.dot_dimension_numbers<[1], [0], [0], [1], [0, 0, 1, 1], [], []>} : vector<6x12xbf16>, vector<12x1024xbf16>, vector<6x1024xf32> -> vector<6x1024xf32>
    %c0_34 = arith.constant 0 : index
    %c0_35 = arith.constant 0 : index
    %40 = vector.load %arg5[%c0_34, %c0_35] : memref<6x1xf32, #tpu.memory_space<vmem>>, vector<6x1xf32>
    %41 = vector.broadcast %40 : vector<6x1xf32> to vector<6x1024xf32>
    %42 = arith.addf %39, %41 : vector<6x1024xf32>
    %cst_36 = arith.constant 0.000000e+00 : f32
    %43 = vector.broadcast %cst_36 : f32 to vector<6x1024xf32>
    %44 = arith.maximumf %42, %43 : vector<6x1024xf32>
    %45 = arith.truncf %44 : vector<6x1024xf32> to vector<6x1024xbf16>
    %c0_37 = arith.constant 0 : index
    %c0_38 = arith.constant 0 : index
    %c0_39 = arith.constant 0 : index
    %46 = vector.load %arg8[%c0_37, %c0_38, %c0_39] : memref<1x6x1024xbf16, #tpu.memory_space<vmem>>, vector<1x6x1024xbf16>
    %47 = vector.shape_cast %46 : vector<1x6x1024xbf16> to vector<6x1024xbf16>
    %48 = vector.shape_cast %45 : vector<6x1024xbf16> to vector<1x6x1024xbf16>
    tpu.vector_store %arg8[%c0_37, %c0_38, %c0_39], %48 {strides = array<i32>} : memref<1x6x1024xbf16, #tpu.memory_space<vmem>>, vector<1x6x1024xbf16>,
    return
  }
  func.func @transform_0(%arg0: i32, %arg1: i32) -> (i32, i32, i32) {
    %c0_i32 = arith.constant 0 : i32
    %c0_i32_0 = arith.constant 0 : i32
    return %arg0, %c0_i32, %arg1 : i32, i32, i32
  }
  func.func @transform_1(%arg0: i32, %arg1: i32) -> (i32, i32) {
    %c0_i32 = arith.constant 0 : i32
    %c0_i32_0 = arith.constant 0 : i32
    %c0_i32_1 = arith.constant 0 : i32
    return %c0_i32, %c0_i32_0 : i32, i32
  }
  func.func @transform_2(%arg0: i32, %arg1: i32) -> (i32, i32) {
    %c0_i32 = arith.constant 0 : i32
    %c0_i32_0 = arith.constant 0 : i32
    %c0_i32_1 = arith.constant 0 : i32
    return %c0_i32, %c0_i32_0 : i32, i32
  }
  func.func @transform_3(%arg0: i32, %arg1: i32) -> (i32, i32) {
    %c0_i32 = arith.constant 0 : i32
    %c0_i32_0 = arith.constant 0 : i32
    %c0_i32_1 = arith.constant 0 : i32
    return %c0_i32, %c0_i32_0 : i32, i32
  }
  func.func @transform_4(%arg0: i32, %arg1: i32) -> (i32, i32, i32) {
    %c0_i32 = arith.constant 0 : i32
    %c0_i32_0 = arith.constant 0 : i32
    return %arg0, %c0_i32, %arg1 : i32, i32, i32
  }
  func.func @transform_5(%arg0: i32, %arg1: i32) -> (i32, i32, i32) {
    %c0_i32 = arith.constant 0 : i32
    %c0_i32_0 = arith.constant 0 : i32
    return %arg0, %c0_i32, %arg1 : i32, i32, i32
  }
  func.func @transform_6(%arg0: i32, %arg1: i32) -> (i32, i32, i32) {
    %c0_i32 = arith.constant 0 : i32
    %c0_i32_0 = arith.constant 0 : i32
    return %arg0, %c0_i32, %arg1 : i32, i32, i32
  }
}

module attributes {stable_mosaic.version = 11 : i64} {
  func.func @_pw_bn_relu_kernel(%arg0: i32, %arg1: memref<1x12x256xbf16, #tpu.memory_space<vmem>>, %arg2: memref<12x12xbf16, #tpu.memory_space<vmem>>, %arg3: memref<12x1xf32, #tpu.memory_space<vmem>>, %arg4: memref<1x12x256xf32, #tpu.memory_space<vmem>>) attributes {dimension_semantics = [#tpu.dimension_semantics<parallel>], iteration_bounds = array<i64: 2>, scalar_prefetch = 0 : i64, scratch_operands = 0 : i64, tpu.core_type = #tpu.core_type<tc>, window_params = [{transform_indices = @transform_0, window_bounds = array<i64: 1, 12, 256>}, {pipeline_mode = #tpu.pipeline_mode<synchronous>, transform_indices = @transform_1, window_bounds = array<i64: 12, 12>}, {pipeline_mode = #tpu.pipeline_mode<synchronous>, transform_indices = @transform_2, window_bounds = array<i64: 12, 1>}, {transform_indices = @transform_3, window_bounds = array<i64: 1, 12, 256>}]} {
    %c0 = arith.constant 0 : index
    %c0_0 = arith.constant 0 : index
    %0 = vector.load %arg2[%c0, %c0_0] : memref<12x12xbf16, #tpu.memory_space<vmem>>, vector<12x12xbf16>
    %c0_1 = arith.constant 0 : index
    %c0_2 = arith.constant 0 : index
    %c0_3 = arith.constant 0 : index
    %1 = vector.load %arg1[%c0_1, %c0_2, %c0_3] : memref<1x12x256xbf16, #tpu.memory_space<vmem>>, vector<1x12x256xbf16>
    %2 = vector.shape_cast %1 : vector<1x12x256xbf16> to vector<12x256xbf16>
    %cst = arith.constant dense<0.000000e+00> : vector<12x256xf32>
    %3 = tpu.matmul %0, %2, %cst {dimension_numbers = #tpu.dot_dimension_numbers<[1], [0], [0], [1], [0, 0, 1, 1], [], []>} : vector<12x12xbf16>, vector<12x256xbf16>, vector<12x256xf32> -> vector<12x256xf32>
    %c0_4 = arith.constant 0 : index
    %c0_5 = arith.constant 0 : index
    %4 = vector.load %arg3[%c0_4, %c0_5] : memref<12x1xf32, #tpu.memory_space<vmem>>, vector<12x1xf32>
    %5 = vector.broadcast %4 : vector<12x1xf32> to vector<12x256xf32>
    %6 = arith.addf %3, %5 : vector<12x256xf32>
    %cst_6 = arith.constant 0.000000e+00 : f32
    %7 = vector.broadcast %cst_6 : f32 to vector<12x256xf32>
    %8 = arith.maximumf %6, %7 : vector<12x256xf32>
    %c0_7 = arith.constant 0 : index
    %c0_8 = arith.constant 0 : index
    %c0_9 = arith.constant 0 : index
    %9 = vector.load %arg4[%c0_7, %c0_8, %c0_9] : memref<1x12x256xf32, #tpu.memory_space<vmem>>, vector<1x12x256xf32>
    %10 = vector.shape_cast %9 : vector<1x12x256xf32> to vector<12x256xf32>
    %11 = vector.shape_cast %8 : vector<12x256xf32> to vector<1x12x256xf32>
    tpu.vector_store %arg4[%c0_7, %c0_8, %c0_9], %11 {strides = array<i32>} : memref<1x12x256xf32, #tpu.memory_space<vmem>>, vector<1x12x256xf32>,
    return
  }
  func.func @transform_0(%arg0: i32) -> (i32, i32, i32) {
    %c0_i32 = arith.constant 0 : i32
    %c0_i32_0 = arith.constant 0 : i32
    %c0_i32_1 = arith.constant 0 : i32
    return %arg0, %c0_i32, %c0_i32_0 : i32, i32, i32
  }
  func.func @transform_1(%arg0: i32) -> (i32, i32) {
    %c0_i32 = arith.constant 0 : i32
    %c0_i32_0 = arith.constant 0 : i32
    %c0_i32_1 = arith.constant 0 : i32
    return %c0_i32, %c0_i32_0 : i32, i32
  }
  func.func @transform_2(%arg0: i32) -> (i32, i32) {
    %c0_i32 = arith.constant 0 : i32
    %c0_i32_0 = arith.constant 0 : i32
    %c0_i32_1 = arith.constant 0 : i32
    return %c0_i32, %c0_i32_0 : i32, i32
  }
  func.func @transform_3(%arg0: i32) -> (i32, i32, i32) {
    %c0_i32 = arith.constant 0 : i32
    %c0_i32_0 = arith.constant 0 : i32
    %c0_i32_1 = arith.constant 0 : i32
    return %arg0, %c0_i32, %c0_i32_0 : i32, i32, i32
  }
}

module attributes {stable_mosaic.version = 11 : i64} {
  func.func @_pw_conv2_kernel(%arg0: i32, %arg1: memref<1x6x256xbf16, #tpu.memory_space<vmem>>, %arg2: memref<1x6x256xbf16, #tpu.memory_space<vmem>>, %arg3: memref<1x12x256xbf16, #tpu.memory_space<vmem>>, %arg4: memref<12x6xbf16, #tpu.memory_space<vmem>>, %arg5: memref<1x12x256xf32, #tpu.memory_space<vmem>>) attributes {dimension_semantics = [#tpu.dimension_semantics<parallel>], iteration_bounds = array<i64: 2>, scalar_prefetch = 0 : i64, scratch_operands = 0 : i64, tpu.core_type = #tpu.core_type<tc>, window_params = [{transform_indices = @transform_0, window_bounds = array<i64: 1, 6, 256>}, {transform_indices = @transform_1, window_bounds = array<i64: 1, 6, 256>}, {transform_indices = @transform_2, window_bounds = array<i64: 1, 12, 256>}, {pipeline_mode = #tpu.pipeline_mode<synchronous>, transform_indices = @transform_3, window_bounds = array<i64: 12, 6>}, {transform_indices = @transform_4, window_bounds = array<i64: 1, 12, 256>}]} {
    %c0 = arith.constant 0 : index
    %c0_0 = arith.constant 0 : index
    %c0_1 = arith.constant 0 : index
    %0 = vector.load %arg1[%c0, %c0_0, %c0_1] : memref<1x6x256xbf16, #tpu.memory_space<vmem>>, vector<1x6x256xbf16>
    %1 = vector.shape_cast %0 : vector<1x6x256xbf16> to vector<6x256xbf16>
    %2 = arith.extf %1 : vector<6x256xbf16> to vector<6x256xf32>
    %c0_2 = arith.constant 0 : index
    %c0_3 = arith.constant 0 : index
    %c0_4 = arith.constant 0 : index
    %3 = vector.load %arg2[%c0_2, %c0_3, %c0_4] : memref<1x6x256xbf16, #tpu.memory_space<vmem>>, vector<1x6x256xbf16>
    %4 = vector.shape_cast %3 : vector<1x6x256xbf16> to vector<6x256xbf16>
    %5 = arith.extf %4 : vector<6x256xbf16> to vector<6x256xf32>
    %6 = arith.addf %2, %5 : vector<6x256xf32>
    %c0_5 = arith.constant 0 : index
    %c0_6 = arith.constant 0 : index
    %7 = vector.load %arg4[%c0_5, %c0_6] : memref<12x6xbf16, #tpu.memory_space<vmem>>, vector<12x6xbf16>
    %8 = arith.truncf %6 : vector<6x256xf32> to vector<6x256xbf16>
    %cst = arith.constant dense<0.000000e+00> : vector<12x256xf32>
    %9 = tpu.matmul %7, %8, %cst {dimension_numbers = #tpu.dot_dimension_numbers<[1], [0], [0], [1], [0, 0, 1, 1], [], []>} : vector<12x6xbf16>, vector<6x256xbf16>, vector<12x256xf32> -> vector<12x256xf32>
    %c0_7 = arith.constant 0 : index
    %c0_8 = arith.constant 0 : index
    %c0_9 = arith.constant 0 : index
    %10 = vector.load %arg3[%c0_7, %c0_8, %c0_9] : memref<1x12x256xbf16, #tpu.memory_space<vmem>>, vector<1x12x256xbf16>
    %11 = vector.shape_cast %10 : vector<1x12x256xbf16> to vector<12x256xbf16>
    %12 = arith.extf %11 : vector<12x256xbf16> to vector<12x256xf32>
    %13 = arith.addf %9, %12 : vector<12x256xf32>
    %c0_10 = arith.constant 0 : index
    %c0_11 = arith.constant 0 : index
    %c0_12 = arith.constant 0 : index
    %14 = vector.load %arg5[%c0_10, %c0_11, %c0_12] : memref<1x12x256xf32, #tpu.memory_space<vmem>>, vector<1x12x256xf32>
    %15 = vector.shape_cast %14 : vector<1x12x256xf32> to vector<12x256xf32>
    %16 = vector.shape_cast %13 : vector<12x256xf32> to vector<1x12x256xf32>
    tpu.vector_store %arg5[%c0_10, %c0_11, %c0_12], %16 {strides = array<i32>} : memref<1x12x256xf32, #tpu.memory_space<vmem>>, vector<1x12x256xf32>,
    return
  }
  func.func @transform_0(%arg0: i32) -> (i32, i32, i32) {
    %c0_i32 = arith.constant 0 : i32
    %c0_i32_0 = arith.constant 0 : i32
    %c0_i32_1 = arith.constant 0 : i32
    return %arg0, %c0_i32, %c0_i32_0 : i32, i32, i32
  }
  func.func @transform_1(%arg0: i32) -> (i32, i32, i32) {
    %c0_i32 = arith.constant 0 : i32
    %c0_i32_0 = arith.constant 0 : i32
    %c0_i32_1 = arith.constant 0 : i32
    return %arg0, %c0_i32, %c0_i32_0 : i32, i32, i32
  }
  func.func @transform_2(%arg0: i32) -> (i32, i32, i32) {
    %c0_i32 = arith.constant 0 : i32
    %c0_i32_0 = arith.constant 0 : i32
    %c0_i32_1 = arith.constant 0 : i32
    return %arg0, %c0_i32, %c0_i32_0 : i32, i32, i32
  }
  func.func @transform_3(%arg0: i32) -> (i32, i32) {
    %c0_i32 = arith.constant 0 : i32
    %c0_i32_0 = arith.constant 0 : i32
    %c0_i32_1 = arith.constant 0 : i32
    return %c0_i32, %c0_i32_0 : i32, i32
  }
  func.func @transform_4(%arg0: i32) -> (i32, i32, i32) {
    %c0_i32 = arith.constant 0 : i32
    %c0_i32_0 = arith.constant 0 : i32
    %c0_i32_1 = arith.constant 0 : i32
    return %arg0, %c0_i32, %c0_i32_0 : i32, i32, i32
  }
}

</mosaic_0001>

<llo_original>
// kernel: ffc_forward.3
$region0: #{ffc_forward.3}
  #allocation0 [shape = 'u32[]', space=smem, size = 0x4, offset = 0x4, fixed_abs, tag = 'smem constant byte address 0x4 - core index']
  #allocation1 [shape = 'u32[72,128]{1,0:T(1,128)}', space=vmem, size = 0x9000, scoped, tag = 'internal scratch']
  #allocation2 [shape = 'bf16[144,1024]{1,0:T(8,128)(2,1)}', space=vmem, size = 0x48000, scoped, tag = 'scratch operand']
  %s0 = inlined_call_operand.vmem [shape: bf16[2,16,2816], index: 0, kind: input, shape index: {}]
  %s1 = inlined_call_operand.vmem [shape: bf16[16,144], index: 1, kind: input, shape index: {}]
  %s2 = inlined_call_operand.vmem [shape: bf16[6,12], index: 2, kind: input, shape index: {}]
  %s3 = inlined_call_operand.vmem [shape: f32[6,1], index: 3, kind: input, shape index: {}]
  %s4 = inlined_call_operand.vmem [shape: f32[2,4,2048], index: 4, kind: output, shape index: {0}]
  %s5 = inlined_call_operand.vmem [shape: bf16[2,12,2048], index: 5, kind: output, shape index: {1}]
  %s6 = inlined_call_operand.vmem [shape: bf16[2,6,2048], index: 6, kind: output, shape index: {2}]
  %7 = xla_tuple %s4, %s5, %s6
  %s8 = sld [smem:[#allocation0]]
  $region110: #{ffc_forward.3} parent=0
    _
  %s10 = ssub.s32 1, %s8
  %s11 = scalar_select 0, %s10, %s8
  $region1: #{ffc_forward.3} parent=0
    #allocation3 [shape = 'u8[90112]{0}', space=vmem, size = 0x16000, scoped, tag = 'input window, operand 0']
    #allocation4 [shape = 'u8[65536]{0}', space=vmem, size = 0x10000, scoped, tag = 'output window, operand 1']
    loop: start=0, step=1, limit=6
    $region2: #{ffc_forward.3} parent=1 // loop_pre_header
      _
    $region3: #{ffc_forward.3} parent=1 // loop_header
      %s13 = sphi 0, %s17
      %p14 = scmp.ge.s32.totalorder %s13, 6
      %s20 = sphi 0, %s32
      %s21 = sphi 0, %s28
      %s22 = sphi 0, %s20
      %s23 = sphi 0, %s21
      %s24 = sphi 0, %s22
      %s25 = sphi 0, %s23
      %s37 = sphi 0, %s39
      %s40 = sphi 0, %s37
      %s41 = sphi 0, %s40
      %s57 = sphi 0, %s41
      %s61 = sphi 0, %s61
      %s63 = sphi 0, %s61
      %s64 = sphi 0, %s63
      %s78 = sphi 0, %s64
      %s82 = sphi 0, %s82
      %s84 = sphi 0, %s82
      %s85 = sphi 0, %s84
      %s99 = sphi 0, %s85
      %s103 = sphi 0, %s103
      %s105 = sphi 0, %s103
      %s106 = sphi 0, %s105
      %s120 = sphi 0, %s106
      %s128 = sphi 0, %s130
      %s131 = sphi 0, %s128
      %s132 = sphi 0, %s131
      %s148 = sphi 0, %s132
      %s156 = sphi 0, %s158
      %s159 = sphi 0, %s156
      %s160 = sphi 0, %s159
      %s176 = sphi 0, %s160
      %s184 = sphi 0, %s186
      %s187 = sphi 0, %s184
      %s188 = sphi 0, %s187
      %s204 = sphi 0, %s188
    $region4: #{ffc_forward.3} parent=1 // loop_header_branch
      %16 = sbr.rel (%p14) target = $region8
    $region5: #{ffc_forward.3} parent=1 // loop_body
      %s18 = ssub.s32 %s13, 1
      %s19 = ssub.s32 %s13, 2
      %s26 = sadd.s32 1, %s21
      %p27 = scmp.ge.s32.totalorder %s26, 2
      %s28 = scalar_select %p27, 0, %s26
      %s29 = sadd.s32 1, %s20
      %s30 = scalar_select %p27, %s29, %s20
      %p31 = scmp.ge.s32.totalorder %s30, 2
      %s32 = scalar_select %p31, 0, %s30
      %s33 = ssub.s32 %s20, %s32
      %s34 = ssub.s32 %s21, %s28
      %s35 = sor.u32 %s33, %s34
      %p36 = scmp.eq.s32.totalorder %s35, 0
      %s38 = sadd.s32 %s37, 1
      %s39 = scalar_select %p36, %s37, %s38
      %p42 = pneg %p36
      %p43 = scmp.eq.s32.totalorder %s13, 3
      %p44 = por %p42, %p43
      %p45 = scmp.ne.s32.totalorder %s37, %s40
      %p46 = scmp.eq.s32.totalorder %s13, 0
      %p47 = por %p45, %p46
      %p48 = scmp.ne.s32.totalorder %s37, %s40
      %p49 = scmp.eq.s32.totalorder %s18, 3
      %p50 = por %p48, %p49
      %p51 = scmp.ne.s32.totalorder %s40, %s41
      %p52 = scmp.eq.s32.totalorder %s18, 0
      %p53 = por %p51, %p52
      %p54 = scmp.ne.s32.totalorder %s40, %s41
      %p55 = scmp.eq.s32.totalorder %s19, 3
      %p56 = por %p54, %p55
      %p58 = scmp.ne.s32.totalorder %s41, %s57
      %p59 = scmp.eq.s32.totalorder %s19, 0
      %p60 = por %p58, %p59
      %s62 = sadd.s32 %s61, 1
      %p65 = scmp.eq.s32.totalorder %s13, 3
      %p66 = scmp.ne.s32.totalorder %s61, %s63
      %p67 = scmp.eq.s32.totalorder %s13, 0
      %p68 = por %p66, %p67
      %p69 = scmp.ne.s32.totalorder %s61, %s63
      %p70 = scmp.eq.s32.totalorder %s18, 3
      %p71 = por %p69, %p70
      %p72 = scmp.ne.s32.totalorder %s63, %s64
      %p73 = scmp.eq.s32.totalorder %s18, 0
      %p74 = por %p72, %p73
      %p75 = scmp.ne.s32.totalorder %s63, %s64
      %p76 = scmp.eq.s32.totalorder %s19, 3
      %p77 = por %p75, %p76
      %p79 = scmp.ne.s32.totalorder %s64, %s78
      %p80 = scmp.eq.s32.totalorder %s19, 0
      %p81 = por %p79, %p80
      %s83 = sadd.s32 %s82, 1
      %p86 = scmp.eq.s32.totalorder %s13, 3
      %p87 = scmp.ne.s32.totalorder %s82, %s84
      %p88 = scmp.eq.s32.totalorder %s13, 0
      %p89 = por %p87, %p88
      %p90 = scmp.ne.s32.totalorder %s82, %s84
      %p91 = scmp.eq.s32.totalorder %s18, 3
      %p92 = por %p90, %p91
      %p93 = scmp.ne.s32.totalorder %s84, %s85
      %p94 = scmp.eq.s32.totalorder %s18, 0
      %p95 = por %p93, %p94
      %p96 = scmp.ne.s32.totalorder %s84, %s85
      %p97 = scmp.eq.s32.totalorder %s19, 3
      %p98 = por %p96, %p97
      %p100 = scmp.ne.s32.totalorder %s85, %s99
      %p101 = scmp.eq.s32.totalorder %s19, 0
      %p102 = por %p100, %p101
      %s104 = sadd.s32 %s103, 1
      %p107 = scmp.eq.s32.totalorder %s13, 3
      %p108 = scmp.ne.s32.totalorder %s103, %s105
      %p109 = scmp.eq.s32.totalorder %s13, 0
      %p110 = por %p108, %p109
      %p111 = scmp.ne.s32.totalorder %s103, %s105
      %p112 = scmp.eq.s32.totalorder %s18, 3
      %p113 = por %p111, %p112
      %p114 = scmp.ne.s32.totalorder %s105, %s106
      %p115 = scmp.eq.s32.totalorder %s18, 0
      %p116 = por %p114, %p115
      %p117 = scmp.ne.s32.totalorder %s105, %s106
      %p118 = scmp.eq.s32.totalorder %s19, 3
      %p119 = por %p117, %p118
      %p121 = scmp.ne.s32.totalorder %s106, %s120
      %p122 = scmp.eq.s32.totalorder %s19, 0
      %p123 = por %p121, %p122
      %s124 = ssub.s32 %s20, %s32
      %s125 = ssub.s32 %s21, %s28
      %s126 = sor.u32 %s124, %s125
      %p127 = scmp.eq.s32.totalorder %s126, 0
      %s129 = sadd.s32 %s128, 1
      %s130 = scalar_select %p127, %s128, %s129
      %p133 = pneg %p127
      %p134 = scmp.eq.s32.totalorder %s13, 3
      %p135 = por %p133, %p134
      %p136 = scmp.ne.s32.totalorder %s128, %s131
      %p137 = scmp.eq.s32.totalorder %s13, 0
      %p138 = por %p136, %p137
      %p139 = scmp.ne.s32.totalorder %s128, %s131
      %p140 = scmp.eq.s32.totalorder %s18, 3
      %p141 = por %p139, %p140
      %p142 = scmp.ne.s32.totalorder %s131, %s132
      %p143 = scmp.eq.s32.totalorder %s18, 0
      %p144 = por %p142, %p143
      %p145 = scmp.ne.s32.totalorder %s131, %s132
      %p146 = scmp.eq.s32.totalorder %s19, 3
      %p147 = por %p145, %p146
      %p149 = scmp.ne.s32.totalorder %s132, %s148
      %p150 = scmp.eq.s32.totalorder %s19, 0
      %p151 = por %p149, %p150
      %s152 = ssub.s32 %s20, %s32
      %s153 = ssub.s32 %s21, %s28
      %s154 = sor.u32 %s152, %s153
      %p155 = scmp.eq.s32.totalorder %s154, 0
      %s157 = sadd.s32 %s156, 1
      %s158 = scalar_select %p155, %s156, %s157
      %p161 = pneg %p155
      %p162 = scmp.eq.s32.totalorder %s13, 3
      %p163 = por %p161, %p162
      %p164 = scmp.ne.s32.totalorder %s156, %s159
      %p165 = scmp.eq.s32.totalorder %s13, 0
      %p166 = por %p164, %p165
      %p167 = scmp.ne.s32.totalorder %s156, %s159
      %p168 = scmp.eq.s32.totalorder %s18, 3
      %p169 = por %p167, %p168
      %p170 = scmp.ne.s32.totalorder %s159, %s160
      %p171 = scmp.eq.s32.totalorder %s18, 0
      %p172 = por %p170, %p171
      %p173 = scmp.ne.s32.totalorder %s159, %s160
      %p174 = scmp.eq.s32.totalorder %s19, 3
      %p175 = por %p173, %p174
      %p177 = scmp.ne.s32.totalorder %s160, %s176
      %p178 = scmp.eq.s32.totalorder %s19, 0
      %p179 = por %p177, %p178
      %s180 = ssub.s32 %s20, %s32
      %s181 = ssub.s32 %s21, %s28
      %s182 = sor.u32 %s180, %s181
      %p183 = scmp.eq.s32.totalorder %s182, 0
      %s185 = sadd.s32 %s184, 1
      %s186 = scalar_select %p183, %s184, %s185
      %p189 = pneg %p183
      %p190 = scmp.eq.s32.totalorder %s13, 3
      %p191 = por %p189, %p190
      %p192 = scmp.ne.s32.totalorder %s184, %s187
      %p193 = scmp.eq.s32.totalorder %s13, 0
      %p194 = por %p192, %p193
      %p195 = scmp.ne.s32.totalorder %s184, %s187
      %p196 = scmp.eq.s32.totalorder %s18, 3
      %p197 = por %p195, %p196
      %p198 = scmp.ne.s32.totalorder %s187, %s188
      %p199 = scmp.eq.s32.totalorder %s18, 0
      %p200 = por %p198, %p199
      %p201 = scmp.ne.s32.totalorder %s187, %s188
      %p202 = scmp.eq.s32.totalorder %s19, 3
      %p203 = por %p201, %p202
      %p205 = scmp.ne.s32.totalorder %s188, %s204
      %p206 = scmp.eq.s32.totalorder %s19, 0
      %p207 = por %p205, %p206
      %p208 = scmp.le.s32.totalorder 1, %s13
      %p209 = scmp.lt.s32.totalorder %s13, 5
      %p210 = pnand %p208, %p209
      %p211 = pneg %p210
      // Predicated region
      $region9: #{ffc_forward.3} parent=5 // pred_check
        _
      $region10: #{ffc_forward.3} parent=5 // pred_check_branch
        %213 = sbr.rel (%p210) target = $region12
      $region11: #{ffc_forward.3} parent=5 // pred_region
        %s214 = ssub.s32 %s13, 1
        // Predicated region
        $region13: #{ffc_forward.3} parent=11 // pred_check
          %p215 = pneg %p74
        $region14: #{ffc_forward.3} parent=11 // pred_check_branch
          %217 = sbr.rel (%p215) target = $region16
        $region15: #{ffc_forward.3} parent=11 // pred_region
          _
        $region16: #{ffc_forward.3} parent=11 // pred_fallthru
          _
        // Predicated region
        $region17: #{ffc_forward.3} parent=11 // pred_check
          %p218 = pneg %p95
        $region18: #{ffc_forward.3} parent=11 // pred_check_branch
          %220 = sbr.rel (%p218) target = $region20
        $region19: #{ffc_forward.3} parent=11 // pred_region
          _
        $region20: #{ffc_forward.3} parent=11 // pred_fallthru
          _
        // Predicated region
        $region21: #{ffc_forward.3} parent=11 // pred_check
          %p221 = pneg %p116
        $region22: #{ffc_forward.3} parent=11 // pred_check_branch
          %223 = sbr.rel (%p221) target = $region24
        $region23: #{ffc_forward.3} parent=11 // pred_region
          _
        $region24: #{ffc_forward.3} parent=11 // pred_fallthru
          _
      $region12: #{ffc_forward.3} parent=5 // pred_fallthru
        _
      %p224 = scmp.lt.s32.totalorder %s13, 4
      // Predicated region
      $region25: #{ffc_forward.3} parent=5 // pred_check
        %p225 = pneg %p224
      $region26: #{ffc_forward.3} parent=5 // pred_check_branch
        %227 = sbr.rel (%p225) target = $region28
      $region27: #{ffc_forward.3} parent=5 // pred_region
        // Predicated region
        $region29: #{ffc_forward.3} parent=27 // pred_check
          %p228 = pneg %p47
        $region30: #{ffc_forward.3} parent=27 // pred_check_branch
          %230 = sbr.rel (%p228) target = $region32
        $region31: #{ffc_forward.3} parent=27 // pred_region
          %s231 = sand.u32 %s37, 1
          %s232 = sand.u32 %s37, 1
          %s233 = smul.addr %s232, 88
          %s234 = scalar_lea.vmem [#allocation3], %s233
          %s235 = smul.u32 11, %s21
          %s236 = smul.addr %s20, 44
          %s237 = sadd.s32 %s235, %s236
          %s238 = smul.addr %s237, 4
          %s239 = scalar_lea.vmem %s0, %s238
          // Predicated region
          $region33: #{ffc_forward.3} parent=31 // pred_check
            _
          $region34: #{ffc_forward.3} parent=31 // pred_check_branch
            %241 = sbr.rel (0) target = $region36
          $region35: #{ffc_forward.3} parent=31 // pred_region
            // Predicated region
            $region37: #{ffc_forward.3} parent=35 // pred_check
              _
            $region38: #{ffc_forward.3} parent=35 // pred_check_branch
              %243 = sbr.rel (0) target = $region40
            $region39: #{ffc_forward.3} parent=35 // pred_region
              %s244 = scalar_lea.vmem %s239, 40
              %s245 = scalar_lea.vmem %s234, 40 [#allocation3]
              loop: start=0, step=1, limit=1
              $region41: #{ffc_forward.3} parent=39 // loop_pre_header
                _
              $region42: #{ffc_forward.3} parent=39 // loop_header
                %s247 = sphi 0, %s251
                %p248 = scmp.ge.s32.totalorder %s247, 1
                %s252 = sphi %s239, %s239
                %s253 = sphi %s234, %s234
              $region43: #{ffc_forward.3} parent=39 // loop_header_branch
                %250 = sbr.rel (%p248) target = $region47
              $region44: #{ffc_forward.3} parent=39 // loop_body
                %v254 = vld [vmem:[%s252] sm:$0xff]
                %255 = vst [vmem:[%s253] sm:$0xff] %v254
                %v256 = vld [vmem:[%s252 + $0x8] sm:$0xff]
                %257 = vst [vmem:[%s253 + $0x8] sm:$0xff] %v256
                %v258 = vld [vmem:[%s252 + $0x10] sm:$0xff]
                %259 = vst [vmem:[%s253 + $0x10] sm:$0xff] %v258
                %v260 = vld [vmem:[%s252 + $0x18] sm:$0xff]
                %261 = vst [vmem:[%s253 + $0x18] sm:$0xff] %v260
                %v262 = vld [vmem:[%s252 + $0x20] sm:$0xff]
                %263 = vst [vmem:[%s253 + $0x20] sm:$0xff] %v262
                %v264 = vld [vmem:[%s252 + $0x58] sm:$0xff]
                %265 = vst [vmem:[%s253 + $0x2c] sm:$0xff] %v264
                %v266 = vld [vmem:[%s252 + $0x60] sm:$0xff]
                %267 = vst [vmem:[%s253 + $0x34] sm:$0xff] %v266
                %v268 = vld [vmem:[%s252 + $0x68] sm:$0xff]
                %269 = vst [vmem:[%s253 + $0x3c] sm:$0xff] %v268
                %v270 = vld [vmem:[%s252 + $0x70] sm:$0xff]
                %271 = vst [vmem:[%s253 + $0x44] sm:$0xff] %v270
                %v272 = vld [vmem:[%s252 + $0x78] sm:$0xff]
                %273 = vst [vmem:[%s253 + $0x4c] sm:$0xff] %v272
              $region45: #{ffc_forward.3} parent=39 // loop_footer
                %s251 = sadd.s32 1, %s247
              $region46: #{ffc_forward.3} parent=39 // loop_footer_branch
                %246 = sbr.rel target = $region42
              $region47: #{ffc_forward.3} parent=39 // loop_exit
                _
              %s275 = ssub.s32 16, 1
              loop: start=0, step=1, limit=1
              $region48: #{ffc_forward.3} parent=39 // loop_pre_header
                _
              $region49: #{ffc_forward.3} parent=39 // loop_header
                %s277 = sphi 0, %s281
                %p278 = scmp.ge.s32.totalorder %s277, 1
                %s282 = sphi %s244, %s244
                %s283 = sphi %s245, %s245
              $region50: #{ffc_forward.3} parent=39 // loop_header_branch
                %280 = sbr.rel (%p278) target = $region54
              $region51: #{ffc_forward.3} parent=39 // loop_body
                %v284 = vld [vmem:[%s282] sm:%s275]
                %285 = vst [vmem:[%s283] sm:%s275] %v284
                %v286 = vld [vmem:[%s282 + $0x58] sm:%s275]
                %287 = vst [vmem:[%s283 + $0x2c] sm:%s275] %v286
              $region52: #{ffc_forward.3} parent=39 // loop_footer
                %s281 = sadd.s32 1, %s277
              $region53: #{ffc_forward.3} parent=39 // loop_footer_branch
                %276 = sbr.rel target = $region49
              $region54: #{ffc_forward.3} parent=39 // loop_exit
                _
            $region40: #{ffc_forward.3} parent=35 // pred_fallthru
              _
          $region36: #{ffc_forward.3} parent=31 // pred_fallthru
            _
          %288 = vnop
        $region32: #{ffc_forward.3} parent=27 // pred_fallthru
          _
      $region28: #{ffc_forward.3} parent=5 // pred_fallthru
        _
      %p289 = scmp.le.s32.totalorder 1, %s13
      %p290 = scmp.lt.s32.totalorder %s13, 5
      %p291 = pnand %p289, %p290
      %p292 = pneg %p291
      // Predicated region
      $region55: #{ffc_forward.3} parent=5 // pred_check
        _
      $region56: #{ffc_forward.3} parent=5 // pred_check_branch
        %294 = sbr.rel (%p291) target = $region58
      $region57: #{ffc_forward.3} parent=5 // pred_region
        %s295 = ssub.s32 %s13, 1
        %s296 = sand.u32 %s40, 1
        %s297 = sand.u32 %s40, 1
        %s298 = smul.addr %s297, 88
        %s299 = scalar_lea.vmem [#allocation3], %s298
        // Predicated region
        $region59: #{ffc_forward.3} parent=57 // pred_check
          %p300 = pneg %p53
        $region60: #{ffc_forward.3} parent=57 // pred_check_branch
          %302 = sbr.rel (%p300) target = $region62
        $region61: #{ffc_forward.3} parent=57 // pred_region
          _
        $region62: #{ffc_forward.3} parent=57 // pred_fallthru
          _
        %s303 = sand.u32 %s40, 1
        %s304 = sand.u32 %s40, 1
        %s305 = smul.addr %s304, 88
        %s306 = scalar_lea.vmem [#allocation3], %s305
        %p307 = pneg %p53
        %p308 = pneg %p50
        %p309 = pneg %p74
        %p310 = pneg %p71
        %p311 = pneg %p95
        %p312 = pneg %p92
        %p313 = pneg %p116
        %p314 = pneg %p113
        %p315 = pneg %p144
        %p316 = pneg %p141
        %s317 = smul.u32 8, %s23
        %p318 = scmp.lt.s32.totalorder %s22, 1
        %s319 = scalar_select %p318, %s22, 1
        %p320 = scmp.lt.s32.totalorder %s317, 15
        %s321 = scalar_select %p320, %s317, 15
        %s322 = smul.addr %s319, 16
        %s323 = sadd.s32 %s321, %s322
        %s324 = smul.addr %s323, 4
        %s325 = scalar_lea.vmem %s4, %s324
        %p326 = pneg %p172
        %p327 = pneg %p169
        %s328 = sand.u32 %s159, 1
        %s329 = sand.u32 %s159, 1
        %s330 = smul.addr %s329, 64
        %s331 = scalar_lea.vmem [#allocation4], %s330
        %p332 = pneg %p200
        %p333 = pneg %p197
        %s334 = smul.u32 8, %s23
        %p335 = scmp.lt.s32.totalorder %s22, 1
        %s336 = scalar_select %p335, %s22, 1
        %p337 = scmp.lt.s32.totalorder %s334, 15
        %s338 = scalar_select %p337, %s334, 15
        %s339 = smul.addr %s336, 16
        %s340 = sadd.s32 %s338, %s339
        %s341 = smul.addr %s340, 4
        %s342 = scalar_lea.vmem %s6, %s341
        %s343 = smul.u32 11, %s23
        %s344 = smul.u32 8, %s23
        %p345 = scmp.lt.s32.totalorder %s22, 1
        %s346 = scalar_select %p345, %s22, 1
        %p347 = scmp.lt.s32.totalorder %s344, 15
        %s348 = scalar_select %p347, %s344, 15
        %s349 = smul.addr %s346, 16
        %s350 = sadd.s32 %s348, %s349
        %s351 = smul.addr %s350, 4
        %s352 = scalar_lea.vmem %s4, %s351
        %s353 = smul.u32 8, %s23
        %s354 = smul.u32 8, %s23
        %s355 = smul.u32 8, %s23
        %p356 = scmp.lt.s32.totalorder %s22, 1
        %s357 = scalar_select %p356, %s22, 1
        %p358 = scmp.lt.s32.totalorder %s355, 15
        %s359 = scalar_select %p358, %s355, 15
        %s360 = smul.addr %s357, 16
        %s361 = sadd.s32 %s359, %s360
        %s362 = smul.addr %s361, 4
        %s363 = scalar_lea.vmem %s6, %s362
        %s364 = smul.u32 8, %s23
        %v366 = vld [vmem:[%s299] sm:$0xff]
        %v367 = vld [vmem:[%s299 + $0x8] sm:$0xff]
        %v368 = vld [vmem:[%s299 + $0x10] sm:$0xff]
        %v369 = vld [vmem:[%s299 + $0x18] sm:$0xff]
        %v370 = vld [vmem:[%s299 + $0x20] sm:$0xff]
        %v371 = vld [vmem:[%s299 + $0x28] sm:$0xf]
        %v372 = vld [vmem:[%s299 + $0x2c] sm:$0xff]
        %v373 = vld [vmem:[%s299 + $0x34] sm:$0xff]
        %v374 = vld [vmem:[%s299 + $0x3c] sm:$0xff]
        %v375 = vld [vmem:[%s299 + $0x44] sm:$0xff]
        %v376 = vld [vmem:[%s299 + $0x4c] sm:$0xff]
        %v377 = vld [vmem:[%s299 + $0x54] sm:$0xf]
        %v378 = vld [vmem:[%s299] sm:$0xff]
        %v379 = vld [vmem:[%s299 + $0x8] sm:$0xff]
        %v380 = vld [vmem:[%s299 + $0x10] sm:$0xff]
        %v381 = vld [vmem:[%s299 + $0x18] sm:$0xff]
        %v382 = vld [vmem:[%s299 + $0x2c] sm:$0xff]
        %v383 = vld [vmem:[%s299 + $0x34] sm:$0xff]
        %v384 = vld [vmem:[%s299 + $0x3c] sm:$0xff]
        %v385 = vld [vmem:[%s299 + $0x44] sm:$0xff]
        %386 = vst [vmem:[#allocation2] sm:$0xff] %v378
        %387 = vst [vmem:[#allocation2 + $0x8] sm:$0xff] %v379
        %388 = vst [vmem:[#allocation2 + $0x10] sm:$0xff] %v380
        %389 = vst [vmem:[#allocation2 + $0x18] sm:$0xff] %v381
        %390 = vst [vmem:[#allocation2 + $0x20] sm:$0xff] %v382
        %391 = vst [vmem:[#allocation2 + $0x28] sm:$0xff] %v383
        %392 = vst [vmem:[#allocation2 + $0x30] sm:$0xff] %v384
        %393 = vst [vmem:[#allocation2 + $0x38] sm:$0xff] %v385
        %404 = vrot.lane.b32.xlu0 %v366, 127
        %v405 = vpop.permute.xlu0 %404
        %406 = vrot.lane.b32.xlu0 %v367, 127
        %v407 = vpop.permute.xlu0 %406
        %408 = vrot.lane.b32.xlu0 %v368, 127
        %v409 = vpop.permute.xlu0 %408
        %410 = vrot.lane.b32.xlu0 %v369, 127
        %v411 = vpop.permute.xlu0 %410
        %412 = vrot.lane.b32.xlu0 %v370, 127
        %v413 = vpop.permute.xlu0 %412
        %414 = vrot.lane.b32.xlu0 %v372, 127
        %v415 = vpop.permute.xlu0 %414
        %416 = vrot.lane.b32.xlu0 %v373, 127
        %v417 = vpop.permute.xlu0 %416
        %418 = vrot.lane.b32.xlu0 %v374, 127
        %v419 = vpop.permute.xlu0 %418
        %420 = vrot.lane.b32.xlu0 %v375, 127
        %v421 = vpop.permute.xlu0 %420
        %422 = vrot.lane.b32.xlu0 %v376, 127
        %v423 = vpop.permute.xlu0 %422
        %v424 = vrot.slane %v405, 4
        %v425 = vrot.slane %v407, 4
        %v426 = vrot.slane %v409, 4
        %v427 = vrot.slane %v411, 4
        %v428 = vrot.slane %v413, 4
        %v429 = vrot.slane %v415, 4
        %v430 = vrot.slane %v417, 4
        %v431 = vrot.slane %v419, 4
        %v432 = vrot.slane %v421, 4
        %v433 = vrot.slane %v423, 4
        %vm434 = vcmask 1043456
        %v435 = vsel %vm434, %v424, %v425
        %vm436 = vcmask 1039360
        %v437 = vsel %vm436, %v405, %v435
        %v438 = vsel %vm434, %v425, %v426
        %v439 = vsel %vm436, %v407, %v438
        %v440 = vsel %vm434, %v426, %v427
        %v441 = vsel %vm436, %v409, %v440
        %v442 = vsel %vm434, %v427, %v428
        %v443 = vsel %vm436, %v411, %v442
        %v444 = vsel %vm434, %v429, %v430
        %v445 = vsel %vm436, %v415, %v444
        %v446 = vsel %vm434, %v430, %v431
        %v447 = vsel %vm436, %v417, %v446
        %v448 = vsel %vm434, %v431, %v432
        %v449 = vsel %vm436, %v419, %v448
        %v450 = vsel %vm434, %v432, %v433
        %v451 = vsel %vm436, %v421, %v450
        %460 = vst [vmem:[#allocation2 + $0x40] sm:$0xff] %v437
        %461 = vst [vmem:[#allocation2 + $0x48] sm:$0xff] %v439
        %462 = vst [vmem:[#allocation2 + $0x50] sm:$0xff] %v441
        %463 = vst [vmem:[#allocation2 + $0x58] sm:$0xff] %v443
        %464 = vst [vmem:[#allocation2 + $0x60] sm:$0xff] %v445
        %465 = vst [vmem:[#allocation2 + $0x68] sm:$0xff] %v447
        %466 = vst [vmem:[#allocation2 + $0x70] sm:$0xff] %v449
        %467 = vst [vmem:[#allocation2 + $0x78] sm:$0xff] %v451
        %468 = vrot.lane.b32.xlu0 %v366, 126
        %v469 = vpop.permute.xlu0 %468
        %470 = vrot.lane.b32.xlu0 %v367, 126
        %v471 = vpop.permute.xlu0 %470
        %472 = vrot.lane.b32.xlu0 %v368, 126
        %v473 = vpop.permute.xlu0 %472
        %474 = vrot.lane.b32.xlu0 %v369, 126
        %v475 = vpop.permute.xlu0 %474
        %476 = vrot.lane.b32.xlu0 %v370, 126
        %v477 = vpop.permute.xlu0 %476
        %478 = vrot.lane.b32.xlu0 %v372, 126
        %v479 = vpop.permute.xlu0 %478
        %480 = vrot.lane.b32.xlu0 %v373, 126
        %v481 = vpop.permute.xlu0 %480
        %482 = vrot.lane.b32.xlu0 %v374, 126
        %v483 = vpop.permute.xlu0 %482
        %484 = vrot.lane.b32.xlu0 %v375, 126
        %v485 = vpop.permute.xlu0 %484
        %486 = vrot.lane.b32.xlu0 %v376, 126
        %v487 = vpop.permute.xlu0 %486
        %v488 = vrot.slane %v469, 4
        %v489 = vrot.slane %v471, 4
        %v490 = vrot.slane %v473, 4
        %v491 = vrot.slane %v475, 4
        %v492 = vrot.slane %v477, 4
        %v493 = vrot.slane %v479, 4
        %v494 = vrot.slane %v481, 4
        %v495 = vrot.slane %v483, 4
        %v496 = vrot.slane %v485, 4
        %v497 = vrot.slane %v487, 4
        %v498 = vsel %vm434, %v488, %v489
        %vm499 = vcmask 1031168
        %v500 = vsel %vm499, %v469, %v498
        %v501 = vsel %vm434, %v489, %v490
        %v502 = vsel %vm499, %v471, %v501
        %v503 = vsel %vm434, %v490, %v491
        %v504 = vsel %vm499, %v473, %v503
        %v505 = vsel %vm434, %v491, %v492
        %v506 = vsel %vm499, %v475, %v505
        %v507 = vsel %vm434, %v493, %v494
        %v508 = vsel %vm499, %v479, %v507
        %v509 = vsel %vm434, %v494, %v495
        %v510 = vsel %vm499, %v481, %v509
        %v511 = vsel %vm434, %v495, %v496
        %v512 = vsel %vm499, %v483, %v511
        %v513 = vsel %vm434, %v496, %v497
        %v514 = vsel %vm499, %v485, %v513
        %523 = vst [vmem:[#allocation2 + $0x80] sm:$0xff] %v500
        %524 = vst [vmem:[#allocation2 + $0x88] sm:$0xff] %v502
        %525 = vst [vmem:[#allocation2 + $0x90] sm:$0xff] %v504
        %526 = vst [vmem:[#allocation2 + $0x98] sm:$0xff] %v506
        %527 = vst [vmem:[#allocation2 + $0xa0] sm:$0xff] %v508
        %528 = vst [vmem:[#allocation2 + $0xa8] sm:$0xff] %v510
        %529 = vst [vmem:[#allocation2 + $0xb0] sm:$0xff] %v512
        %530 = vst [vmem:[#allocation2 + $0xb8] sm:$0xff] %v514
        %v531 = vld [vmem:[%s299 + $0x4] sm:$0xff]
        %v532 = vld [vmem:[%s299 + $0xc] sm:$0xff]
        %v533 = vld [vmem:[%s299 + $0x14] sm:$0xff]
        %v534 = vld [vmem:[%s299 + $0x1c] sm:$0xff]
        %v535 = vld [vmem:[%s299 + $0x30] sm:$0xff]
        %v536 = vld [vmem:[%s299 + $0x38] sm:$0xff]
        %v537 = vld [vmem:[%s299 + $0x40] sm:$0xff]
        %v538 = vld [vmem:[%s299 + $0x48] sm:$0xff]
        %539 = vst [vmem:[#allocation2 + $0xc0] sm:$0xff] %v531
        %540 = vst [vmem:[#allocation2 + $0xc8] sm:$0xff] %v532
        %541 = vst [vmem:[#allocation2 + $0xd0] sm:$0xff] %v533
        %542 = vst [vmem:[#allocation2 + $0xd8] sm:$0xff] %v534
        %543 = vst [vmem:[#allocation2 + $0xe0] sm:$0xff] %v535
        %544 = vst [vmem:[#allocation2 + $0xe8] sm:$0xff] %v536
        %545 = vst [vmem:[#allocation2 + $0xf0] sm:$0xff] %v537
        %546 = vst [vmem:[#allocation2 + $0xf8] sm:$0xff] %v538
        %v547 = vsel %vm436, %v435, %v407
        %v548 = vsel %vm436, %v438, %v409
        %v549 = vsel %vm436, %v440, %v411
        %v550 = vsel %vm436, %v442, %v413
        %v551 = vsel %vm436, %v444, %v417
        %v552 = vsel %vm436, %v446, %v419
        %v553 = vsel %vm436, %v448, %v421
        %v554 = vsel %vm436, %v450, %v423
        %563 = vst [vmem:[#allocation2 + $0x100] sm:$0xff] %v547
        %564 = vst [vmem:[#allocation2 + $0x108] sm:$0xff] %v548
        %565 = vst [vmem:[#allocation2 + $0x110] sm:$0xff] %v549
        %566 = vst [vmem:[#allocation2 + $0x118] sm:$0xff] %v550
        %567 = vst [vmem:[#allocation2 + $0x120] sm:$0xff] %v551
        %568 = vst [vmem:[#allocation2 + $0x128] sm:$0xff] %v552
        %569 = vst [vmem:[#allocation2 + $0x130] sm:$0xff] %v553
        %570 = vst [vmem:[#allocation2 + $0x138] sm:$0xff] %v554
        %v571 = vsel %vm499, %v498, %v471
        %v572 = vsel %vm499, %v501, %v473
        %v573 = vsel %vm499, %v503, %v475
        %v574 = vsel %vm499, %v505, %v477
        %v575 = vsel %vm499, %v507, %v481
        %v576 = vsel %vm499, %v509, %v483
        %v577 = vsel %vm499, %v511, %v485
        %v578 = vsel %vm499, %v513, %v487
        %587 = vst [vmem:[#allocation2 + $0x140] sm:$0xff] %v571
        %588 = vst [vmem:[#allocation2 + $0x148] sm:$0xff] %v572
        %589 = vst [vmem:[#allocation2 + $0x150] sm:$0xff] %v573
        %590 = vst [vmem:[#allocation2 + $0x158] sm:$0xff] %v574
        %591 = vst [vmem:[#allocation2 + $0x160] sm:$0xff] %v575
        %592 = vst [vmem:[#allocation2 + $0x168] sm:$0xff] %v576
        %593 = vst [vmem:[#allocation2 + $0x170] sm:$0xff] %v577
        %594 = vst [vmem:[#allocation2 + $0x178] sm:$0xff] %v578
        %v595 = vld [vmem:[%s299 + $0x8] sm:$0xff]
        %v596 = vld [vmem:[%s299 + $0x10] sm:$0xff]
        %v597 = vld [vmem:[%s299 + $0x18] sm:$0xff]
        %v598 = vld [vmem:[%s299 + $0x20] sm:$0xff]
        %v599 = vld [vmem:[%s299 + $0x34] sm:$0xff]
        %v600 = vld [vmem:[%s299 + $0x3c] sm:$0xff]
        %v601 = vld [vmem:[%s299 + $0x44] sm:$0xff]
        %v602 = vld [vmem:[%s299 + $0x4c] sm:$0xff]
        %603 = vst [vmem:[#allocation2 + $0x180] sm:$0xff] %v595
        %604 = vst [vmem:[#allocation2 + $0x188] sm:$0xff] %v596
        %605 = vst [vmem:[#allocation2 + $0x190] sm:$0xff] %v597
        %606 = vst [vmem:[#allocation2 + $0x198] sm:$0xff] %v598
        %607 = vst [vmem:[#allocation2 + $0x1a0] sm:$0xff] %v599
        %608 = vst [vmem:[#allocation2 + $0x1a8] sm:$0xff] %v600
        %609 = vst [vmem:[#allocation2 + $0x1b0] sm:$0xff] %v601
        %610 = vst [vmem:[#allocation2 + $0x1b8] sm:$0xff] %v602
        %613 = vrot.lane.b32.xlu0 %v371, 127
        %v614 = vpop.permute.xlu0 %613
        %615 = vrot.lane.b32.xlu0 %v377, 127
        %v616 = vpop.permute.xlu0 %615
        %v617 = vrot.slane %v614, 4
        %v618 = vrot.slane %v616, 4
        %v619 = vsel %vm434, %v428, %v617
        %v620 = vsel %vm436, %v413, %v619
        %v621 = vsel %vm434, %v433, %v618
        %v622 = vsel %vm436, %v423, %v621
        %625 = vst [vmem:[#allocation2 + $0x1c0] sm:$0xff] %v439
        %626 = vst [vmem:[#allocation2 + $0x1c8] sm:$0xff] %v441
        %627 = vst [vmem:[#allocation2 + $0x1d0] sm:$0xff] %v443
        %628 = vst [vmem:[#allocation2 + $0x1d8] sm:$0xff] %v620
        %629 = vst [vmem:[#allocation2 + $0x1e0] sm:$0xff] %v447
        %630 = vst [vmem:[#allocation2 + $0x1e8] sm:$0xff] %v449
        %631 = vst [vmem:[#allocation2 + $0x1f0] sm:$0xff] %v451
        %632 = vst [vmem:[#allocation2 + $0x1f8] sm:$0xff] %v622
        %633 = vrot.lane.b32.xlu0 %v371, 126
        %v634 = vpop.permute.xlu0 %633
        %635 = vrot.lane.b32.xlu0 %v377, 126
        %v636 = vpop.permute.xlu0 %635
        %v637 = vrot.slane %v634, 4
        %v638 = vrot.slane %v636, 4
        %v639 = vsel %vm434, %v492, %v637
        %v640 = vsel %vm499, %v477, %v639
        %v641 = vsel %vm434, %v497, %v638
        %v642 = vsel %vm499, %v487, %v641
        %645 = vst [vmem:[#allocation2 + $0x200] sm:$0xff] %v502
        %646 = vst [vmem:[#allocation2 + $0x208] sm:$0xff] %v504
        %647 = vst [vmem:[#allocation2 + $0x210] sm:$0xff] %v506
        %648 = vst [vmem:[#allocation2 + $0x218] sm:$0xff] %v640
        %649 = vst [vmem:[#allocation2 + $0x220] sm:$0xff] %v510
        %650 = vst [vmem:[#allocation2 + $0x228] sm:$0xff] %v512
        %651 = vst [vmem:[#allocation2 + $0x230] sm:$0xff] %v514
        %652 = vst [vmem:[#allocation2 + $0x238] sm:$0xff] %v642
        %v653 = vld [vmem:[%s1] sm:$0xff]
        %v654 = vld [vmem:[%s1 + $0x8] sm:$0xff]
        %v655 = vld [vmem:[#allocation2] sm:$0xff]
        %v656 = vld [vmem:[#allocation2 + $0x8] sm:$0xff]
        %v657 = vld [vmem:[#allocation2 + $0x10] sm:$0xff]
        %v658 = vld [vmem:[#allocation2 + $0x18] sm:$0xff]
        %v659 = vld [vmem:[#allocation2 + $0x20] sm:$0xff]
        %v660 = vld [vmem:[#allocation2 + $0x28] sm:$0xff]
        %v661 = vld [vmem:[#allocation2 + $0x30] sm:$0xff]
        %v662 = vld [vmem:[#allocation2 + $0x38] sm:$0xff]
        %v663 = vld [vmem:[#allocation2 + $0x40] sm:$0xff]
        %v664 = vld [vmem:[#allocation2 + $0x48] sm:$0xff]
        %v665 = vld [vmem:[#allocation2 + $0x50] sm:$0xff]
        %v666 = vld [vmem:[#allocation2 + $0x58] sm:$0xff]
        %v667 = vld [vmem:[#allocation2 + $0x60] sm:$0xff]
        %v668 = vld [vmem:[#allocation2 + $0x68] sm:$0xff]
        %v669 = vld [vmem:[#allocation2 + $0x70] sm:$0xff]
        %v670 = vld [vmem:[#allocation2 + $0x78] sm:$0xff]
        %v671 = vld [vmem:[#allocation2 + $0x80] sm:$0xff]
        %v672 = vld [vmem:[#allocation2 + $0x88] sm:$0xff]
        %v673 = vld [vmem:[#allocation2 + $0x90] sm:$0xff]
        %v674 = vld [vmem:[#allocation2 + $0x98] sm:$0xff]
        %v675 = vld [vmem:[#allocation2 + $0xa0] sm:$0xff]
        %v676 = vld [vmem:[#allocation2 + $0xa8] sm:$0xff]
        %v677 = vld [vmem:[#allocation2 + $0xb0] sm:$0xff]
        %v678 = vld [vmem:[#allocation2 + $0xb8] sm:$0xff]
        %v679 = vld [vmem:[#allocation2 + $0xc0] sm:$0xff]
        %v680 = vld [vmem:[#allocation2 + $0xc8] sm:$0xff]
        %v681 = vld [vmem:[#allocation2 + $0xd0] sm:$0xff]
        %v682 = vld [vmem:[#allocation2 + $0xd8] sm:$0xff]
        %v683 = vld [vmem:[#allocation2 + $0xe0] sm:$0xff]
        %v684 = vld [vmem:[#allocation2 + $0xe8] sm:$0xff]
        %v685 = vld [vmem:[#allocation2 + $0xf0] sm:$0xff]
        %v686 = vld [vmem:[#allocation2 + $0xf8] sm:$0xff]
        %v687 = vld [vmem:[#allocation2 + $0x100] sm:$0xff]
        %v688 = vld [vmem:[#allocation2 + $0x108] sm:$0xff]
        %v689 = vld [vmem:[#allocation2 + $0x110] sm:$0xff]
        %v690 = vld [vmem:[#allocation2 + $0x118] sm:$0xff]
        %v691 = vld [vmem:[#allocation2 + $0x120] sm:$0xff]
        %v692 = vld [vmem:[#allocation2 + $0x128] sm:$0xff]
        %v693 = vld [vmem:[#allocation2 + $0x130] sm:$0xff]
        %v694 = vld [vmem:[#allocation2 + $0x138] sm:$0xff]
        %v695 = vld [vmem:[#allocation2 + $0x140] sm:$0xff]
        %v696 = vld [vmem:[#allocation2 + $0x148] sm:$0xff]
        %v697 = vld [vmem:[#allocation2 + $0x150] sm:$0xff]
        %v698 = vld [vmem:[#allocation2 + $0x158] sm:$0xff]
        %v699 = vld [vmem:[#allocation2 + $0x160] sm:$0xff]
        %v700 = vld [vmem:[#allocation2 + $0x168] sm:$0xff]
        %v701 = vld [vmem:[#allocation2 + $0x170] sm:$0xff]
        %v702 = vld [vmem:[#allocation2 + $0x178] sm:$0xff]
        %v703 = vld [vmem:[#allocation2 + $0x180] sm:$0xff]
        %v704 = vld [vmem:[#allocation2 + $0x188] sm:$0xff]
        %v705 = vld [vmem:[#allocation2 + $0x190] sm:$0xff]
        %v706 = vld [vmem:[#allocation2 + $0x198] sm:$0xff]
        %v707 = vld [vmem:[#allocation2 + $0x1a0] sm:$0xff]
        %v708 = vld [vmem:[#allocation2 + $0x1a8] sm:$0xff]
        %v709 = vld [vmem:[#allocation2 + $0x1b0] sm:$0xff]
        %v710 = vld [vmem:[#allocation2 + $0x1b8] sm:$0xff]
        %v711 = vld [vmem:[#allocation2 + $0x1c0] sm:$0xff]
        %v712 = vld [vmem:[#allocation2 + $0x1c8] sm:$0xff]
        %v713 = vld [vmem:[#allocation2 + $0x1d0] sm:$0xff]
        %v714 = vld [vmem:[#allocation2 + $0x1d8] sm:$0xff]
        %v715 = vld [vmem:[#allocation2 + $0x1e0] sm:$0xff]
        %v716 = vld [vmem:[#allocation2 + $0x1e8] sm:$0xff]
        %v717 = vld [vmem:[#allocation2 + $0x1f0] sm:$0xff]
        %v718 = vld [vmem:[#allocation2 + $0x1f8] sm:$0xff]
        %v719 = vld [vmem:[#allocation2 + $0x200] sm:$0xff]
        %v720 = vld [vmem:[#allocation2 + $0x208] sm:$0xff]
        %v721 = vld [vmem:[#allocation2 + $0x210] sm:$0xff]
        %v722 = vld [vmem:[#allocation2 + $0x218] sm:$0xff]
        %v723 = vld [vmem:[#allocation2 + $0x220] sm:$0xff]
        %v724 = vld [vmem:[#allocation2 + $0x228] sm:$0xff]
        %v725 = vld [vmem:[#allocation2 + $0x230] sm:$0xff]
        %v726 = vld [vmem:[#allocation2 + $0x238] sm:$0xff]
        %v729 = vunpack.c.l.b16 %v653
        %v730 = vunpack.c.h.b16 %v653
        %v731 = vunpack.c.l.b16 %v654
        %v732 = vunpack.c.h.b16 %v654
        %v733 = vpack.c.b16 %v731, %v729
        %v734 = vpack.c.b16 %v732, %v730
        %v808 = vunpack.c.l.b16 %v655
        %v809 = vunpack.c.h.b16 %v655
        %v810 = vunpack.c.l.b16 %v656
        %v811 = vunpack.c.h.b16 %v656
        %v812 = vunpack.c.l.b16 %v657
        %v813 = vunpack.c.h.b16 %v657
        %v814 = vunpack.c.l.b16 %v658
        %v815 = vunpack.c.h.b16 %v658
        %v816 = vunpack.c.l.b16 %v659
        %v817 = vunpack.c.h.b16 %v659
        %v818 = vunpack.c.l.b16 %v660
        %v819 = vunpack.c.h.b16 %v660
        %v820 = vunpack.c.l.b16 %v661
        %v821 = vunpack.c.h.b16 %v661
        %v822 = vunpack.c.l.b16 %v662
        %v823 = vunpack.c.h.b16 %v662
        %v824 = vunpack.c.l.b16 %v663
        %v825 = vunpack.c.h.b16 %v663
        %v826 = vunpack.c.l.b16 %v664
        %v827 = vunpack.c.h.b16 %v664
        %v828 = vunpack.c.l.b16 %v665
        %v829 = vunpack.c.h.b16 %v665
        %v830 = vunpack.c.l.b16 %v666
        %v831 = vunpack.c.h.b16 %v666
        %v832 = vunpack.c.l.b16 %v667
        %v833 = vunpack.c.h.b16 %v667
        %v834 = vunpack.c.l.b16 %v668
        %v835 = vunpack.c.h.b16 %v668
        %v836 = vunpack.c.l.b16 %v669
        %v837 = vunpack.c.h.b16 %v669
        %v838 = vunpack.c.l.b16 %v670
        %v839 = vunpack.c.h.b16 %v670
        %v840 = vunpack.c.l.b16 %v671
        %v841 = vunpack.c.h.b16 %v671
        %v842 = vunpack.c.l.b16 %v672
        %v843 = vunpack.c.h.b16 %v672
        %v844 = vunpack.c.l.b16 %v673
        %v845 = vunpack.c.h.b16 %v673
        %v846 = vunpack.c.l.b16 %v674
        %v847 = vunpack.c.h.b16 %v674
        %v848 = vunpack.c.l.b16 %v675
        %v849 = vunpack.c.h.b16 %v675
        %v850 = vunpack.c.l.b16 %v676
        %v851 = vunpack.c.h.b16 %v676
        %v852 = vunpack.c.l.b16 %v677
        %v853 = vunpack.c.h.b16 %v677
        %v854 = vunpack.c.l.b16 %v678
        %v855 = vunpack.c.h.b16 %v678
        %v856 = vunpack.c.l.b16 %v679
        %v857 = vunpack.c.h.b16 %v679
        %v858 = vunpack.c.l.b16 %v680
        %v859 = vunpack.c.h.b16 %v680
        %v860 = vunpack.c.l.b16 %v681
        %v861 = vunpack.c.h.b16 %v681
        %v862 = vunpack.c.l.b16 %v682
        %v863 = vunpack.c.h.b16 %v682
        %v864 = vunpack.c.l.b16 %v683
        %v865 = vunpack.c.h.b16 %v683
        %v866 = vunpack.c.l.b16 %v684
        %v867 = vunpack.c.h.b16 %v684
        %v868 = vunpack.c.l.b16 %v685
        %v869 = vunpack.c.h.b16 %v685
        %v870 = vunpack.c.l.b16 %v686
        %v871 = vunpack.c.h.b16 %v686
        %v872 = vunpack.c.l.b16 %v687
        %v873 = vunpack.c.h.b16 %v687
        %v874 = vunpack.c.l.b16 %v688
        %v875 = vunpack.c.h.b16 %v688
        %v876 = vunpack.c.l.b16 %v689
        %v877 = vunpack.c.h.b16 %v689
        %v878 = vunpack.c.l.b16 %v690
        %v879 = vunpack.c.h.b16 %v690
        %v880 = vunpack.c.l.b16 %v691
        %v881 = vunpack.c.h.b16 %v691
        %v882 = vunpack.c.l.b16 %v692
        %v883 = vunpack.c.h.b16 %v692
        %v884 = vunpack.c.l.b16 %v693
        %v885 = vunpack.c.h.b16 %v693
        %v886 = vunpack.c.l.b16 %v694
        %v887 = vunpack.c.h.b16 %v694
        %v888 = vunpack.c.l.b16 %v695
        %v889 = vunpack.c.h.b16 %v695
        %v890 = vunpack.c.l.b16 %v696
        %v891 = vunpack.c.h.b16 %v696
        %v892 = vunpack.c.l.b16 %v697
        %v893 = vunpack.c.h.b16 %v697
        %v894 = vunpack.c.l.b16 %v698
        %v895 = vunpack.c.h.b16 %v698
        %v896 = vunpack.c.l.b16 %v699
        %v897 = vunpack.c.h.b16 %v699
        %v898 = vunpack.c.l.b16 %v700
        %v899 = vunpack.c.h.b16 %v700
        %v900 = vunpack.c.l.b16 %v701
        %v901 = vunpack.c.h.b16 %v701
        %v902 = vunpack.c.l.b16 %v702
        %v903 = vunpack.c.h.b16 %v702
        %v904 = vunpack.c.l.b16 %v703
        %v905 = vunpack.c.h.b16 %v703
        %v906 = vunpack.c.l.b16 %v704
        %v907 = vunpack.c.h.b16 %v704
        %v908 = vunpack.c.l.b16 %v705
        %v909 = vunpack.c.h.b16 %v705
        %v910 = vunpack.c.l.b16 %v706
        %v911 = vunpack.c.h.b16 %v706
        %v912 = vunpack.c.l.b16 %v707
        %v913 = vunpack.c.h.b16 %v707
        %v914 = vunpack.c.l.b16 %v708
        %v915 = vunpack.c.h.b16 %v708
        %v916 = vunpack.c.l.b16 %v709
        %v917 = vunpack.c.h.b16 %v709
        %v918 = vunpack.c.l.b16 %v710
        %v919 = vunpack.c.h.b16 %v710
        %v920 = vunpack.c.l.b16 %v711
        %v921 = vunpack.c.h.b16 %v711
        %v922 = vunpack.c.l.b16 %v712
        %v923 = vunpack.c.h.b16 %v712
        %v924 = vunpack.c.l.b16 %v713
        %v925 = vunpack.c.h.b16 %v713
        %v926 = vunpack.c.l.b16 %v714
        %v927 = vunpack.c.h.b16 %v714
        %v928 = vunpack.c.l.b16 %v715
        %v929 = vunpack.c.h.b16 %v715
        %v930 = vunpack.c.l.b16 %v716
        %v931 = vunpack.c.h.b16 %v716
        %v932 = vunpack.c.l.b16 %v717
        %v933 = vunpack.c.h.b16 %v717
        %v934 = vunpack.c.l.b16 %v718
        %v935 = vunpack.c.h.b16 %v718
        %v936 = vunpack.c.l.b16 %v719
        %v937 = vunpack.c.h.b16 %v719
        %v938 = vunpack.c.l.b16 %v720
        %v939 = vunpack.c.h.b16 %v720
        %v940 = vunpack.c.l.b16 %v721
        %v941 = vunpack.c.h.b16 %v721
        %v942 = vunpack.c.l.b16 %v722
        %v943 = vunpack.c.h.b16 %v722
        %v944 = vunpack.c.l.b16 %v723
        %v945 = vunpack.c.h.b16 %v723
        %v946 = vunpack.c.l.b16 %v724
        %v947 = vunpack.c.h.b16 %v724
        %v948 = vunpack.c.l.b16 %v725
        %v949 = vunpack.c.h.b16 %v725
        %v950 = vunpack.c.l.b16 %v726
        %v951 = vunpack.c.h.b16 %v726
        %v952 = vpack.c.b16 %v816, %v808
        %v953 = vpack.c.b16 %v817, %v809
        %v954 = vpack.c.b16 %v818, %v810
        %v955 = vpack.c.b16 %v819, %v811
        %v956 = vpack.c.b16 %v820, %v812
        %v957 = vpack.c.b16 %v821, %v813
        %v958 = vpack.c.b16 %v822, %v814
        %v959 = vpack.c.b16 %v823, %v815
        %v960 = vpack.c.b16 %v832, %v824
        %v961 = vpack.c.b16 %v833, %v825
        %v962 = vpack.c.b16 %v834, %v826
        %v963 = vpack.c.b16 %v835, %v827
        %v964 = vpack.c.b16 %v836, %v828
        %v965 = vpack.c.b16 %v837, %v829
        %v966 = vpack.c.b16 %v838, %v830
        %v967 = vpack.c.b16 %v839, %v831
        %v968 = vpack.c.b16 %v848, %v840
        %v969 = vpack.c.b16 %v849, %v841
        %v970 = vpack.c.b16 %v850, %v842
        %v971 = vpack.c.b16 %v851, %v843
        %v972 = vpack.c.b16 %v852, %v844
        %v973 = vpack.c.b16 %v853, %v845
        %v974 = vpack.c.b16 %v854, %v846
        %v975 = vpack.c.b16 %v855, %v847
        %v976 = vpack.c.b16 %v864, %v856
        %v977 = vpack.c.b16 %v865, %v857
        %v978 = vpack.c.b16 %v866, %v858
        %v979 = vpack.c.b16 %v867, %v859
        %v980 = vpack.c.b16 %v868, %v860
        %v981 = vpack.c.b16 %v869, %v861
        %v982 = vpack.c.b16 %v870, %v862
        %v983 = vpack.c.b16 %v871, %v863
        %v984 = vpack.c.b16 %v880, %v872
        %v985 = vpack.c.b16 %v881, %v873
        %v986 = vpack.c.b16 %v882, %v874
        %v987 = vpack.c.b16 %v883, %v875
        %v988 = vpack.c.b16 %v884, %v876
        %v989 = vpack.c.b16 %v885, %v877
        %v990 = vpack.c.b16 %v886, %v878
        %v991 = vpack.c.b16 %v887, %v879
        %v992 = vpack.c.b16 %v896, %v888
        %v993 = vpack.c.b16 %v897, %v889
        %v994 = vpack.c.b16 %v898, %v890
        %v995 = vpack.c.b16 %v899, %v891
        %v996 = vpack.c.b16 %v900, %v892
        %v997 = vpack.c.b16 %v901, %v893
        %v998 = vpack.c.b16 %v902, %v894
        %v999 = vpack.c.b16 %v903, %v895
        %v1000 = vpack.c.b16 %v912, %v904
        %v1001 = vpack.c.b16 %v913, %v905
        %v1002 = vpack.c.b16 %v914, %v906
        %v1003 = vpack.c.b16 %v915, %v907
        %v1004 = vpack.c.b16 %v916, %v908
        %v1005 = vpack.c.b16 %v917, %v909
        %v1006 = vpack.c.b16 %v918, %v910
        %v1007 = vpack.c.b16 %v919, %v911
        %v1008 = vpack.c.b16 %v928, %v920
        %v1009 = vpack.c.b16 %v929, %v921
        %v1010 = vpack.c.b16 %v930, %v922
        %v1011 = vpack.c.b16 %v931, %v923
        %v1012 = vpack.c.b16 %v932, %v924
        %v1013 = vpack.c.b16 %v933, %v925
        %v1014 = vpack.c.b16 %v934, %v926
        %v1015 = vpack.c.b16 %v935, %v927
        %v1016 = vpack.c.b16 %v944, %v936
        %v1017 = vpack.c.b16 %v945, %v937
        %v1018 = vpack.c.b16 %v946, %v938
        %v1019 = vpack.c.b16 %v947, %v939
        %v1020 = vpack.c.b16 %v948, %v940
        %v1021 = vpack.c.b16 %v949, %v941
        %v1022 = vpack.c.b16 %v950, %v942
        %v1023 = vpack.c.b16 %v951, %v943
        %vm1096 = vcmask 130048
        %v1098 = vsel %vm1096, %v734, 0
        %1100 = vmatpush.bf16.msra.mxu0 %v1008
        %1101 = vmatpush.bf16.msra.mxu0 %v1000
        %1102 = vmatpush.bf16.msra.mxu0 %v992
        %1103 = vmatpush.bf16.msra.mxu0 %v984
        %1104 = vmatpush.bf16.msra.mxu0 %v976
        %1105 = vmatpush.bf16.msra.mxu0 %v968
        %1106 = vmatpush.bf16.msra.mxu0 %v960
        %1107 = vmatpush.bf16.msra.mxu0 %v952
        %1108 = vmatmul.bf16.gmra.mxu0 %v733
        %v1109 = vpop.f32.mrf.mxu0
        %v1110 = vadd.f32 0.0, %v1109
        %v1111 = vpop.f32.mrf.mxu0
        %v1112 = vadd.f32 0.0, %v1111
        %1113 = vdwg.mxu0
        %1114 = vmatpush.bf16.msra.mxu0 0
        %1115 = vmatpush.bf16.msra.mxu0 0
        %1116 = vmatpush.bf16.msra.mxu0 0
        %1117 = vmatpush.bf16.msra.mxu0 0
        %1118 = vmatpush.bf16.msra.mxu0 0
        %1119 = vmatpush.bf16.msra.mxu0 0
        %1120 = vmatpush.bf16.msra.mxu0 0
        %1121 = vmatpush.bf16.msra.mxu0 %v1016
        %1122 = vmatmul.bf16.gmra.mxu0 %v1098
        %v1123 = vpop.f32.mrf.mxu0
        %v1124 = vadd.f32 %v1110, %v1123
        %v1125 = vpop.f32.mrf.mxu0
        %v1126 = vadd.f32 %v1112, %v1125
        %1127 = vdwg.mxu0
        %1128 = vmatpush.bf16.msra.mxu0 %v1009
        %1129 = vmatpush.bf16.msra.mxu0 %v1001
        %1130 = vmatpush.bf16.msra.mxu0 %v993
        %1131 = vmatpush.bf16.msra.mxu0 %v985
        %1132 = vmatpush.bf16.msra.mxu0 %v977
        %1133 = vmatpush.bf16.msra.mxu0 %v969
        %1134 = vmatpush.bf16.msra.mxu0 %v961
        %1135 = vmatpush.bf16.msra.mxu0 %v953
        %1136 = vmatmul.bf16.gmra.mxu0 %v733
        %v1137 = vpop.f32.mrf.mxu0
        %v1138 = vadd.f32 0.0, %v1137
        %v1139 = vpop.f32.mrf.mxu0
        %v1140 = vadd.f32 0.0, %v1139
        %1141 = vdwg.mxu0
        %1142 = vmatpush.bf16.msra.mxu0 0
        %1143 = vmatpush.bf16.msra.mxu0 0
        %1144 = vmatpush.bf16.msra.mxu0 0
        %1145 = vmatpush.bf16.msra.mxu0 0
        %1146 = vmatpush.bf16.msra.mxu0 0
        %1147 = vmatpush.bf16.msra.mxu0 0
        %1148 = vmatpush.bf16.msra.mxu0 0
        %1149 = vmatpush.bf16.msra.mxu0 %v1017
        %1150 = vmatmul.bf16.gmra.mxu0 %v1098
        %v1151 = vpop.f32.mrf.mxu0
        %v1152 = vadd.f32 %v1138, %v1151
        %v1153 = vpop.f32.mrf.mxu0
        %v1154 = vadd.f32 %v1140, %v1153
        %1155 = vdwg.mxu0
        %1156 = vmatpush.bf16.msra.mxu0 %v1010
        %1157 = vmatpush.bf16.msra.mxu0 %v1002
        %1158 = vmatpush.bf16.msra.mxu0 %v994
        %1159 = vmatpush.bf16.msra.mxu0 %v986
        %1160 = vmatpush.bf16.msra.mxu0 %v978
        %1161 = vmatpush.bf16.msra.mxu0 %v970
        %1162 = vmatpush.bf16.msra.mxu0 %v962
        %1163 = vmatpush.bf16.msra.mxu0 %v954
        %1164 = vmatmul.bf16.gmra.mxu0 %v733
        %v1165 = vpop.f32.mrf.mxu0
        %v1166 = vadd.f32 0.0, %v1165
        %v1167 = vpop.f32.mrf.mxu0
        %v1168 = vadd.f32 0.0, %v1167
        %1169 = vdwg.mxu0
        %1170 = vmatpush.bf16.msra.mxu0 0
        %1171 = vmatpush.bf16.msra.mxu0 0
        %1172 = vmatpush.bf16.msra.mxu0 0
        %1173 = vmatpush.bf16.msra.mxu0 0
        %1174 = vmatpush.bf16.msra.mxu0 0
        %1175 = vmatpush.bf16.msra.mxu0 0
        %1176 = vmatpush.bf16.msra.mxu0 0
        %1177 = vmatpush.bf16.msra.mxu0 %v1018
        %1178 = vmatmul.bf16.gmra.mxu0 %v1098
        %v1179 = vpop.f32.mrf.mxu0
        %v1180 = vadd.f32 %v1166, %v1179
        %v1181 = vpop.f32.mrf.mxu0
        %v1182 = vadd.f32 %v1168, %v1181
        %1183 = vdwg.mxu0
        %1184 = vmatpush.bf16.msra.mxu0 %v1011
        %1185 = vmatpush.bf16.msra.mxu0 %v1003
        %1186 = vmatpush.bf16.msra.mxu0 %v995
        %1187 = vmatpush.bf16.msra.mxu0 %v987
        %1188 = vmatpush.bf16.msra.mxu0 %v979
        %1189 = vmatpush.bf16.msra.mxu0 %v971
        %1190 = vmatpush.bf16.msra.mxu0 %v963
        %1191 = vmatpush.bf16.msra.mxu0 %v955
        %1192 = vmatmul.bf16.gmra.mxu0 %v733
        %v1193 = vpop.f32.mrf.mxu0
        %v1194 = vadd.f32 0.0, %v1193
        %v1195 = vpop.f32.mrf.mxu0
        %v1196 = vadd.f32 0.0, %v1195
        %1197 = vdwg.mxu0
        %1198 = vmatpush.bf16.msra.mxu0 0
        %1199 = vmatpush.bf16.msra.mxu0 0
        %1200 = vmatpush.bf16.msra.mxu0 0
        %1201 = vmatpush.bf16.msra.mxu0 0
        %1202 = vmatpush.bf16.msra.mxu0 0
        %1203 = vmatpush.bf16.msra.mxu0 0
        %1204 = vmatpush.bf16.msra.mxu0 0
        %1205 = vmatpush.bf16.msra.mxu0 %v1019
        %1206 = vmatmul.bf16.gmra.mxu0 %v1098
        %v1207 = vpop.f32.mrf.mxu0
        %v1208 = vadd.f32 %v1194, %v1207
        %v1209 = vpop.f32.mrf.mxu0
        %v1210 = vadd.f32 %v1196, %v1209
        %1211 = vdwg.mxu0
        %1212 = vmatpush.bf16.msra.mxu0 %v1012
        %1213 = vmatpush.bf16.msra.mxu0 %v1004
        %1214 = vmatpush.bf16.msra.mxu0 %v996
        %1215 = vmatpush.bf16.msra.mxu0 %v988
        %1216 = vmatpush.bf16.msra.mxu0 %v980
        %1217 = vmatpush.bf16.msra.mxu0 %v972
        %1218 = vmatpush.bf16.msra.mxu0 %v964
        %1219 = vmatpush.bf16.msra.mxu0 %v956
        %1220 = vmatmul.bf16.gmra.mxu0 %v733
        %v1221 = vpop.f32.mrf.mxu0
        %v1222 = vadd.f32 0.0, %v1221
        %v1223 = vpop.f32.mrf.mxu0
        %v1224 = vadd.f32 0.0, %v1223
        %1225 = vdwg.mxu0
        %1226 = vmatpush.bf16.msra.mxu0 0
        %1227 = vmatpush.bf16.msra.mxu0 0
        %1228 = vmatpush.bf16.msra.mxu0 0
        %1229 = vmatpush.bf16.msra.mxu0 0
        %1230 = vmatpush.bf16.msra.mxu0 0
        %1231 = vmatpush.bf16.msra.mxu0 0
        %1232 = vmatpush.bf16.msra.mxu0 0
        %1233 = vmatpush.bf16.msra.mxu0 %v1020
        %1234 = vmatmul.bf16.gmra.mxu0 %v1098
        %v1235 = vpop.f32.mrf.mxu0
        %v1236 = vadd.f32 %v1222, %v1235
        %v1237 = vpop.f32.mrf.mxu0
        %v1238 = vadd.f32 %v1224, %v1237
        %1239 = vdwg.mxu0
        %1240 = vmatpush.bf16.msra.mxu0 %v1013
        %1241 = vmatpush.bf16.msra.mxu0 %v1005
        %1242 = vmatpush.bf16.msra.mxu0 %v997
        %1243 = vmatpush.bf16.msra.mxu0 %v989
        %1244 = vmatpush.bf16.msra.mxu0 %v981
        %1245 = vmatpush.bf16.msra.mxu0 %v973
        %1246 = vmatpush.bf16.msra.mxu0 %v965
        %1247 = vmatpush.bf16.msra.mxu0 %v957
        %1248 = vmatmul.bf16.gmra.mxu0 %v733
        %v1249 = vpop.f32.mrf.mxu0
        %v1250 = vadd.f32 0.0, %v1249
        %v1251 = vpop.f32.mrf.mxu0
        %v1252 = vadd.f32 0.0, %v1251
        %1253 = vdwg.mxu0
        %1254 = vmatpush.bf16.msra.mxu0 0
        %1255 = vmatpush.bf16.msra.mxu0 0
        %1256 = vmatpush.bf16.msra.mxu0 0
        %1257 = vmatpush.bf16.msra.mxu0 0
        %1258 = vmatpush.bf16.msra.mxu0 0
        %1259 = vmatpush.bf16.msra.mxu0 0
        %1260 = vmatpush.bf16.msra.mxu0 0
        %1261 = vmatpush.bf16.msra.mxu0 %v1021
        %1262 = vmatmul.bf16.gmra.mxu0 %v1098
        %v1263 = vpop.f32.mrf.mxu0
        %v1264 = vadd.f32 %v1250, %v1263
        %v1265 = vpop.f32.mrf.mxu0
        %v1266 = vadd.f32 %v1252, %v1265
        %1267 = vdwg.mxu0
        %1268 = vmatpush.bf16.msra.mxu0 %v1014
        %1269 = vmatpush.bf16.msra.mxu0 %v1006
        %1270 = vmatpush.bf16.msra.mxu0 %v998
        %1271 = vmatpush.bf16.msra.mxu0 %v990
        %1272 = vmatpush.bf16.msra.mxu0 %v982
        %1273 = vmatpush.bf16.msra.mxu0 %v974
        %1274 = vmatpush.bf16.msra.mxu0 %v966
        %1275 = vmatpush.bf16.msra.mxu0 %v958
        %1276 = vmatmul.bf16.gmra.mxu0 %v733
        %v1277 = vpop.f32.mrf.mxu0
        %v1278 = vadd.f32 0.0, %v1277
        %v1279 = vpop.f32.mrf.mxu0
        %v1280 = vadd.f32 0.0, %v1279
        %1281 = vdwg.mxu0
        %1282 = vmatpush.bf16.msra.mxu0 0
        %1283 = vmatpush.bf16.msra.mxu0 0
        %1284 = vmatpush.bf16.msra.mxu0 0
        %1285 = vmatpush.bf16.msra.mxu0 0
        %1286 = vmatpush.bf16.msra.mxu0 0
        %1287 = vmatpush.bf16.msra.mxu0 0
        %1288 = vmatpush.bf16.msra.mxu0 0
        %1289 = vmatpush.bf16.msra.mxu0 %v1022
        %1290 = vmatmul.bf16.gmra.mxu0 %v1098
        %v1291 = vpop.f32.mrf.mxu0
        %v1292 = vadd.f32 %v1278, %v1291
        %v1293 = vpop.f32.mrf.mxu0
        %v1294 = vadd.f32 %v1280, %v1293
        %1295 = vdwg.mxu0
        %1296 = vmatpush.bf16.msra.mxu0 %v1015
        %1297 = vmatpush.bf16.msra.mxu0 %v1007
        %1298 = vmatpush.bf16.msra.mxu0 %v999
        %1299 = vmatpush.bf16.msra.mxu0 %v991
        %1300 = vmatpush.bf16.msra.mxu0 %v983
        %1301 = vmatpush.bf16.msra.mxu0 %v975
        %1302 = vmatpush.bf16.msra.mxu0 %v967
        %1303 = vmatpush.bf16.msra.mxu0 %v959
        %1304 = vmatmul.bf16.gmra.mxu0 %v733
        %v1305 = vpop.f32.mrf.mxu0
        %v1306 = vadd.f32 0.0, %v1305
        %v1307 = vpop.f32.mrf.mxu0
        %v1308 = vadd.f32 0.0, %v1307
        %1309 = vdwg.mxu0
        %1310 = vmatpush.bf16.msra.mxu0 0
        %1311 = vmatpush.bf16.msra.mxu0 0
        %1312 = vmatpush.bf16.msra.mxu0 0
        %1313 = vmatpush.bf16.msra.mxu0 0
        %1314 = vmatpush.bf16.msra.mxu0 0
        %1315 = vmatpush.bf16.msra.mxu0 0
        %1316 = vmatpush.bf16.msra.mxu0 0
        %1317 = vmatpush.bf16.msra.mxu0 %v1023
        %1318 = vmatmul.bf16.gmra.mxu0 %v1098
        %v1319 = vpop.f32.mrf.mxu0
        %v1320 = vadd.f32 %v1306, %v1319
        %v1321 = vpop.f32.mrf.mxu0
        %v1322 = vadd.f32 %v1308, %v1321
        %1323 = vdwg.mxu0
        %v1332 = vrot.slane %v1152, 4
        %v1333 = vrot.slane %v1208, 4
        %v1334 = vrot.slane %v1264, 4
        %v1335 = vrot.slane %v1320, 4
        %vm1336 = vcmask 1043456
        %v1337 = vsel %vm1336, %v1124, %v1332
        %v1338 = vsel %vm1336, %v1180, %v1333
        %v1339 = vsel %vm1336, %v1236, %v1334
        %v1340 = vsel %vm1336, %v1292, %v1335
        %1345 = vst [vmem:[%s352] sm:$0xff] %v1337
        %1346 = vst [vmem:[%s352 + $0x8] sm:$0xff] %v1338
        %1347 = vst [vmem:[%s352 + $0x10] sm:$0xff] %v1339
        %1348 = vst [vmem:[%s352 + $0x18] sm:$0xff] %v1340
        %v1349 = vpack.c.bf16 %v1152, %v1124
        %v1350 = vpack.c.bf16 %v1208, %v1180
        %v1351 = vpack.c.bf16 %v1264, %v1236
        %v1352 = vpack.c.bf16 %v1320, %v1292
        %v1353 = vpack.c.bf16 %v1154, %v1126
        %v1354 = vpack.c.bf16 %v1210, %v1182
        %v1355 = vpack.c.bf16 %v1266, %v1238
        %v1356 = vpack.c.bf16 %v1322, %v1294
        %vm1365 = vcmask 1041408
        %vm1366 = vcmask 1045508
        %vm1367 = vmor %vm1365, %vm1366
        %v1368 = vrot.slane %v1349, 6
        %v1369 = vrot.slane %v1368, 4
        %v1370 = vrot.slane %v1353, 6
        %v1371 = vsel %vm1367, %v1369, %v1370
        %v1372 = vrot.slane %v1350, 6
        %v1373 = vrot.slane %v1372, 4
        %v1374 = vrot.slane %v1354, 6
        %v1375 = vsel %vm1367, %v1373, %v1374
        %v1376 = vrot.slane %v1351, 6
        %v1377 = vrot.slane %v1376, 4
        %v1378 = vrot.slane %v1355, 6
        %v1379 = vsel %vm1367, %v1377, %v1378
        %v1380 = vrot.slane %v1352, 6
        %v1381 = vrot.slane %v1380, 4
        %v1382 = vrot.slane %v1356, 6
        %v1383 = vsel %vm1367, %v1381, %v1382
        %v1384 = vrot.slane %v1370, 4
        %v1385 = vrot.slane %v1374, 4
        %v1386 = vrot.slane %v1378, 4
        %v1387 = vrot.slane %v1382, 4
        %1396 = vst [vmem:[%s331] sm:$0xff] %v1371
        %1397 = vst [vmem:[%s331 + $0x8] sm:$0xff] %v1375
        %1398 = vst [vmem:[%s331 + $0x10] sm:$0xff] %v1379
        %1399 = vst [vmem:[%s331 + $0x18] sm:$0xff] %v1383
        %1400 = vst [vmem:[%s331 + $0x20] sm:$0x33] %v1384
        %1401 = vst [vmem:[%s331 + $0x28] sm:$0x33] %v1385
        %1402 = vst [vmem:[%s331 + $0x30] sm:$0x33] %v1386
        %1403 = vst [vmem:[%s331 + $0x38] sm:$0x33] %v1387
        %v1404 = vld [vmem:[%s2] sm:$0x7]
        %v1405 = vld [vmem:[%s3] sm:$0x3f]
        %1407 = vset.pattern.permute.xlu0 0
        %1408 = vperm.xlu0 %1407, %v1405
        %v1409 = vpop.permute.xlu0 %1408
        %v1411 = vunpack.c.h.b16 %v366
        %v1412 = vunpack.c.l.b16 %v367
        %v1413 = vunpack.c.h.b16 %v367
        %v1414 = vunpack.c.l.b16 %v368
        %v1415 = vunpack.c.h.b16 %v368
        %v1416 = vunpack.c.l.b16 %v369
        %v1417 = vunpack.c.h.b16 %v369
        %v1418 = vunpack.c.l.b16 %v370
        %v1419 = vunpack.c.h.b16 %v370
        %v1420 = vunpack.c.h.b16 %v372
        %v1421 = vunpack.c.l.b16 %v373
        %v1422 = vunpack.c.h.b16 %v373
        %v1423 = vunpack.c.l.b16 %v374
        %v1424 = vunpack.c.h.b16 %v374
        %v1425 = vunpack.c.l.b16 %v375
        %v1426 = vunpack.c.h.b16 %v375
        %v1427 = vunpack.c.l.b16 %v376
        %v1428 = vunpack.c.h.b16 %v376
        %v1429 = vpack.c.b16 %v1420, %v1411
        %v1430 = vpack.c.b16 %v1421, %v1412
        %v1431 = vpack.c.b16 %v1422, %v1413
        %v1432 = vpack.c.b16 %v1423, %v1414
        %v1433 = vpack.c.b16 %v1424, %v1415
        %v1434 = vpack.c.b16 %v1425, %v1416
        %v1435 = vpack.c.b16 %v1426, %v1417
        %v1436 = vpack.c.b16 %v1427, %v1418
        %v1437 = vpack.c.b16 %v1428, %v1419
        %1438 = vrot.lane.b32.xlu0 %v1429, 127
        %v1439 = vpop.permute.xlu0 %1438
        %1440 = vrot.lane.b32.xlu0 %v1430, 127
        %v1441 = vpop.permute.xlu0 %1440
        %1442 = vrot.lane.b32.xlu0 %v1431, 127
        %v1443 = vpop.permute.xlu0 %1442
        %1444 = vrot.lane.b32.xlu0 %v1432, 127
        %v1445 = vpop.permute.xlu0 %1444
        %1446 = vrot.lane.b32.xlu0 %v1433, 127
        %v1447 = vpop.permute.xlu0 %1446
        %1448 = vrot.lane.b32.xlu0 %v1434, 127
        %v1449 = vpop.permute.xlu0 %1448
        %1450 = vrot.lane.b32.xlu0 %v1435, 127
        %v1451 = vpop.permute.xlu0 %1450
        %1452 = vrot.lane.b32.xlu0 %v1436, 127
        %v1453 = vpop.permute.xlu0 %1452
        %1454 = vrot.lane.b32.xlu0 %v1437, 127
        %v1455 = vpop.permute.xlu0 %1454
        %v1456 = vsel %vm436, %v1439, %v1441
        %v1457 = vsel %vm436, %v1441, %v1443
        %v1458 = vsel %vm436, %v1443, %v1445
        %v1459 = vsel %vm436, %v1445, %v1447
        %v1460 = vsel %vm436, %v1447, %v1449
        %v1461 = vsel %vm436, %v1449, %v1451
        %v1462 = vsel %vm436, %v1451, %v1453
        %v1463 = vsel %vm436, %v1453, %v1455
        %vm1464 = vcmask 97280
        %v1466 = vsel %vm1464, %v1404, 0
        %vm1468 = vcmask 1045504
        %v1470 = vsel %vm1468, %v1456, 0
        %v1473 = vsel %vm1468, %v1457, 0
        %v1476 = vsel %vm1468, %v1458, 0
        %v1479 = vsel %vm1468, %v1459, 0
        %v1482 = vsel %vm1468, %v1460, 0
        %v1485 = vsel %vm1468, %v1461, 0
        %v1488 = vsel %vm1468, %v1462, 0
        %v1491 = vsel %vm1468, %v1463, 0
        %1493 = vmatpush.bf16.msra.mxu0 0
        %1494 = vmatpush.bf16.msra.mxu0 0
        %1495 = vmatpush.bf16.msra.mxu0 0
        %1496 = vmatpush.bf16.msra.mxu0 0
        %1497 = vmatpush.bf16.msra.mxu0 0
        %1498 = vmatpush.bf16.msra.mxu0 0
        %1499 = vmatpush.bf16.msra.mxu0 0
        %1500 = vmatpush.bf16.msra.mxu0 %v1470
        %1501 = vmatmul.bf16.gmra.mxu0 %v1466
        %v1502 = vpop.f32.mrf.mxu0
        %v1503 = vadd.f32 %v1409, %v1502
        %v1504 = vpop.f32.mrf.mxu0
        %1505 = vdwg.mxu0
        %1506 = vmatpush.bf16.msra.mxu0 0
        %1507 = vmatpush.bf16.msra.mxu0 0
        %1508 = vmatpush.bf16.msra.mxu0 0
        %1509 = vmatpush.bf16.msra.mxu0 0
        %1510 = vmatpush.bf16.msra.mxu0 0
        %1511 = vmatpush.bf16.msra.mxu0 0
        %1512 = vmatpush.bf16.msra.mxu0 0
        %1513 = vmatpush.bf16.msra.mxu0 %v1473
        %1514 = vmatmul.bf16.gmra.mxu0 %v1466
        %v1515 = vpop.f32.mrf.mxu0
        %v1516 = vadd.f32 %v1409, %v1515
        %v1517 = vpop.f32.mrf.mxu0
        %1518 = vdwg.mxu0
        %1519 = vmatpush.bf16.msra.mxu0 0
        %1520 = vmatpush.bf16.msra.mxu0 0
        %1521 = vmatpush.bf16.msra.mxu0 0
        %1522 = vmatpush.bf16.msra.mxu0 0
        %1523 = vmatpush.bf16.msra.mxu0 0
        %1524 = vmatpush.bf16.msra.mxu0 0
        %1525 = vmatpush.bf16.msra.mxu0 0
        %1526 = vmatpush.bf16.msra.mxu0 %v1476
        %1527 = vmatmul.bf16.gmra.mxu0 %v1466
        %v1528 = vpop.f32.mrf.mxu0
        %v1529 = vadd.f32 %v1409, %v1528
        %v1530 = vpop.f32.mrf.mxu0
        %1531 = vdwg.mxu0
        %1532 = vmatpush.bf16.msra.mxu0 0
        %1533 = vmatpush.bf16.msra.mxu0 0
        %1534 = vmatpush.bf16.msra.mxu0 0
        %1535 = vmatpush.bf16.msra.mxu0 0
        %1536 = vmatpush.bf16.msra.mxu0 0
        %1537 = vmatpush.bf16.msra.mxu0 0
        %1538 = vmatpush.bf16.msra.mxu0 0
        %1539 = vmatpush.bf16.msra.mxu0 %v1479
        %1540 = vmatmul.bf16.gmra.mxu0 %v1466
        %v1541 = vpop.f32.mrf.mxu0
        %v1542 = vadd.f32 %v1409, %v1541
        %v1543 = vpop.f32.mrf.mxu0
        %1544 = vdwg.mxu0
        %1545 = vmatpush.bf16.msra.mxu0 0
        %1546 = vmatpush.bf16.msra.mxu0 0
        %1547 = vmatpush.bf16.msra.mxu0 0
        %1548 = vmatpush.bf16.msra.mxu0 0
        %1549 = vmatpush.bf16.msra.mxu0 0
        %1550 = vmatpush.bf16.msra.mxu0 0
        %1551 = vmatpush.bf16.msra.mxu0 0
        %1552 = vmatpush.bf16.msra.mxu0 %v1482
        %1553 = vmatmul.bf16.gmra.mxu0 %v1466
        %v1554 = vpop.f32.mrf.mxu0
        %v1555 = vadd.f32 %v1409, %v1554
        %v1556 = vpop.f32.mrf.mxu0
        %1557 = vdwg.mxu0
        %1558 = vmatpush.bf16.msra.mxu0 0
        %1559 = vmatpush.bf16.msra.mxu0 0
        %1560 = vmatpush.bf16.msra.mxu0 0
        %1561 = vmatpush.bf16.msra.mxu0 0
        %1562 = vmatpush.bf16.msra.mxu0 0
        %1563 = vmatpush.bf16.msra.mxu0 0
        %1564 = vmatpush.bf16.msra.mxu0 0
        %1565 = vmatpush.bf16.msra.mxu0 %v1485
        %1566 = vmatmul.bf16.gmra.mxu0 %v1466
        %v1567 = vpop.f32.mrf.mxu0
        %v1568 = vadd.f32 %v1409, %v1567
        %v1569 = vpop.f32.mrf.mxu0
        %1570 = vdwg.mxu0
        %1571 = vmatpush.bf16.msra.mxu0 0
        %1572 = vmatpush.bf16.msra.mxu0 0
        %1573 = vmatpush.bf16.msra.mxu0 0
        %1574 = vmatpush.bf16.msra.mxu0 0
        %1575 = vmatpush.bf16.msra.mxu0 0
        %1576 = vmatpush.bf16.msra.mxu0 0
        %1577 = vmatpush.bf16.msra.mxu0 0
        %1578 = vmatpush.bf16.msra.mxu0 %v1488
        %1579 = vmatmul.bf16.gmra.mxu0 %v1466
        %v1580 = vpop.f32.mrf.mxu0
        %v1581 = vadd.f32 %v1409, %v1580
        %v1582 = vpop.f32.mrf.mxu0
        %1583 = vdwg.mxu0
        %1584 = vmatpush.bf16.msra.mxu0 0
        %1585 = vmatpush.bf16.msra.mxu0 0
        %1586 = vmatpush.bf16.msra.mxu0 0
        %1587 = vmatpush.bf16.msra.mxu0 0
        %1588 = vmatpush.bf16.msra.mxu0 0
        %1589 = vmatpush.bf16.msra.mxu0 0
        %1590 = vmatpush.bf16.msra.mxu0 0
        %1591 = vmatpush.bf16.msra.mxu0 %v1491
        %1592 = vmatmul.bf16.gmra.mxu0 %v1466
        %v1593 = vpop.f32.mrf.mxu0
        %v1594 = vadd.f32 %v1409, %v1593
        %v1595 = vpop.f32.mrf.mxu0
        %1596 = vdwg.mxu0
        %v1597 = vmax.f32 %v1503, 0.0
        %v1598 = vmax.f32 %v1516, 0.0
        %v1599 = vmax.f32 %v1529, 0.0
        %v1600 = vmax.f32 %v1542, 0.0
        %v1601 = vmax.f32 %v1555, 0.0
        %v1602 = vmax.f32 %v1568, 0.0
        %v1603 = vmax.f32 %v1581, 0.0
        %v1604 = vmax.f32 %v1594, 0.0
        %v1605 = vpack.c.bf16 %v1598, %v1597
        %v1606 = vpack.c.bf16 %v1600, %v1599
        %v1607 = vpack.c.bf16 %v1602, %v1601
        %v1608 = vpack.c.bf16 %v1604, %v1603
        %1609 = vst [vmem:[%s363] sm:$0x77] %v1605
        %1610 = vst [vmem:[%s363 + $0x8] sm:$0x77] %v1606
        %1611 = vst [vmem:[%s363 + $0x10] sm:$0x77] %v1607
        %1612 = vst [vmem:[%s363 + $0x18] sm:$0x77] %v1608
        %s1613 = smul.u32 8, %s23
        %p1614 = scmp.lt.s32.totalorder %s22, 1
        %s1615 = scalar_select %p1614, %s22, 1
        %p1616 = scmp.lt.s32.totalorder %s1613, 15
        %s1617 = scalar_select %p1616, %s1613, 15
        %s1618 = smul.addr %s1615, 16
        %s1619 = sadd.s32 %s1617, %s1618
        %s1620 = smul.addr %s1619, 4
        %s1621 = scalar_lea.vmem %s4, %s1620
        %s1622 = sand.u32 %s159, 1
        %s1623 = sand.u32 %s159, 1
        %s1624 = smul.addr %s1623, 64
        %s1625 = scalar_lea.vmem [#allocation4], %s1624
        %s1626 = smul.u32 8, %s23
        %p1627 = scmp.lt.s32.totalorder %s22, 1
        %s1628 = scalar_select %p1627, %s22, 1
        %p1629 = scmp.lt.s32.totalorder %s1626, 15
        %s1630 = scalar_select %p1629, %s1626, 15
        %s1631 = smul.addr %s1628, 16
        %s1632 = sadd.s32 %s1630, %s1631
        %s1633 = smul.addr %s1632, 4
        %s1634 = scalar_lea.vmem %s6, %s1633
        // Predicated region
        $region63: #{ffc_forward.3} parent=57 // pred_check
          %p1635 = pneg %p141
        $region64: #{ffc_forward.3} parent=57 // pred_check_branch
          %1637 = sbr.rel (%p1635) target = $region66
        $region65: #{ffc_forward.3} parent=57 // pred_region
          %s1638 = smul.u32 8, %s23
        $region66: #{ffc_forward.3} parent=57 // pred_fallthru
          _
        // Predicated region
        $region67: #{ffc_forward.3} parent=57 // pred_check
          %p1639 = pneg %p169
        $region68: #{ffc_forward.3} parent=57 // pred_check_branch
          %1641 = sbr.rel (%p1639) target = $region70
        $region69: #{ffc_forward.3} parent=57 // pred_region
          %s1642 = smul.u32 8, %s23
          %s1643 = smul.addr %s22, 32
          %s1644 = sadd.s32 %s1642, %s1643
          %s1645 = smul.addr %s1644, 4
          %s1646 = scalar_lea.vmem %s5, %s1645
          // Predicated region
          $region71: #{ffc_forward.3} parent=69 // pred_check
            _
          $region72: #{ffc_forward.3} parent=69 // pred_check_branch
            %1648 = sbr.rel (0) target = $region74
          $region73: #{ffc_forward.3} parent=69 // pred_region
            // Predicated region
            $region75: #{ffc_forward.3} parent=73 // pred_check
              _
            $region76: #{ffc_forward.3} parent=73 // pred_check_branch
              %1650 = sbr.rel (0) target = $region78
            $region77: #{ffc_forward.3} parent=73 // pred_region
              loop: start=0, step=1, limit=1
              $region79: #{ffc_forward.3} parent=77 // loop_pre_header
                _
              $region80: #{ffc_forward.3} parent=77 // loop_header
                %s1652 = sphi 0, %s1656
                %p1653 = scmp.ge.s32.totalorder %s1652, 1
                %s1657 = sphi %s1625, %s1625
                %s1658 = sphi %s1646, %s1646
              $region81: #{ffc_forward.3} parent=77 // loop_header_branch
                %1655 = sbr.rel (%p1653) target = $region85
              $region82: #{ffc_forward.3} parent=77 // loop_body
                %v1659 = vld [vmem:[%s1657] sm:$0xff]
                %1660 = vst [vmem:[%s1658] sm:$0xff] %v1659
                %v1661 = vld [vmem:[%s1657 + $0x8] sm:$0xff]
                %1662 = vst [vmem:[%s1658 + $0x8] sm:$0xff] %v1661
                %v1663 = vld [vmem:[%s1657 + $0x10] sm:$0xff]
                %1664 = vst [vmem:[%s1658 + $0x10] sm:$0xff] %v1663
                %v1665 = vld [vmem:[%s1657 + $0x18] sm:$0xff]
                %1666 = vst [vmem:[%s1658 + $0x18] sm:$0xff] %v1665
                %v1667 = vld [vmem:[%s1657 + $0x20] sm:$0xff]
                %1668 = vst [vmem:[%s1658 + $0x40] sm:$0xff] %v1667
                %v1669 = vld [vmem:[%s1657 + $0x28] sm:$0xff]
                %1670 = vst [vmem:[%s1658 + $0x48] sm:$0xff] %v1669
                %v1671 = vld [vmem:[%s1657 + $0x30] sm:$0xff]
                %1672 = vst [vmem:[%s1658 + $0x50] sm:$0xff] %v1671
                %v1673 = vld [vmem:[%s1657 + $0x38] sm:$0xff]
                %1674 = vst [vmem:[%s1658 + $0x58] sm:$0xff] %v1673
              $region83: #{ffc_forward.3} parent=77 // loop_footer
                %s1656 = sadd.s32 1, %s1652
              $region84: #{ffc_forward.3} parent=77 // loop_footer_branch
                %1651 = sbr.rel target = $region80
              $region85: #{ffc_forward.3} parent=77 // loop_exit
                _
            $region78: #{ffc_forward.3} parent=73 // pred_fallthru
              _
            // Predicated region
            $region86: #{ffc_forward.3} parent=73 // pred_check
              _
            $region87: #{ffc_forward.3} parent=73 // pred_check_branch
              %1676 = sbr.rel target = $region89
            $region88: #{ffc_forward.3} parent=73 // pred_region
              _
            $region89: #{ffc_forward.3} parent=73 // pred_fallthru
              _
          $region74: #{ffc_forward.3} parent=69 // pred_fallthru
            _
          %1677 = vnop
        $region70: #{ffc_forward.3} parent=57 // pred_fallthru
          _
        // Predicated region
        $region90: #{ffc_forward.3} parent=57 // pred_check
          %p1678 = pneg %p197
        $region91: #{ffc_forward.3} parent=57 // pred_check_branch
          %1680 = sbr.rel (%p1678) target = $region93
        $region92: #{ffc_forward.3} parent=57 // pred_region
          %s1681 = smul.u32 8, %s23
        $region93: #{ffc_forward.3} parent=57 // pred_fallthru
          _
      $region58: #{ffc_forward.3} parent=5 // pred_fallthru
        _
      %p1682 = scmp.le.s32.totalorder 2, %s13
      // Predicated region
      $region94: #{ffc_forward.3} parent=5 // pred_check
        %p1683 = pneg %p1682
      $region95: #{ffc_forward.3} parent=5 // pred_check_branch
        %1685 = sbr.rel (%p1683) target = $region97
      $region96: #{ffc_forward.3} parent=5 // pred_region
        %s1686 = ssub.s32 %s13, 2
        // Predicated region
        $region98: #{ffc_forward.3} parent=96 // pred_check
          %p1687 = pneg %p147
        $region99: #{ffc_forward.3} parent=96 // pred_check_branch
          %1689 = sbr.rel (%p1687) target = $region101
        $region100: #{ffc_forward.3} parent=96 // pred_region
          %s1690 = smul.u32 8, %s25
          %p1691 = scmp.lt.s32.totalorder %s24, 1
          %s1692 = scalar_select %p1691, %s24, 1
          %p1693 = scmp.lt.s32.totalorder %s1690, 15
          %s1694 = scalar_select %p1693, %s1690, 15
          %s1695 = smul.addr %s1692, 16
          %s1696 = sadd.s32 %s1694, %s1695
          %s1697 = smul.addr %s1696, 4
          %s1698 = scalar_lea.vmem %s4, %s1697
        $region101: #{ffc_forward.3} parent=96 // pred_fallthru
          _
        // Predicated region
        $region102: #{ffc_forward.3} parent=96 // pred_check
          %p1699 = pneg %p175
        $region103: #{ffc_forward.3} parent=96 // pred_check_branch
          %1701 = sbr.rel (%p1699) target = $region105
        $region104: #{ffc_forward.3} parent=96 // pred_region
          %s1702 = sand.u32 %s160, 1
          %s1703 = sand.u32 %s160, 1
          %s1704 = smul.addr %s1703, 64
          %s1705 = scalar_lea.vmem [#allocation4], %s1704
        $region105: #{ffc_forward.3} parent=96 // pred_fallthru
          _
        // Predicated region
        $region106: #{ffc_forward.3} parent=96 // pred_check
          %p1706 = pneg %p203
        $region107: #{ffc_forward.3} parent=96 // pred_check_branch
          %1708 = sbr.rel (%p1706) target = $region109
        $region108: #{ffc_forward.3} parent=96 // pred_region
          %s1709 = smul.u32 8, %s25
          %p1710 = scmp.lt.s32.totalorder %s24, 1
          %s1711 = scalar_select %p1710, %s24, 1
          %p1712 = scmp.lt.s32.totalorder %s1709, 15
          %s1713 = scalar_select %p1712, %s1709, 15
          %s1714 = smul.addr %s1711, 16
          %s1715 = sadd.s32 %s1713, %s1714
          %s1716 = smul.addr %s1715, 4
          %s1717 = scalar_lea.vmem %s6, %s1716
        $region109: #{ffc_forward.3} parent=96 // pred_fallthru
          _
      $region97: #{ffc_forward.3} parent=5 // pred_fallthru
        _
    $region6: #{ffc_forward.3} parent=1 // loop_footer
      %s17 = sadd.s32 1, %s13
    $region7: #{ffc_forward.3} parent=1 // loop_footer_branch
      %12 = sbr.rel target = $region3
    $region8: #{ffc_forward.3} parent=1 // loop_exit
      _

// kernel: ffc_forward.4
$region0: #{ffc_forward.4}
  #allocation0 [shape = 'u32[]', space=smem, size = 0x4, offset = 0x4, fixed_abs, tag = 'smem constant byte address 0x4 - core index']
  #allocation1 [shape = 'u32[72,128]{1,0:T(1,128)}', space=vmem, size = 0x9000, scoped, tag = 'internal scratch']
  %s0 = inlined_call_operand.vmem [shape: bf16[2,12,256], index: 0, kind: input, shape index: {}]
  %s1 = inlined_call_operand.vmem [shape: bf16[12,12], index: 1, kind: input, shape index: {}]
  %s2 = inlined_call_operand.vmem [shape: f32[12,1], index: 2, kind: input, shape index: {}]
  %s3 = inlined_call_operand.vmem [shape: f32[2,12,256], index: 3, kind: output, shape index: {}]
  %s4 = sld [smem:[#allocation0]]
  $region45: #{ffc_forward.4} parent=0
    _
  %s6 = ssub.s32 1, %s4
  %s7 = scalar_select 0, %s6, %s4
  loop: start=0, step=1, limit=4
  $region2: #{ffc_forward.4} parent=0 // loop_pre_header
    _
  $region3: #{ffc_forward.4} parent=0 // loop_header
    %s9 = sphi 0, %s13
    %p10 = scmp.ge.s32.totalorder %s9, 4
    %s19 = sphi 0, %s21
    %s22 = sphi 0, %s19
    %s23 = sphi 0, %s22
    %s39 = sphi 0, %s23
    %s43 = sphi 0, %s43
    %s45 = sphi 0, %s43
    %s46 = sphi 0, %s45
    %s60 = sphi 0, %s46
    %s64 = sphi 0, %s64
    %s66 = sphi 0, %s64
    %s67 = sphi 0, %s66
    %s81 = sphi 0, %s67
    %s87 = sphi 0, %s89
    %s90 = sphi 0, %s87
    %s91 = sphi 0, %s90
    %s107 = sphi 0, %s91
  $region4: #{ffc_forward.4} parent=0 // loop_header_branch
    %12 = sbr.rel (%p10) target = $region8
  $region5: #{ffc_forward.4} parent=0 // loop_body
    %s14 = ssub.s32 %s9, 1
    %s15 = ssub.s32 %s9, 2
    %s16 = sadd.s32 %s9, 1
    %s17 = ssub.s32 %s9, %s16
    %p18 = scmp.eq.s32.totalorder %s17, 0
    %s20 = sadd.s32 %s19, 1
    %s21 = scalar_select %p18, %s19, %s20
    %p24 = pneg %p18
    %p25 = scmp.eq.s32.totalorder %s9, 1
    %p26 = por %p24, %p25
    %p27 = scmp.ne.s32.totalorder %s19, %s22
    %p28 = scmp.eq.s32.totalorder %s9, 0
    %p29 = por %p27, %p28
    %p30 = scmp.ne.s32.totalorder %s19, %s22
    %p31 = scmp.eq.s32.totalorder %s14, 1
    %p32 = por %p30, %p31
    %p33 = scmp.ne.s32.totalorder %s22, %s23
    %p34 = scmp.eq.s32.totalorder %s14, 0
    %p35 = por %p33, %p34
    %p36 = scmp.ne.s32.totalorder %s22, %s23
    %p37 = scmp.eq.s32.totalorder %s15, 1
    %p38 = por %p36, %p37
    %p40 = scmp.ne.s32.totalorder %s23, %s39
    %p41 = scmp.eq.s32.totalorder %s15, 0
    %p42 = por %p40, %p41
    %s44 = sadd.s32 %s43, 1
    %p47 = scmp.eq.s32.totalorder %s9, 1
    %p48 = scmp.ne.s32.totalorder %s43, %s45
    %p49 = scmp.eq.s32.totalorder %s9, 0
    %p50 = por %p48, %p49
    %p51 = scmp.ne.s32.totalorder %s43, %s45
    %p52 = scmp.eq.s32.totalorder %s14, 1
    %p53 = por %p51, %p52
    %p54 = scmp.ne.s32.totalorder %s45, %s46
    %p55 = scmp.eq.s32.totalorder %s14, 0
    %p56 = por %p54, %p55
    %p57 = scmp.ne.s32.totalorder %s45, %s46
    %p58 = scmp.eq.s32.totalorder %s15, 1
    %p59 = por %p57, %p58
    %p61 = scmp.ne.s32.totalorder %s46, %s60
    %p62 = scmp.eq.s32.totalorder %s15, 0
    %p63 = por %p61, %p62
    %s65 = sadd.s32 %s64, 1
    %p68 = scmp.eq.s32.totalorder %s9, 1
    %p69 = scmp.ne.s32.totalorder %s64, %s66
    %p70 = scmp.eq.s32.totalorder %s9, 0
    %p71 = por %p69, %p70
    %p72 = scmp.ne.s32.totalorder %s64, %s66
    %p73 = scmp.eq.s32.totalorder %s14, 1
    %p74 = por %p72, %p73
    %p75 = scmp.ne.s32.totalorder %s66, %s67
    %p76 = scmp.eq.s32.totalorder %s14, 0
    %p77 = por %p75, %p76
    %p78 = scmp.ne.s32.totalorder %s66, %s67
    %p79 = scmp.eq.s32.totalorder %s15, 1
    %p80 = por %p78, %p79
    %p82 = scmp.ne.s32.totalorder %s67, %s81
    %p83 = scmp.eq.s32.totalorder %s15, 0
    %p84 = por %p82, %p83
    %s85 = ssub.s32 %s9, %s16
    %p86 = scmp.eq.s32.totalorder %s85, 0
    %s88 = sadd.s32 %s87, 1
    %s89 = scalar_select %p86, %s87, %s88
    %p92 = pneg %p86
    %p93 = scmp.eq.s32.totalorder %s9, 1
    %p94 = por %p92, %p93
    %p95 = scmp.ne.s32.totalorder %s87, %s90
    %p96 = scmp.eq.s32.totalorder %s9, 0
    %p97 = por %p95, %p96
    %p98 = scmp.ne.s32.totalorder %s87, %s90
    %p99 = scmp.eq.s32.totalorder %s14, 1
    %p100 = por %p98, %p99
    %p101 = scmp.ne.s32.totalorder %s90, %s91
    %p102 = scmp.eq.s32.totalorder %s14, 0
    %p103 = por %p101, %p102
    %p104 = scmp.ne.s32.totalorder %s90, %s91
    %p105 = scmp.eq.s32.totalorder %s15, 1
    %p106 = por %p104, %p105
    %p108 = scmp.ne.s32.totalorder %s91, %s107
    %p109 = scmp.eq.s32.totalorder %s15, 0
    %p110 = por %p108, %p109
    %p111 = scmp.le.s32.totalorder 1, %s9
    %p112 = scmp.lt.s32.totalorder %s9, 3
    %p113 = pnand %p111, %p112
    %p114 = pneg %p113
    // Predicated region
    $region9: #{ffc_forward.4} parent=5 // pred_check
      _
    $region10: #{ffc_forward.4} parent=5 // pred_check_branch
      %116 = sbr.rel (%p113) target = $region12
    $region11: #{ffc_forward.4} parent=5 // pred_region
      %s117 = ssub.s32 %s9, 1
      // Predicated region
      $region13: #{ffc_forward.4} parent=11 // pred_check
        %p118 = pneg %p56
      $region14: #{ffc_forward.4} parent=11 // pred_check_branch
        %120 = sbr.rel (%p118) target = $region16
      $region15: #{ffc_forward.4} parent=11 // pred_region
        _
      $region16: #{ffc_forward.4} parent=11 // pred_fallthru
        _
      // Predicated region
      $region17: #{ffc_forward.4} parent=11 // pred_check
        %p121 = pneg %p77
      $region18: #{ffc_forward.4} parent=11 // pred_check_branch
        %123 = sbr.rel (%p121) target = $region20
      $region19: #{ffc_forward.4} parent=11 // pred_region
        _
      $region20: #{ffc_forward.4} parent=11 // pred_fallthru
        _
    $region12: #{ffc_forward.4} parent=5 // pred_fallthru
      _
    %p124 = scmp.lt.s32.totalorder %s9, 2
    // Predicated region
    $region21: #{ffc_forward.4} parent=5 // pred_check
      %p125 = pneg %p124
    $region22: #{ffc_forward.4} parent=5 // pred_check_branch
      %127 = sbr.rel (%p125) target = $region24
    $region23: #{ffc_forward.4} parent=5 // pred_region
      // Predicated region
      $region25: #{ffc_forward.4} parent=23 // pred_check
        %p128 = pneg %p29
      $region26: #{ffc_forward.4} parent=23 // pred_check_branch
        %130 = sbr.rel (%p128) target = $region28
      $region27: #{ffc_forward.4} parent=23 // pred_region
        %p131 = scmp.lt.s32.totalorder %s9, 1
        %s132 = scalar_select %p131, %s9, 1
        %s133 = smul.addr %s132, 4
        %s134 = smul.addr %s133, 4
        %s135 = scalar_lea.vmem %s0, %s134
      $region28: #{ffc_forward.4} parent=23 // pred_fallthru
        _
    $region24: #{ffc_forward.4} parent=5 // pred_fallthru
      _
    %p136 = scmp.le.s32.totalorder 1, %s9
    %p137 = scmp.lt.s32.totalorder %s9, 3
    %p138 = pnand %p136, %p137
    %p139 = pneg %p138
    // Predicated region
    $region29: #{ffc_forward.4} parent=5 // pred_check
      _
    $region30: #{ffc_forward.4} parent=5 // pred_check_branch
      %141 = sbr.rel (%p138) target = $region32
    $region31: #{ffc_forward.4} parent=5 // pred_region
      %s142 = ssub.s32 %s9, 1
      %p143 = scmp.lt.s32.totalorder %s14, 1
      %s144 = scalar_select %p143, %s14, 1
      %s145 = smul.addr %s144, 4
      %s146 = smul.addr %s145, 4
      %s147 = scalar_lea.vmem %s0, %s146
      %p148 = pneg %p35
      %p149 = pneg %p32
      %p150 = pneg %p56
      %p151 = pneg %p53
      %p152 = pneg %p77
      %p153 = pneg %p74
      %p154 = pneg %p103
      %p155 = pneg %p100
      %p156 = scmp.lt.s32.totalorder %s14, 1
      %s157 = scalar_select %p156, %s14, 1
      %s158 = smul.addr %s157, 4
      %s159 = smul.addr %s158, 8
      %s160 = scalar_lea.vmem %s3, %s159
      %p161 = scmp.lt.s32.totalorder %s14, 1
      %s162 = scalar_select %p161, %s14, 1
      %s163 = smul.addr %s162, 4
      %s164 = smul.addr %s163, 4
      %s165 = scalar_lea.vmem %s0, %s164
      %p166 = scmp.lt.s32.totalorder %s14, 1
      %s167 = scalar_select %p166, %s14, 1
      %s168 = smul.addr %s167, 4
      %s169 = smul.addr %s168, 8
      %s170 = scalar_lea.vmem %s3, %s169
      %v172 = vld [vmem:[%s1] sm:$0xf]
      %v173 = vld [vmem:[%s1 + $0x4] sm:$0x3]
      %v174 = vld [vmem:[%s165] sm:$0xff]
      %v175 = vld [vmem:[%s165 + $0x8] sm:$0x33]
      %v176 = vld [vmem:[%s2] sm:$0xff]
      %v177 = vld [vmem:[%s2 + $0x8] sm:$0xf]
      %179 = vset.pattern.permute.xlu0 0
      %180 = vperm.xlu0 %179, %v176
      %v181 = vpop.permute.xlu0 %180
      %184 = vset.pattern.permute.xlu0 0
      %185 = vperm.xlu0 %184, %v177
      %v186 = vpop.permute.xlu0 %185
      %v190 = vunpack.c.l.b16 %v172
      %v191 = vunpack.c.l.b16 %v173
      %v192 = vpack.c.b16 %v191, %v190
      %v195 = vunpack.c.l.b16 %v174
      %v196 = vunpack.c.h.b16 %v174
      %v197 = vunpack.c.l.b16 %v175
      %v198 = vunpack.c.h.b16 %v175
      %v199 = vpack.c.b16 %v197, %v195
      %v200 = vpack.c.b16 %v198, %v196
      %vm201 = vcmask 97280
      %v203 = vsel %vm201, %v192, 0
      %vm205 = vcmask 1045504
      %v207 = vsel %vm205, %v199, 0
      %v210 = vsel %vm205, %v200, 0
      %212 = vmatpush.bf16.msra.mxu0 0
      %213 = vmatpush.bf16.msra.mxu0 0
      %214 = vmatpush.bf16.msra.mxu0 0
      %215 = vmatpush.bf16.msra.mxu0 0
      %216 = vmatpush.bf16.msra.mxu0 0
      %217 = vmatpush.bf16.msra.mxu0 0
      %218 = vmatpush.bf16.msra.mxu0 0
      %219 = vmatpush.bf16.msra.mxu0 %v207
      %220 = vmatmul.bf16.gmra.mxu0 %v203
      %v221 = vpop.f32.mrf.mxu0
      %v222 = vadd.f32 %v181, %v221
      %v223 = vpop.f32.mrf.mxu0
      %v224 = vadd.f32 %v186, %v223
      %225 = vdwg.mxu0
      %226 = vmatpush.bf16.msra.mxu0 0
      %227 = vmatpush.bf16.msra.mxu0 0
      %228 = vmatpush.bf16.msra.mxu0 0
      %229 = vmatpush.bf16.msra.mxu0 0
      %230 = vmatpush.bf16.msra.mxu0 0
      %231 = vmatpush.bf16.msra.mxu0 0
      %232 = vmatpush.bf16.msra.mxu0 0
      %233 = vmatpush.bf16.msra.mxu0 %v210
      %234 = vmatmul.bf16.gmra.mxu0 %v203
      %v235 = vpop.f32.mrf.mxu0
      %v236 = vadd.f32 %v181, %v235
      %v237 = vpop.f32.mrf.mxu0
      %v238 = vadd.f32 %v186, %v237
      %239 = vdwg.mxu0
      %v240 = vmax.f32 %v222, 0.0
      %v241 = vmax.f32 %v236, 0.0
      %v242 = vmax.f32 %v224, 0.0
      %v243 = vmax.f32 %v238, 0.0
      %244 = vst [vmem:[%s170] sm:$0xff] %v240
      %245 = vst [vmem:[%s170 + $0x8] sm:$0xff] %v241
      %246 = vst [vmem:[%s170 + $0x10] sm:$0xf] %v242
      %247 = vst [vmem:[%s170 + $0x18] sm:$0xf] %v243
      %p248 = scmp.lt.s32.totalorder %s14, 1
      %s249 = scalar_select %p248, %s14, 1
      %s250 = smul.addr %s249, 4
      %s251 = smul.addr %s250, 8
      %s252 = scalar_lea.vmem %s3, %s251
      // Predicated region
      $region33: #{ffc_forward.4} parent=31 // pred_check
        %p253 = pneg %p100
      $region34: #{ffc_forward.4} parent=31 // pred_check_branch
        %255 = sbr.rel (%p253) target = $region36
      $region35: #{ffc_forward.4} parent=31 // pred_region
        _
      $region36: #{ffc_forward.4} parent=31 // pred_fallthru
        _
    $region32: #{ffc_forward.4} parent=5 // pred_fallthru
      _
    %p256 = scmp.le.s32.totalorder 2, %s9
    // Predicated region
    $region37: #{ffc_forward.4} parent=5 // pred_check
      %p257 = pneg %p256
    $region38: #{ffc_forward.4} parent=5 // pred_check_branch
      %259 = sbr.rel (%p257) target = $region40
    $region39: #{ffc_forward.4} parent=5 // pred_region
      %s260 = ssub.s32 %s9, 2
      // Predicated region
      $region41: #{ffc_forward.4} parent=39 // pred_check
        %p261 = pneg %p106
      $region42: #{ffc_forward.4} parent=39 // pred_check_branch
        %263 = sbr.rel (%p261) target = $region44
      $region43: #{ffc_forward.4} parent=39 // pred_region
        %p264 = scmp.lt.s32.totalorder %s15, 1
        %s265 = scalar_select %p264, %s15, 1
        %s266 = smul.addr %s265, 4
        %s267 = smul.addr %s266, 8
        %s268 = scalar_lea.vmem %s3, %s267
      $region44: #{ffc_forward.4} parent=39 // pred_fallthru
        _
    $region40: #{ffc_forward.4} parent=5 // pred_fallthru
      _
  $region6: #{ffc_forward.4} parent=0 // loop_footer
    %s13 = sadd.s32 1, %s9
  $region7: #{ffc_forward.4} parent=0 // loop_footer_branch
    %8 = sbr.rel target = $region3
  $region8: #{ffc_forward.4} parent=0 // loop_exit
    _

// kernel: reverse.0
$region0: #{reverse.0}
  %s0 = inlined_call_operand.vmem [shape: f32[2,6,16,7], index: 0, kind: input, shape index: {}]
  %s1 = inlined_call_operand.vmem [shape: f32[2,6,16,7], index: 1, kind: output, shape index: {}]
  $region1: #{reverse.0} parent=0
    #allocation0 [shape = 'u8[98304]{0}', space=vmem, size = 0x18000, scoped, tag = 'operand span for operand 0']
    #allocation1 [shape = 'u8[49152]{0}', space=vmem, size = 0xc000, scoped, tag = 'operand span for operand 1']
    %s2 = scalar_lea.vmem [#allocation0], 8
    // Predicated region
    $region2: #{reverse.0} parent=1 // pred_check
      _
    $region3: #{reverse.0} parent=1 // pred_check_branch
      %4 = sbr.rel (0) target = $region5
    $region4: #{reverse.0} parent=1 // pred_region
      // Predicated region
      $region6: #{reverse.0} parent=4 // pred_check
        _
      $region7: #{reverse.0} parent=4 // pred_check_branch
        %6 = sbr.rel (0) target = $region9
      $region8: #{reverse.0} parent=4 // pred_region
        // Predicated region
        $region21: #{reverse.0} parent=8 // pred_check
          _
        $region22: #{reverse.0} parent=8 // pred_check_branch
          %44 = sbr.rel (0) target = $region24
        $region23: #{reverse.0} parent=8 // pred_region
          loop: start=0, step=1, limit=1
          $region25: #{reverse.0} parent=23 // loop_pre_header
            _
          $region26: #{reverse.0} parent=23 // loop_header
            %s46 = sphi 0, %s50
            %p47 = scmp.ge.s32.totalorder %s46, 1
            %s51 = sphi %s0, %s0
            %s52 = sphi %s2, %s2
          $region27: #{reverse.0} parent=23 // loop_header_branch
            %49 = sbr.rel (%p47) target = $region31
          $region28: #{reverse.0} parent=23 // loop_body
            %v53 = vld [vmem:[%s51] sm:$0xff]
            %54 = vst [vmem:[%s52] sm:$0xff] %v53
            %v55 = vld [vmem:[%s51 + $0x8] sm:$0xff]
            %56 = vst [vmem:[%s52 + $0x10] sm:$0xff] %v55
            %v57 = vld [vmem:[%s51 + $0x10] sm:$0xff]
            %58 = vst [vmem:[%s52 + $0x20] sm:$0xff] %v57
            %v59 = vld [vmem:[%s51 + $0x18] sm:$0xff]
            %60 = vst [vmem:[%s52 + $0x30] sm:$0xff] %v59
            %v61 = vld [vmem:[%s51 + $0x20] sm:$0xff]
            %62 = vst [vmem:[%s52 + $0x40] sm:$0xff] %v61
            %v63 = vld [vmem:[%s51 + $0x28] sm:$0xff]
            %64 = vst [vmem:[%s52 + $0x50] sm:$0xff] %v63
            %v65 = vld [vmem:[%s51 + $0x30] sm:$0xff]
            %66 = vst [vmem:[%s52 + $0x60] sm:$0xff] %v65
            %v67 = vld [vmem:[%s51 + $0x38] sm:$0xff]
            %68 = vst [vmem:[%s52 + $0x70] sm:$0xff] %v67
            %v69 = vld [vmem:[%s51 + $0x40] sm:$0xff]
            %70 = vst [vmem:[%s52 + $0x80] sm:$0xff] %v69
            %v71 = vld [vmem:[%s51 + $0x48] sm:$0xff]
            %72 = vst [vmem:[%s52 + $0x90] sm:$0xff] %v71
            %v73 = vld [vmem:[%s51 + $0x50] sm:$0xff]
            %74 = vst [vmem:[%s52 + $0xa0] sm:$0xff] %v73
            %v75 = vld [vmem:[%s51 + $0x58] sm:$0xff]
            %76 = vst [vmem:[%s52 + $0xb0] sm:$0xff] %v75
          $region29: #{reverse.0} parent=23 // loop_footer
            %s50 = sadd.s32 1, %s46
          $region30: #{reverse.0} parent=23 // loop_footer_branch
            %45 = sbr.rel target = $region26
          $region31: #{reverse.0} parent=23 // loop_exit
            _
        $region24: #{reverse.0} parent=8 // pred_fallthru
          _
        // Predicated region
        $region32: #{reverse.0} parent=8 // pred_check
          _
        $region33: #{reverse.0} parent=8 // pred_check_branch
          %78 = sbr.rel target = $region35
        $region34: #{reverse.0} parent=8 // pred_region
          _
        $region35: #{reverse.0} parent=8 // pred_fallthru
          _
      $region9: #{reverse.0} parent=4 // pred_fallthru
        _
      // Predicated region
      $region10: #{reverse.0} parent=4 // pred_check
        _
      $region11: #{reverse.0} parent=4 // pred_check_branch
        %8 = sbr.rel target = $region13
      $region12: #{reverse.0} parent=4 // pred_region
        %s10 = ssub.s32 256, 1
        loop: start=0, step=1, limit=1
        $region14: #{reverse.0} parent=12 // loop_pre_header
          _
        $region15: #{reverse.0} parent=12 // loop_header
          %s12 = sphi 0, %s16
          %p13 = scmp.ge.s32.totalorder %s12, 1
          %s17 = sphi %s0, %s0
          %s18 = sphi %s2, %s2
        $region16: #{reverse.0} parent=12 // loop_header_branch
          %15 = sbr.rel (%p13) target = $region20
        $region17: #{reverse.0} parent=12 // loop_body
          %v19 = vld [vmem:[%s17] sm:%s10]
          %20 = vst [vmem:[%s18] sm:%s10] %v19
          %v21 = vld [vmem:[%s17 + $0x8] sm:%s10]
          %22 = vst [vmem:[%s18 + $0x10] sm:%s10] %v21
          %v23 = vld [vmem:[%s17 + $0x10] sm:%s10]
          %24 = vst [vmem:[%s18 + $0x20] sm:%s10] %v23
          %v25 = vld [vmem:[%s17 + $0x18] sm:%s10]
          %26 = vst [vmem:[%s18 + $0x30] sm:%s10] %v25
          %v27 = vld [vmem:[%s17 + $0x20] sm:%s10]
          %28 = vst [vmem:[%s18 + $0x40] sm:%s10] %v27
          %v29 = vld [vmem:[%s17 + $0x28] sm:%s10]
          %30 = vst [vmem:[%s18 + $0x50] sm:%s10] %v29
          %v31 = vld [vmem:[%s17 + $0x30] sm:%s10]
          %32 = vst [vmem:[%s18 + $0x60] sm:%s10] %v31
          %v33 = vld [vmem:[%s17 + $0x38] sm:%s10]
          %34 = vst [vmem:[%s18 + $0x70] sm:%s10] %v33
          %v35 = vld [vmem:[%s17 + $0x40] sm:%s10]
          %36 = vst [vmem:[%s18 + $0x80] sm:%s10] %v35
          %v37 = vld [vmem:[%s17 + $0x48] sm:%s10]
          %38 = vst [vmem:[%s18 + $0x90] sm:%s10] %v37
          %v39 = vld [vmem:[%s17 + $0x50] sm:%s10]
          %40 = vst [vmem:[%s18 + $0xa0] sm:%s10] %v39
          %v41 = vld [vmem:[%s17 + $0x58] sm:%s10]
          %42 = vst [vmem:[%s18 + $0xb0] sm:%s10] %v41
        $region18: #{reverse.0} parent=12 // loop_footer
          %s16 = sadd.s32 1, %s12
        $region19: #{reverse.0} parent=12 // loop_footer_branch
          %11 = sbr.rel target = $region15
        $region20: #{reverse.0} parent=12 // loop_exit
          _
      $region13: #{reverse.0} parent=4 // pred_fallthru
        _
    $region5: #{reverse.0} parent=1 // pred_fallthru
      _
    %79 = vnop
    %s80 = scalar_lea.vmem [#allocation0], 7
    %v81 = vld [vmem:[%s80] ss:$-1 sm:$0xff]
    %v82 = vrot.slane %v81, 1
    %83 = vst [vmem:[#allocation1] sm:$0xff] %v82
    %s84 = scalar_lea.vmem [#allocation0], 8
    %s85 = scalar_lea.vmem %s84, 7 [#allocation0]
    %v86 = vld [vmem:[%s85] ss:$-1 sm:$0xff]
    %v87 = vrot.slane %v86, 1
    %v88 = vlaneseq
    %v89 = vshrl.u32 %v88, 7
    %vm90 = vcmp.lt.s32.totalorder %v89, 7
    %91 = vst.msk [vmem:[#allocation1] sm:$0xff] %vm90, %v87
    %s92 = scalar_lea.vmem [#allocation1], 8
    %s93 = scalar_lea.vmem [#allocation0], 16
    %s94 = scalar_lea.vmem %s93, 7 [#allocation0]
    %v95 = vld [vmem:[%s94] ss:$-1 sm:$0xff]
    %v96 = vrot.slane %v95, 1
    %97 = vst [vmem:[%s92] sm:$0xff] %v96
    %s98 = scalar_lea.vmem %s93, 8 [#allocation0]
    %s99 = scalar_lea.vmem %s98, 7 [#allocation0]
    %v100 = vld [vmem:[%s99] ss:$-1 sm:$0xff]
    %v101 = vrot.slane %v100, 1
    %v102 = vlaneseq
    %v103 = vshrl.u32 %v102, 7
    %vm104 = vcmp.lt.s32.totalorder %v103, 7
    %105 = vst.msk [vmem:[%s92] sm:$0xff] %vm104, %v101
    %s106 = scalar_lea.vmem [#allocation1], 16
    %s107 = scalar_lea.vmem [#allocation0], 32
    %s108 = scalar_lea.vmem %s107, 7 [#allocation0]
    %v109 = vld [vmem:[%s108] ss:$-1 sm:$0xff]
    %v110 = vrot.slane %v109, 1
    %111 = vst [vmem:[%s106] sm:$0xff] %v110
    %s112 = scalar_lea.vmem %s107, 8 [#allocation0]
    %s113 = scalar_lea.vmem %s112, 7 [#allocation0]
    %v114 = vld [vmem:[%s113] ss:$-1 sm:$0xff]
    %v115 = vrot.slane %v114, 1
    %v116 = vlaneseq
    %v117 = vshrl.u32 %v116, 7
    %vm118 = vcmp.lt.s32.totalorder %v117, 7
    %119 = vst.msk [vmem:[%s106] sm:$0xff] %vm118, %v115
    %s120 = scalar_lea.vmem [#allocation1], 24
    %s121 = scalar_lea.vmem [#allocation0], 48
    %s122 = scalar_lea.vmem %s121, 7 [#allocation0]
    %v123 = vld [vmem:[%s122] ss:$-1 sm:$0xff]
    %v124 = vrot.slane %v123, 1
    %125 = vst [vmem:[%s120] sm:$0xff] %v124
    %s126 = scalar_lea.vmem %s121, 8 [#allocation0]
    %s127 = scalar_lea.vmem %s126, 7 [#allocation0]
    %v128 = vld [vmem:[%s127] ss:$-1 sm:$0xff]
    %v129 = vrot.slane %v128, 1
    %v130 = vlaneseq
    %v131 = vshrl.u32 %v130, 7
    %vm132 = vcmp.lt.s32.totalorder %v131, 7
    %133 = vst.msk [vmem:[%s120] sm:$0xff] %vm132, %v129
    %s134 = scalar_lea.vmem [#allocation1], 32
    %s135 = scalar_lea.vmem [#allocation0], 64
    %s136 = scalar_lea.vmem %s135, 7 [#allocation0]
    %v137 = vld [vmem:[%s136] ss:$-1 sm:$0xff]
    %v138 = vrot.slane %v137, 1
    %139 = vst [vmem:[%s134] sm:$0xff] %v138
    %s140 = scalar_lea.vmem %s135, 8 [#allocation0]
    %s141 = scalar_lea.vmem %s140, 7 [#allocation0]
    %v142 = vld [vmem:[%s141] ss:$-1 sm:$0xff]
    %v143 = vrot.slane %v142, 1
    %v144 = vlaneseq
    %v145 = vshrl.u32 %v144, 7
    %vm146 = vcmp.lt.s32.totalorder %v145, 7
    %147 = vst.msk [vmem:[%s134] sm:$0xff] %vm146, %v143
    %s148 = scalar_lea.vmem [#allocation1], 40
    %s149 = scalar_lea.vmem [#allocation0], 80
    %s150 = scalar_lea.vmem %s149, 7 [#allocation0]
    %v151 = vld [vmem:[%s150] ss:$-1 sm:$0xff]
    %v152 = vrot.slane %v151, 1
    %153 = vst [vmem:[%s148] sm:$0xff] %v152
    %s154 = scalar_lea.vmem %s149, 8 [#allocation0]
    %s155 = scalar_lea.vmem %s154, 7 [#allocation0]
    %v156 = vld [vmem:[%s155] ss:$-1 sm:$0xff]
    %v157 = vrot.slane %v156, 1
    %v158 = vlaneseq
    %v159 = vshrl.u32 %v158, 7
    %vm160 = vcmp.lt.s32.totalorder %v159, 7
    %161 = vst.msk [vmem:[%s148] sm:$0xff] %vm160, %v157
    %s162 = scalar_lea.vmem [#allocation1], 48
    %s163 = scalar_lea.vmem [#allocation0], 96
    %s164 = scalar_lea.vmem %s163, 7 [#allocation0]
    %v165 = vld [vmem:[%s164] ss:$-1 sm:$0xff]
    %v166 = vrot.slane %v165, 1
    %167 = vst [vmem:[%s162] sm:$0xff] %v166
    %s168 = scalar_lea.vmem %s163, 8 [#allocation0]
    %s169 = scalar_lea.vmem %s168, 7 [#allocation0]
    %v170 = vld [vmem:[%s169] ss:$-1 sm:$0xff]
    %v171 = vrot.slane %v170, 1
    %v172 = vlaneseq
    %v173 = vshrl.u32 %v172, 7
    %vm174 = vcmp.lt.s32.totalorder %v173, 7
    %175 = vst.msk [vmem:[%s162] sm:$0xff] %vm174, %v171
    %s176 = scalar_lea.vmem [#allocation1], 56
    %s177 = scalar_lea.vmem [#allocation0], 112
    %s178 = scalar_lea.vmem %s177, 7 [#allocation0]
    %v179 = vld [vmem:[%s178] ss:$-1 sm:$0xff]
    %v180 = vrot.slane %v179, 1
    %181 = vst [vmem:[%s176] sm:$0xff] %v180
    %s182 = scalar_lea.vmem %s177, 8 [#allocation0]
    %s183 = scalar_lea.vmem %s182, 7 [#allocation0]
    %v184 = vld [vmem:[%s183] ss:$-1 sm:$0xff]
    %v185 = vrot.slane %v184, 1
    %v186 = vlaneseq
    %v187 = vshrl.u32 %v186, 7
    %vm188 = vcmp.lt.s32.totalorder %v187, 7
    %189 = vst.msk [vmem:[%s176] sm:$0xff] %vm188, %v185
    %s190 = scalar_lea.vmem [#allocation1], 64
    %s191 = scalar_lea.vmem [#allocation0], 128
    %s192 = scalar_lea.vmem %s191, 7 [#allocation0]
    %v193 = vld [vmem:[%s192] ss:$-1 sm:$0xff]
    %v194 = vrot.slane %v193, 1
    %195 = vst [vmem:[%s190] sm:$0xff] %v194
    %s196 = scalar_lea.vmem %s191, 8 [#allocation0]
    %s197 = scalar_lea.vmem %s196, 7 [#allocation0]
    %v198 = vld [vmem:[%s197] ss:$-1 sm:$0xff]
    %v199 = vrot.slane %v198, 1
    %v200 = vlaneseq
    %v201 = vshrl.u32 %v200, 7
    %vm202 = vcmp.lt.s32.totalorder %v201, 7
    %203 = vst.msk [vmem:[%s190] sm:$0xff] %vm202, %v199
    %s204 = scalar_lea.vmem [#allocation1], 72
    %s205 = scalar_lea.vmem [#allocation0], 144
    %s206 = scalar_lea.vmem %s205, 7 [#allocation0]
    %v207 = vld [vmem:[%s206] ss:$-1 sm:$0xff]
    %v208 = vrot.slane %v207, 1
    %209 = vst [vmem:[%s204] sm:$0xff] %v208
    %s210 = scalar_lea.vmem %s205, 8 [#allocation0]
    %s211 = scalar_lea.vmem %s210, 7 [#allocation0]
    %v212 = vld [vmem:[%s211] ss:$-1 sm:$0xff]
    %v213 = vrot.slane %v212, 1
    %v214 = vlaneseq
    %v215 = vshrl.u32 %v214, 7
    %vm216 = vcmp.lt.s32.totalorder %v215, 7
    %217 = vst.msk [vmem:[%s204] sm:$0xff] %vm216, %v213
    %s218 = scalar_lea.vmem [#allocation1], 80
    %s219 = scalar_lea.vmem [#allocation0], 160
    %s220 = scalar_lea.vmem %s219, 7 [#allocation0]
    %v221 = vld [vmem:[%s220] ss:$-1 sm:$0xff]
    %v222 = vrot.slane %v221, 1
    %223 = vst [vmem:[%s218] sm:$0xff] %v222
    %s224 = scalar_lea.vmem %s219, 8 [#allocation0]
    %s225 = scalar_lea.vmem %s224, 7 [#allocation0]
    %v226 = vld [vmem:[%s225] ss:$-1 sm:$0xff]
    %v227 = vrot.slane %v226, 1
    %v228 = vlaneseq
    %v229 = vshrl.u32 %v228, 7
    %vm230 = vcmp.lt.s32.totalorder %v229, 7
    %231 = vst.msk [vmem:[%s218] sm:$0xff] %vm230, %v227
    %s232 = scalar_lea.vmem [#allocation1], 88
    %s233 = scalar_lea.vmem [#allocation0], 176
    %s234 = scalar_lea.vmem %s233, 7 [#allocation0]
    %v235 = vld [vmem:[%s234] ss:$-1 sm:$0xff]
    %v236 = vrot.slane %v235, 1
    %237 = vst [vmem:[%s232] sm:$0xff] %v236
    %s238 = scalar_lea.vmem %s233, 8 [#allocation0]
    %s239 = scalar_lea.vmem %s238, 7 [#allocation0]
    %v240 = vld [vmem:[%s239] ss:$-1 sm:$0xff]
    %v241 = vrot.slane %v240, 1
    %v242 = vlaneseq
    %v243 = vshrl.u32 %v242, 7
    %vm244 = vcmp.lt.s32.totalorder %v243, 7
    %245 = vst.msk [vmem:[%s232] sm:$0xff] %vm244, %v241
    // Predicated region
    $region36: #{reverse.0} parent=1 // pred_check
      _
    $region37: #{reverse.0} parent=1 // pred_check_branch
      %247 = sbr.rel (0) target = $region39
    $region38: #{reverse.0} parent=1 // pred_region
      // Predicated region
      $region40: #{reverse.0} parent=38 // pred_check
        _
      $region41: #{reverse.0} parent=38 // pred_check_branch
        %249 = sbr.rel (0) target = $region43
      $region42: #{reverse.0} parent=38 // pred_region
        // Predicated region
        $region55: #{reverse.0} parent=42 // pred_check
          _
        $region56: #{reverse.0} parent=42 // pred_check_branch
          %287 = sbr.rel (0) target = $region58
        $region57: #{reverse.0} parent=42 // pred_region
          loop: start=0, step=1, limit=1
          $region59: #{reverse.0} parent=57 // loop_pre_header
            _
          $region60: #{reverse.0} parent=57 // loop_header
            %s289 = sphi 0, %s293
            %p290 = scmp.ge.s32.totalorder %s289, 1
            %s294 = sphi [#allocation1], [#allocation1]
            %s295 = sphi %s1, %s1
          $region61: #{reverse.0} parent=57 // loop_header_branch
            %292 = sbr.rel (%p290) target = $region65
          $region62: #{reverse.0} parent=57 // loop_body
            %v296 = vld [vmem:[%s294] sm:$0xff]
            %297 = vst [vmem:[%s295] sm:$0xff] %v296
            %v298 = vld [vmem:[%s294 + $0x8] sm:$0xff]
            %299 = vst [vmem:[%s295 + $0x8] sm:$0xff] %v298
            %v300 = vld [vmem:[%s294 + $0x10] sm:$0xff]
            %301 = vst [vmem:[%s295 + $0x10] sm:$0xff] %v300
            %v302 = vld [vmem:[%s294 + $0x18] sm:$0xff]
            %303 = vst [vmem:[%s295 + $0x18] sm:$0xff] %v302
            %v304 = vld [vmem:[%s294 + $0x20] sm:$0xff]
            %305 = vst [vmem:[%s295 + $0x20] sm:$0xff] %v304
            %v306 = vld [vmem:[%s294 + $0x28] sm:$0xff]
            %307 = vst [vmem:[%s295 + $0x28] sm:$0xff] %v306
            %v308 = vld [vmem:[%s294 + $0x30] sm:$0xff]
            %309 = vst [vmem:[%s295 + $0x30] sm:$0xff] %v308
            %v310 = vld [vmem:[%s294 + $0x38] sm:$0xff]
            %311 = vst [vmem:[%s295 + $0x38] sm:$0xff] %v310
            %v312 = vld [vmem:[%s294 + $0x40] sm:$0xff]
            %313 = vst [vmem:[%s295 + $0x40] sm:$0xff] %v312
            %v314 = vld [vmem:[%s294 + $0x48] sm:$0xff]
            %315 = vst [vmem:[%s295 + $0x48] sm:$0xff] %v314
            %v316 = vld [vmem:[%s294 + $0x50] sm:$0xff]
            %317 = vst [vmem:[%s295 + $0x50] sm:$0xff] %v316
            %v318 = vld [vmem:[%s294 + $0x58] sm:$0xff]
            %319 = vst [vmem:[%s295 + $0x58] sm:$0xff] %v318
          $region63: #{reverse.0} parent=57 // loop_footer
            %s293 = sadd.s32 1, %s289
          $region64: #{reverse.0} parent=57 // loop_footer_branch
            %288 = sbr.rel target = $region60
          $region65: #{reverse.0} parent=57 // loop_exit
            _
        $region58: #{reverse.0} parent=42 // pred_fallthru
          _
        // Predicated region
        $region66: #{reverse.0} parent=42 // pred_check
          _
        $region67: #{reverse.0} parent=42 // pred_check_branch
          %321 = sbr.rel target = $region69
        $region68: #{reverse.0} parent=42 // pred_region
          _
        $region69: #{reverse.0} parent=42 // pred_fallthru
          _
      $region43: #{reverse.0} parent=38 // pred_fallthru
        _
      // Predicated region
      $region44: #{reverse.0} parent=38 // pred_check
        _
      $region45: #{reverse.0} parent=38 // pred_check_branch
        %251 = sbr.rel target = $region47
      $region46: #{reverse.0} parent=38 // pred_region
        %s253 = ssub.s32 256, 1
        loop: start=0, step=1, limit=1
        $region48: #{reverse.0} parent=46 // loop_pre_header
          _
        $region49: #{reverse.0} parent=46 // loop_header
          %s255 = sphi 0, %s259
          %p256 = scmp.ge.s32.totalorder %s255, 1
          %s260 = sphi [#allocation1], [#allocation1]
          %s261 = sphi %s1, %s1
        $region50: #{reverse.0} parent=46 // loop_header_branch
          %258 = sbr.rel (%p256) target = $region54
        $region51: #{reverse.0} parent=46 // loop_body
          %v262 = vld [vmem:[%s260] sm:%s253]
          %263 = vst [vmem:[%s261] sm:%s253] %v262
          %v264 = vld [vmem:[%s260 + $0x8] sm:%s253]
          %265 = vst [vmem:[%s261 + $0x8] sm:%s253] %v264
          %v266 = vld [vmem:[%s260 + $0x10] sm:%s253]
          %267 = vst [vmem:[%s261 + $0x10] sm:%s253] %v266
          %v268 = vld [vmem:[%s260 + $0x18] sm:%s253]
          %269 = vst [vmem:[%s261 + $0x18] sm:%s253] %v268
          %v270 = vld [vmem:[%s260 + $0x20] sm:%s253]
          %271 = vst [vmem:[%s261 + $0x20] sm:%s253] %v270
          %v272 = vld [vmem:[%s260 + $0x28] sm:%s253]
          %273 = vst [vmem:[%s261 + $0x28] sm:%s253] %v272
          %v274 = vld [vmem:[%s260 + $0x30] sm:%s253]
          %275 = vst [vmem:[%s261 + $0x30] sm:%s253] %v274
          %v276 = vld [vmem:[%s260 + $0x38] sm:%s253]
          %277 = vst [vmem:[%s261 + $0x38] sm:%s253] %v276
          %v278 = vld [vmem:[%s260 + $0x40] sm:%s253]
          %279 = vst [vmem:[%s261 + $0x40] sm:%s253] %v278
          %v280 = vld [vmem:[%s260 + $0x48] sm:%s253]
          %281 = vst [vmem:[%s261 + $0x48] sm:%s253] %v280
          %v282 = vld [vmem:[%s260 + $0x50] sm:%s253]
          %283 = vst [vmem:[%s261 + $0x50] sm:%s253] %v282
          %v284 = vld [vmem:[%s260 + $0x58] sm:%s253]
          %285 = vst [vmem:[%s261 + $0x58] sm:%s253] %v284
        $region52: #{reverse.0} parent=46 // loop_footer
          %s259 = sadd.s32 1, %s255
        $region53: #{reverse.0} parent=46 // loop_footer_branch
          %254 = sbr.rel target = $region49
        $region54: #{reverse.0} parent=46 // loop_exit
          _
      $region47: #{reverse.0} parent=38 // pred_fallthru
        _
    $region39: #{reverse.0} parent=1 // pred_fallthru
      _
    %322 = vnop

// kernel: ffc_forward.5
$region0: #{ffc_forward.5}
  #allocation0 [shape = 'u32[]', space=smem, size = 0x4, offset = 0x4, fixed_abs, tag = 'smem constant byte address 0x4 - core index']
  #allocation1 [shape = 'u32[72,128]{1,0:T(1,128)}', space=vmem, size = 0x9000, scoped, tag = 'internal scratch']
  %s0 = inlined_call_operand.vmem [shape: bf16[2,6,256], index: 0, kind: input, shape index: {}]
  %s1 = inlined_call_operand.vmem [shape: bf16[2,6,256], index: 1, kind: input, shape index: {}]
  %s2 = inlined_call_operand.vmem [shape: bf16[2,12,256], index: 2, kind: input, shape index: {}]
  %s3 = inlined_call_operand.vmem [shape: bf16[12,6], index: 3, kind: input, shape index: {}]
  %s4 = inlined_call_operand.vmem [shape: f32[2,12,256], index: 4, kind: output, shape index: {}]
  %s5 = sld [smem:[#allocation0]]
  $region49: #{ffc_forward.5} parent=0
    _
  %s7 = ssub.s32 1, %s5
  %s8 = scalar_select 0, %s7, %s5
  loop: start=0, step=1, limit=4
  $region2: #{ffc_forward.5} parent=0 // loop_pre_header
    _
  $region3: #{ffc_forward.5} parent=0 // loop_header
    %s10 = sphi 0, %s14
    %p11 = scmp.ge.s32.totalorder %s10, 4
    %s20 = sphi 0, %s22
    %s23 = sphi 0, %s20
    %s24 = sphi 0, %s23
    %s40 = sphi 0, %s24
    %s46 = sphi 0, %s48
    %s49 = sphi 0, %s46
    %s50 = sphi 0, %s49
    %s66 = sphi 0, %s50
    %s72 = sphi 0, %s74
    %s75 = sphi 0, %s72
    %s76 = sphi 0, %s75
    %s92 = sphi 0, %s76
    %s96 = sphi 0, %s96
    %s98 = sphi 0, %s96
    %s99 = sphi 0, %s98
    %s113 = sphi 0, %s99
    %s119 = sphi 0, %s121
    %s122 = sphi 0, %s119
    %s123 = sphi 0, %s122
    %s139 = sphi 0, %s123
  $region4: #{ffc_forward.5} parent=0 // loop_header_branch
    %13 = sbr.rel (%p11) target = $region8
  $region5: #{ffc_forward.5} parent=0 // loop_body
    %s15 = ssub.s32 %s10, 1
    %s16 = ssub.s32 %s10, 2
    %s17 = sadd.s32 %s10, 1
    %s18 = ssub.s32 %s10, %s17
    %p19 = scmp.eq.s32.totalorder %s18, 0
    %s21 = sadd.s32 %s20, 1
    %s22 = scalar_select %p19, %s20, %s21
    %p25 = pneg %p19
    %p26 = scmp.eq.s32.totalorder %s10, 1
    %p27 = por %p25, %p26
    %p28 = scmp.ne.s32.totalorder %s20, %s23
    %p29 = scmp.eq.s32.totalorder %s10, 0
    %p30 = por %p28, %p29
    %p31 = scmp.ne.s32.totalorder %s20, %s23
    %p32 = scmp.eq.s32.totalorder %s15, 1
    %p33 = por %p31, %p32
    %p34 = scmp.ne.s32.totalorder %s23, %s24
    %p35 = scmp.eq.s32.totalorder %s15, 0
    %p36 = por %p34, %p35
    %p37 = scmp.ne.s32.totalorder %s23, %s24
    %p38 = scmp.eq.s32.totalorder %s16, 1
    %p39 = por %p37, %p38
    %p41 = scmp.ne.s32.totalorder %s24, %s40
    %p42 = scmp.eq.s32.totalorder %s16, 0
    %p43 = por %p41, %p42
    %s44 = ssub.s32 %s10, %s17
    %p45 = scmp.eq.s32.totalorder %s44, 0
    %s47 = sadd.s32 %s46, 1
    %s48 = scalar_select %p45, %s46, %s47
    %p51 = pneg %p45
    %p52 = scmp.eq.s32.totalorder %s10, 1
    %p53 = por %p51, %p52
    %p54 = scmp.ne.s32.totalorder %s46, %s49
    %p55 = scmp.eq.s32.totalorder %s10, 0
    %p56 = por %p54, %p55
    %p57 = scmp.ne.s32.totalorder %s46, %s49
    %p58 = scmp.eq.s32.totalorder %s15, 1
    %p59 = por %p57, %p58
    %p60 = scmp.ne.s32.totalorder %s49, %s50
    %p61 = scmp.eq.s32.totalorder %s15, 0
    %p62 = por %p60, %p61
    %p63 = scmp.ne.s32.totalorder %s49, %s50
    %p64 = scmp.eq.s32.totalorder %s16, 1
    %p65 = por %p63, %p64
    %p67 = scmp.ne.s32.totalorder %s50, %s66
    %p68 = scmp.eq.s32.totalorder %s16, 0
    %p69 = por %p67, %p68
    %s70 = ssub.s32 %s10, %s17
    %p71 = scmp.eq.s32.totalorder %s70, 0
    %s73 = sadd.s32 %s72, 1
    %s74 = scalar_select %p71, %s72, %s73
    %p77 = pneg %p71
    %p78 = scmp.eq.s32.totalorder %s10, 1
    %p79 = por %p77, %p78
    %p80 = scmp.ne.s32.totalorder %s72, %s75
    %p81 = scmp.eq.s32.totalorder %s10, 0
    %p82 = por %p80, %p81
    %p83 = scmp.ne.s32.totalorder %s72, %s75
    %p84 = scmp.eq.s32.totalorder %s15, 1
    %p85 = por %p83, %p84
    %p86 = scmp.ne.s32.totalorder %s75, %s76
    %p87 = scmp.eq.s32.totalorder %s15, 0
    %p88 = por %p86, %p87
    %p89 = scmp.ne.s32.totalorder %s75, %s76
    %p90 = scmp.eq.s32.totalorder %s16, 1
    %p91 = por %p89, %p90
    %p93 = scmp.ne.s32.totalorder %s76, %s92
    %p94 = scmp.eq.s32.totalorder %s16, 0
    %p95 = por %p93, %p94
    %s97 = sadd.s32 %s96, 1
    %p100 = scmp.eq.s32.totalorder %s10, 1
    %p101 = scmp.ne.s32.totalorder %s96, %s98
    %p102 = scmp.eq.s32.totalorder %s10, 0
    %p103 = por %p101, %p102
    %p104 = scmp.ne.s32.totalorder %s96, %s98
    %p105 = scmp.eq.s32.totalorder %s15, 1
    %p106 = por %p104, %p105
    %p107 = scmp.ne.s32.totalorder %s98, %s99
    %p108 = scmp.eq.s32.totalorder %s15, 0
    %p109 = por %p107, %p108
    %p110 = scmp.ne.s32.totalorder %s98, %s99
    %p111 = scmp.eq.s32.totalorder %s16, 1
    %p112 = por %p110, %p111
    %p114 = scmp.ne.s32.totalorder %s99, %s113
    %p115 = scmp.eq.s32.totalorder %s16, 0
    %p116 = por %p114, %p115
    %s117 = ssub.s32 %s10, %s17
    %p118 = scmp.eq.s32.totalorder %s117, 0
    %s120 = sadd.s32 %s119, 1
    %s121 = scalar_select %p118, %s119, %s120
    %p124 = pneg %p118
    %p125 = scmp.eq.s32.totalorder %s10, 1
    %p126 = por %p124, %p125
    %p127 = scmp.ne.s32.totalorder %s119, %s122
    %p128 = scmp.eq.s32.totalorder %s10, 0
    %p129 = por %p127, %p128
    %p130 = scmp.ne.s32.totalorder %s119, %s122
    %p131 = scmp.eq.s32.totalorder %s15, 1
    %p132 = por %p130, %p131
    %p133 = scmp.ne.s32.totalorder %s122, %s123
    %p134 = scmp.eq.s32.totalorder %s15, 0
    %p135 = por %p133, %p134
    %p136 = scmp.ne.s32.totalorder %s122, %s123
    %p137 = scmp.eq.s32.totalorder %s16, 1
    %p138 = por %p136, %p137
    %p140 = scmp.ne.s32.totalorder %s123, %s139
    %p141 = scmp.eq.s32.totalorder %s16, 0
    %p142 = por %p140, %p141
    %p143 = scmp.le.s32.totalorder 1, %s10
    %p144 = scmp.lt.s32.totalorder %s10, 3
    %p145 = pnand %p143, %p144
    %p146 = pneg %p145
    // Predicated region
    $region9: #{ffc_forward.5} parent=5 // pred_check
      _
    $region10: #{ffc_forward.5} parent=5 // pred_check_branch
      %148 = sbr.rel (%p145) target = $region12
    $region11: #{ffc_forward.5} parent=5 // pred_region
      %s149 = ssub.s32 %s10, 1
      // Predicated region
      $region13: #{ffc_forward.5} parent=11 // pred_check
        %p150 = pneg %p109
      $region14: #{ffc_forward.5} parent=11 // pred_check_branch
        %152 = sbr.rel (%p150) target = $region16
      $region15: #{ffc_forward.5} parent=11 // pred_region
        _
      $region16: #{ffc_forward.5} parent=11 // pred_fallthru
        _
    $region12: #{ffc_forward.5} parent=5 // pred_fallthru
      _
    %p153 = scmp.lt.s32.totalorder %s10, 2
    // Predicated region
    $region17: #{ffc_forward.5} parent=5 // pred_check
      %p154 = pneg %p153
    $region18: #{ffc_forward.5} parent=5 // pred_check_branch
      %156 = sbr.rel (%p154) target = $region20
    $region19: #{ffc_forward.5} parent=5 // pred_region
      // Predicated region
      $region21: #{ffc_forward.5} parent=19 // pred_check
        %p157 = pneg %p30
      $region22: #{ffc_forward.5} parent=19 // pred_check_branch
        %159 = sbr.rel (%p157) target = $region24
      $region23: #{ffc_forward.5} parent=19 // pred_region
        %p160 = scmp.lt.s32.totalorder %s10, 1
        %s161 = scalar_select %p160, %s10, 1
        %s162 = smul.addr %s161, 2
        %s163 = smul.addr %s162, 4
        %s164 = scalar_lea.vmem %s0, %s163
      $region24: #{ffc_forward.5} parent=19 // pred_fallthru
        _
      // Predicated region
      $region25: #{ffc_forward.5} parent=19 // pred_check
        %p165 = pneg %p56
      $region26: #{ffc_forward.5} parent=19 // pred_check_branch
        %167 = sbr.rel (%p165) target = $region28
      $region27: #{ffc_forward.5} parent=19 // pred_region
        %p168 = scmp.lt.s32.totalorder %s10, 1
        %s169 = scalar_select %p168, %s10, 1
        %s170 = smul.addr %s169, 2
        %s171 = smul.addr %s170, 4
        %s172 = scalar_lea.vmem %s1, %s171
      $region28: #{ffc_forward.5} parent=19 // pred_fallthru
        _
      // Predicated region
      $region29: #{ffc_forward.5} parent=19 // pred_check
        %p173 = pneg %p82
      $region30: #{ffc_forward.5} parent=19 // pred_check_branch
        %175 = sbr.rel (%p173) target = $region32
      $region31: #{ffc_forward.5} parent=19 // pred_region
        %p176 = scmp.lt.s32.totalorder %s10, 1
        %s177 = scalar_select %p176, %s10, 1
        %s178 = smul.addr %s177, 4
        %s179 = smul.addr %s178, 4
        %s180 = scalar_lea.vmem %s2, %s179
      $region32: #{ffc_forward.5} parent=19 // pred_fallthru
        _
    $region20: #{ffc_forward.5} parent=5 // pred_fallthru
      _
    %p181 = scmp.le.s32.totalorder 1, %s10
    %p182 = scmp.lt.s32.totalorder %s10, 3
    %p183 = pnand %p181, %p182
    %p184 = pneg %p183
    // Predicated region
    $region33: #{ffc_forward.5} parent=5 // pred_check
      _
    $region34: #{ffc_forward.5} parent=5 // pred_check_branch
      %186 = sbr.rel (%p183) target = $region36
    $region35: #{ffc_forward.5} parent=5 // pred_region
      %s187 = ssub.s32 %s10, 1
      %p188 = scmp.lt.s32.totalorder %s15, 1
      %s189 = scalar_select %p188, %s15, 1
      %s190 = smul.addr %s189, 2
      %s191 = smul.addr %s190, 4
      %s192 = scalar_lea.vmem %s0, %s191
      %p193 = pneg %p36
      %p194 = pneg %p33
      %p195 = scmp.lt.s32.totalorder %s15, 1
      %s196 = scalar_select %p195, %s15, 1
      %s197 = smul.addr %s196, 2
      %s198 = smul.addr %s197, 4
      %s199 = scalar_lea.vmem %s1, %s198
      %p200 = pneg %p62
      %p201 = pneg %p59
      %p202 = scmp.lt.s32.totalorder %s15, 1
      %s203 = scalar_select %p202, %s15, 1
      %s204 = smul.addr %s203, 4
      %s205 = smul.addr %s204, 4
      %s206 = scalar_lea.vmem %s2, %s205
      %p207 = pneg %p88
      %p208 = pneg %p85
      %p209 = pneg %p109
      %p210 = pneg %p106
      %p211 = pneg %p135
      %p212 = pneg %p132
      %p213 = scmp.lt.s32.totalorder %s15, 1
      %s214 = scalar_select %p213, %s15, 1
      %s215 = smul.addr %s214, 4
      %s216 = smul.addr %s215, 8
      %s217 = scalar_lea.vmem %s4, %s216
      %p218 = scmp.lt.s32.totalorder %s15, 1
      %s219 = scalar_select %p218, %s15, 1
      %s220 = smul.addr %s219, 2
      %s221 = smul.addr %s220, 4
      %s222 = scalar_lea.vmem %s0, %s221
      %p223 = scmp.lt.s32.totalorder %s15, 1
      %s224 = scalar_select %p223, %s15, 1
      %s225 = smul.addr %s224, 2
      %s226 = smul.addr %s225, 4
      %s227 = scalar_lea.vmem %s1, %s226
      %p228 = scmp.lt.s32.totalorder %s15, 1
      %s229 = scalar_select %p228, %s15, 1
      %s230 = smul.addr %s229, 4
      %s231 = smul.addr %s230, 4
      %s232 = scalar_lea.vmem %s2, %s231
      %p233 = scmp.lt.s32.totalorder %s15, 1
      %s234 = scalar_select %p233, %s15, 1
      %s235 = smul.addr %s234, 4
      %s236 = smul.addr %s235, 8
      %s237 = scalar_lea.vmem %s4, %s236
      %v239 = vld [vmem:[%s222] sm:$0x77]
      %v240 = vunpack.c.l.bf16 %v239
      %v241 = vunpack.c.h.bf16 %v239
      %v242 = vld [vmem:[%s227] sm:$0x77]
      %v243 = vunpack.c.l.bf16 %v242
      %v244 = vunpack.c.h.bf16 %v242
      %v245 = vadd.f32 %v240, %v243
      %v246 = vadd.f32 %v241, %v244
      %v247 = vld [vmem:[%s3] sm:$0xf]
      %v248 = vld [vmem:[%s3 + $0x4] sm:$0x3]
      %v249 = vpack.c.bf16 %v245, %v245
      %v250 = vpack.c.bf16 %v246, %v246
      %v251 = vld [vmem:[%s232] sm:$0xff]
      %v252 = vld [vmem:[%s232 + $0x8] sm:$0x33]
      %v253 = vunpack.c.l.bf16 %v251
      %v254 = vunpack.c.h.bf16 %v251
      %v255 = vunpack.c.l.bf16 %v252
      %v256 = vunpack.c.h.bf16 %v252
      %v259 = vunpack.c.l.b16 %v247
      %v260 = vunpack.c.l.b16 %v248
      %v261 = vpack.c.b16 %v260, %v259
      %vm262 = vcmask 48128
      %v264 = vsel %vm262, %v261, 0
      %vm266 = vcmask 1042432
      %v268 = vsel %vm266, %v249, 0
      %v271 = vsel %vm266, %v250, 0
      %273 = vmatpush.bf16.msra.mxu0 0
      %274 = vmatpush.bf16.msra.mxu0 0
      %275 = vmatpush.bf16.msra.mxu0 0
      %276 = vmatpush.bf16.msra.mxu0 0
      %277 = vmatpush.bf16.msra.mxu0 0
      %278 = vmatpush.bf16.msra.mxu0 0
      %279 = vmatpush.bf16.msra.mxu0 0
      %280 = vmatpush.bf16.msra.mxu0 %v268
      %281 = vmatmul.bf16.gmra.mxu0 %v264
      %v282 = vpop.f32.mrf.mxu0
      %v283 = vadd.f32 %v253, %v282
      %v284 = vpop.f32.mrf.mxu0
      %v285 = vadd.f32 %v255, %v284
      %286 = vdwg.mxu0
      %287 = vmatpush.bf16.msra.mxu0 0
      %288 = vmatpush.bf16.msra.mxu0 0
      %289 = vmatpush.bf16.msra.mxu0 0
      %290 = vmatpush.bf16.msra.mxu0 0
      %291 = vmatpush.bf16.msra.mxu0 0
      %292 = vmatpush.bf16.msra.mxu0 0
      %293 = vmatpush.bf16.msra.mxu0 0
      %294 = vmatpush.bf16.msra.mxu0 %v271
      %295 = vmatmul.bf16.gmra.mxu0 %v264
      %v296 = vpop.f32.mrf.mxu0
      %v297 = vadd.f32 %v254, %v296
      %v298 = vpop.f32.mrf.mxu0
      %v299 = vadd.f32 %v256, %v298
      %300 = vdwg.mxu0
      %301 = vst [vmem:[%s237] sm:$0xff] %v283
      %302 = vst [vmem:[%s237 + $0x8] sm:$0xff] %v297
      %303 = vst [vmem:[%s237 + $0x10] sm:$0xf] %v285
      %304 = vst [vmem:[%s237 + $0x18] sm:$0xf] %v299
      %p305 = scmp.lt.s32.totalorder %s15, 1
      %s306 = scalar_select %p305, %s15, 1
      %s307 = smul.addr %s306, 4
      %s308 = smul.addr %s307, 8
      %s309 = scalar_lea.vmem %s4, %s308
      // Predicated region
      $region37: #{ffc_forward.5} parent=35 // pred_check
        %p310 = pneg %p132
      $region38: #{ffc_forward.5} parent=35 // pred_check_branch
        %312 = sbr.rel (%p310) target = $region40
      $region39: #{ffc_forward.5} parent=35 // pred_region
        _
      $region40: #{ffc_forward.5} parent=35 // pred_fallthru
        _
    $region36: #{ffc_forward.5} parent=5 // pred_fallthru
      _
    %p313 = scmp.le.s32.totalorder 2, %s10
    // Predicated region
    $region41: #{ffc_forward.5} parent=5 // pred_check
      %p314 = pneg %p313
    $region42: #{ffc_forward.5} parent=5 // pred_check_branch
      %316 = sbr.rel (%p314) target = $region44
    $region43: #{ffc_forward.5} parent=5 // pred_region
      %s317 = ssub.s32 %s10, 2
      // Predicated region
      $region45: #{ffc_forward.5} parent=43 // pred_check
        %p318 = pneg %p138
      $region46: #{ffc_forward.5} parent=43 // pred_check_branch
        %320 = sbr.rel (%p318) target = $region48
      $region47: #{ffc_forward.5} parent=43 // pred_region
        %p321 = scmp.lt.s32.totalorder %s16, 1
        %s322 = scalar_select %p321, %s16, 1
        %s323 = smul.addr %s322, 4
        %s324 = smul.addr %s323, 8
        %s325 = scalar_lea.vmem %s4, %s324
      $region48: #{ffc_forward.5} parent=43 // pred_fallthru
        _
    $region44: #{ffc_forward.5} parent=5 // pred_fallthru
      _
  $region6: #{ffc_forward.5} parent=0 // loop_footer
    %s14 = sadd.s32 1, %s10
  $region7: #{ffc_forward.5} parent=0 // loop_footer_branch
    %9 = sbr.rel target = $region3
  $region8: #{ffc_forward.5} parent=0 // loop_exit
    _

</llo_original>
